<compile_context>
chip_gen: v5e
topology: v5e:2x2
jax: 0.10.0
libtpu: 0.0.40
codegen_flags: <defaults>
</compile_context>

<pallas_src>
import functools

import jax
import jax.numpy as jnp
import numpy as np
from jax.experimental import pallas as pl
from jax.experimental.pallas import tpu as pltpu

_EPS = 1e-12                 # torch.nn.functional.normalize default eps
_NEG_BIG = -1e30             # additive bias for off-head-block logits
_HIGHEST = jax.lax.Precision.HIGHEST


# ---------------------------------------------------------------------------
# Kernel 1 ("stats"): per batch element, tiled over the sequence axis.
#   - RMSNorm + qkv projection directly in 'd-major' layout (3C, tile_n)
#   - writes orig_v tiles (already 'b (h d) n')
#   - accumulates G = q^T k and sum(q^2), sum(k^2) over sequence tiles
#   - finalizes the block-diagonal attention matrix S on the last tile
# ---------------------------------------------------------------------------
def _stats_kernel(x_ref, gscale_ref, wqkv_ref, temp_ref, bias_ref,
                  v_ref, s_ref,
                  g_acc, qss_acc, kss_acc,
                  *, C, attend_scale, mm_dtype):
    t = pl.program_id(1)

    @pl.when(t == 0)
    def _():
        g_acc[...] = jnp.zeros_like(g_acc)
        qss_acc[...] = jnp.zeros_like(qss_acc)
        kss_acc[...] = jnp.zeros_like(kss_acc)

    # ---- RMSNorm: F.normalize(x, dim=-1) * sqrt(D) * gamma   (gscale = gamma*sqrt(D))
    x = x_ref[0]                                              # (TN, D) f32
    nrm = jnp.sqrt(jnp.sum(x * x, axis=-1, keepdims=True))
    xn = x / jnp.maximum(nrm, _EPS) * gscale_ref[...]         # (TN, D) f32

    # ---- qkv projection straight into 'd-major' layout: (3C, TN)
    #      wqkv is used in its native (3C, D) layout; contraction over D.
    qkv_t = jax.lax.dot_general(
        wqkv_ref[...], xn.astype(mm_dtype),
        dimension_numbers=(((1,), (1,)), ((), ())),
        preferred_element_type=jnp.float32)
    q_t = qkv_t[:C]                                           # (C, TN)
    k_t = qkv_t[C:2 * C]                                      # (C, TN)
    v_t = qkv_t[2 * C:]                                       # (C, TN)

    # orig_v tile, already in 'b (h d) n' layout -> lane-dense store
    v_ref[0] = v_t

    # ---- accumulate l2-norm statistics and the unnormalised Gram matrix
    qss_acc[...] += jnp.sum(q_t * q_t, axis=-1, keepdims=True)      # (C, 1)
    kss_acc[...] += jnp.sum(k_t * k_t, axis=-1, keepdims=True)      # (C, 1)
    g_acc[...] += jax.lax.dot_general(                              # (C, C)
        q_t, k_t,
        dimension_numbers=(((1,), (1,)), ((), ())),                 # contract over n
        precision=_HIGHEST,
        preferred_element_type=jnp.float32)

    # ---- finalize: l2-normalisation, temperature, scale, masked softmax
    @pl.when(t == pl.num_programs(1) - 1)
    def _():
        rq = 1.0 / jnp.maximum(jnp.sqrt(qss_acc[...]), _EPS)        # (C, 1)
        rk = 1.0 / jnp.maximum(jnp.sqrt(kss_acc[...]), _EPS)        # (C, 1)
        rowfac = (attend_scale * temp_ref[...]) * rq                # (C, 1)
        sim = g_acc[...] * rowfac * jnp.transpose(rk) + bias_ref[...]
        m = jnp.max(sim, axis=-1, keepdims=True)
        p = jnp.exp(sim - m)
        denom = jnp.sum(p, axis=-1, keepdims=True)
        s_ref[0] = p * pl.reciprocal(denom, approx=True)            # (C, C)


# ---------------------------------------------------------------------------
# Kernel 2 ("apply"): out = to_out(attend.S @ v), tiled over the sequence axis.
# ---------------------------------------------------------------------------
def _apply_kernel(v_ref, s_ref, wout_ref, o_ref, *, mm_dtype):
    # out[b, hi, n] = sum_hj S[hi, hj] * v[b, hj, n]   (S is block-diagonal)
    o_dn = jnp.dot(s_ref[0], v_ref[0],
                   precision=_HIGHEST,
                   preferred_element_type=jnp.float32)              # (C, TN)
    # to_out: Linear(H*DH, D, bias=False), wout in native (D, C) layout
    o_ref[0] = jnp.dot(wout_ref[...], o_dn.astype(mm_dtype),
                       preferred_element_type=jnp.float32)          # (D, TN)


def _pick_block_n(n):
    for cand in (512, 256, 128):
        if n % cand == 0:
            return cand
    return n  # fall back to the whole sequence resident


def linear_attention(x, gamma, wqkv, temperature, wout, *, heads, dim_head,
                     attend_scale=8.0, block_n=None,
                     matmul_dtype=jnp.bfloat16):
    """Pallas wrapper.  x: (B, N, D) f32.
    Returns (out (B, N, D), orig_v (B, H, DH, N)) like the PyTorch module."""
    B, N, D = x.shape
    H, DH = heads, dim_head
    C = H * DH
    assert wqkv.shape == (3 * C, D)
    assert wout.shape == (D, C)

    if block_n is None:
        block_n = _pick_block_n(N)
    assert N % block_n == 0, "block_n must divide N"
    assert block_n == N or block_n % 128 == 0, "block_n must be N or a multiple of 128"
    nt = N // block_n

    # ---- wrapper-side parameter preprocessing (done once by XLA) ----
    gscale = (gamma.astype(jnp.float32) * (float(D) ** 0.5)).reshape(1, D)
    wqkv_c = wqkv.astype(matmul_dtype)                  # native (3C, D) layout, no .T
    wout_c = wout.astype(matmul_dtype)                  # native (D, C) layout, no .T
    temp_col = jnp.repeat(
        jnp.exp(temperature.astype(jnp.float32).reshape(H)), DH).reshape(C, 1)
    head_id = jnp.arange(C, dtype=jnp.int32) // DH      # block-diagonal mask bias
    bias = jnp.where(head_id[:, None] == head_id[None, :],
                     0.0, _NEG_BIG).astype(jnp.float32)

    vmem_limit = 32 * 1024 * 1024

    v_d, s_attn = pl.pallas_call(
        functools.partial(_stats_kernel, C=C, attend_scale=float(attend_scale),
                          mm_dtype=matmul_dtype),
        out_shape=(jax.ShapeDtypeStruct((B, C, N), jnp.float32),
                   jax.ShapeDtypeStruct((B, C, C), jnp.float32)),
        grid_spec=pltpu.PrefetchScalarGridSpec(
            num_scalar_prefetch=0,
            grid=(B, nt),
            in_specs=[
                pl.BlockSpec((1, block_n, D), lambda b, t: (b, t, 0)),   # x
                pl.BlockSpec((1, D), lambda b, t: (0, 0)),               # gamma*sqrt(D)
                pl.BlockSpec((3 * C, D), lambda b, t: (0, 0)),           # W_qkv
                pl.BlockSpec((C, 1), lambda b, t: (0, 0)),               # exp(temperature)
                pl.BlockSpec((C, C), lambda b, t: (0, 0)),               # block-diag bias
            ],
            out_specs=[
                pl.BlockSpec((1, C, block_n), lambda b, t: (b, 0, t)),   # orig_v 'b c n'
                pl.BlockSpec((1, C, C), lambda b, t: (b, 0, 0)),         # attention matrix
            ],
            scratch_shapes=[
                pltpu.VMEM((C, C), jnp.float32),                         # Gram accumulator
                pltpu.VMEM((C, 1), jnp.float32),                         # sum(q^2) over n
                pltpu.VMEM((C, 1), jnp.float32),                         # sum(k^2) over n
            ]),
        compiler_params=pltpu.CompilerParams(
            dimension_semantics=("parallel", "arbitrary"),
            vmem_limit_bytes=vmem_limit),
    )(x, gscale, wqkv_c, temp_col, bias)

    out_d = pl.pallas_call(
        functools.partial(_apply_kernel, mm_dtype=matmul_dtype),
        out_shape=jax.ShapeDtypeStruct((B, D, N), jnp.float32),
        grid_spec=pltpu.PrefetchScalarGridSpec(
            num_scalar_prefetch=0,
            grid=(B, nt),
            in_specs=[
                pl.BlockSpec((1, C, block_n), lambda b, t: (b, 0, t)),   # orig_v
                pl.BlockSpec((1, C, C), lambda b, t: (b, 0, 0)),         # attention matrix
                pl.BlockSpec((D, C), lambda b, t: (0, 0)),               # W_out
            ],
            out_specs=pl.BlockSpec((1, D, block_n), lambda b, t: (b, 0, t)),
        ),
        compiler_params=pltpu.CompilerParams(
            dimension_semantics=("parallel", "arbitrary"),
            vmem_limit_bytes=vmem_limit),
    )(v_d, s_attn, wout_c)

    out = jnp.transpose(out_d, (0, 2, 1))          # (B, N, D): single XLA transpose
    orig_v = v_d.reshape(B, H, DH, N)              # free reshape 'b (h d) n' -> 'b h d n'
    return out, orig_v


def reference(x, gamma, wqkv, temperature, wout, *, heads, dim_head,
              attend_scale=8.0, matmul_dtype=jnp.float32):
    """Pure-JAX mirror of the PyTorch forward.  `matmul_dtype` controls the
    operand precision of the two projection matmuls (bf16 matches the kernel's
    MXU-native path; f32 is the exact module semantics)."""
    B, N, D = x.shape
    H, DH = heads, dim_head
    nrm = jnp.maximum(jnp.linalg.norm(x, axis=-1, keepdims=True), _EPS)
    xn = x / nrm * (float(D) ** 0.5) * gamma
    qkv = jnp.dot(xn.astype(matmul_dtype), wqkv.T.astype(matmul_dtype),
                  precision=_HIGHEST, preferred_element_type=jnp.float32)
    qkv = qkv.reshape(B, N, 3, H, DH).transpose(2, 0, 3, 4, 1)      # (3, B, H, DH, N)
    q, k, v = qkv[0], qkv[1], qkv[2]
    orig_v = v
    l2 = lambda t: t / jnp.maximum(
        jnp.linalg.norm(t, axis=-1, keepdims=True), _EPS)
    q, k = l2(q), l2(k)
    q = q * jnp.exp(temperature)[None]                              # (H,1,1) broadcast
    sim = jnp.einsum('bhin,bhjn->bhij', q, k, precision=_HIGHEST) * attend_scale
    attn = jax.nn.softmax(sim, axis=-1)
    out = jnp.einsum('bhij,bhjn->bhin', attn, v, precision=_HIGHEST)
    out = out.transpose(0, 3, 1, 2).reshape(B, N, H * DH)           # 'b h d n -> b n (h d)'
    out = jnp.dot(out.astype(matmul_dtype), wout.T.astype(matmul_dtype),
                  precision=_HIGHEST, preferred_element_type=jnp.float32)
    return out, orig_v


if __name__ == "__main__":
    B, N, D = 2, 256, 64
    H, DH = 4, 32                       # dim_inner = H*DH = 128

    key = jax.random.PRNGKey(0)
    k1, k2, k3, k4, k5 = jax.random.split(key, 5)
    x = jax.random.normal(k1, (B, N, D), jnp.float32)
    gamma = jnp.ones((D,), jnp.float32) + 0.1 * jax.random.normal(k2, (D,), jnp.float32)
    wqkv = jax.random.normal(k3, (3 * H * DH, D), jnp.float32) / (D ** 0.5)
    temperature = 0.1 * jax.random.normal(k4, (H, 1, 1), jnp.float32)
    wout = jax.random.normal(k5, (D, H * DH), jnp.float32) / ((H * DH) ** 0.5)

    out, orig_v = linear_attention(x, gamma, wqkv, temperature, wout,
                                   heads=H, dim_head=DH, block_n=128)
    jax.block_until_ready((out, orig_v))
    assert out.shape == (B, N, D) and orig_v.shape == (B, H, DH, N)

    # 1) precision-matched reference (bf16 projection operands, like the kernel's
    #    MXU-native path) -- tight agreement expected.
    ref_out_m, ref_v_m = reference(x, gamma, wqkv, temperature, wout,
                                   heads=H, dim_head=DH, matmul_dtype=jnp.bfloat16)
    assert np.allclose(np.asarray(orig_v), np.asarray(ref_v_m),
                       atol=1e-2, rtol=1e-2), "orig_v mismatch vs matched reference"
    assert np.allclose(np.asarray(out), np.asarray(ref_out_m),
                       atol=1e-2, rtol=1e-2), "output mismatch vs matched reference"

    # 2) exact f32 reference (true module semantics); remaining gap is the
    #    bf16 rounding of the MXU projection operands.
    ref_out_f, ref_v_f = reference(x, gamma, wqkv, temperature, wout,
                                   heads=H, dim_head=DH, matmul_dtype=jnp.float32)
    assert np.allclose(np.asarray(orig_v), np.asarray(ref_v_f),
                       atol=5e-2, rtol=5e-2), "orig_v mismatch vs f32 reference"
    assert np.allclose(np.asarray(out), np.asarray(ref_out_f),
                       atol=5e-2, rtol=5e-2), "output mismatch vs f32 reference"

    print("KERNEL_OK")
</pallas_src>

<mosaic_0001>
module attributes {stable_mosaic.version = 11 : i64} {
  func.func @_stats_kernel(%arg0: i32, %arg1: i32, %arg2: memref<1x128x64xf32, #tpu.memory_space<vmem>>, %arg3: memref<1x64xf32, #tpu.memory_space<vmem>>, %arg4: memref<384x64xbf16, #tpu.memory_space<vmem>>, %arg5: memref<128x1xf32, #tpu.memory_space<vmem>>, %arg6: memref<128x128xf32, #tpu.memory_space<vmem>>, %arg7: memref<1x128x128xf32, #tpu.memory_space<vmem>>, %arg8: memref<1x128x128xf32, #tpu.memory_space<vmem>>, %arg9: memref<128x128xf32, #tpu.memory_space<vmem>>, %arg10: memref<128x1xf32, #tpu.memory_space<vmem>>, %arg11: memref<128x1xf32, #tpu.memory_space<vmem>>) attributes {dimension_semantics = [#tpu.dimension_semantics<parallel>, #tpu.dimension_semantics<arbitrary>], iteration_bounds = array<i64: 2, 2>, scalar_prefetch = 0 : i64, scratch_operands = 3 : i64, tpu.core_type = #tpu.core_type<tc>, window_params = [{transform_indices = @transform_0, window_bounds = array<i64: 1, 128, 64>}, {pipeline_mode = #tpu.pipeline_mode<synchronous>, transform_indices = @transform_1, window_bounds = array<i64: 1, 64>}, {pipeline_mode = #tpu.pipeline_mode<synchronous>, transform_indices = @transform_2, window_bounds = array<i64: 384, 64>}, {pipeline_mode = #tpu.pipeline_mode<synchronous>, transform_indices = @transform_3, window_bounds = array<i64: 128, 1>}, {pipeline_mode = #tpu.pipeline_mode<synchronous>, transform_indices = @transform_4, window_bounds = array<i64: 128, 128>}, {transform_indices = @transform_5, window_bounds = array<i64: 1, 128, 128>}, {transform_indices = @transform_6, window_bounds = array<i64: 1, 128, 128>}]} {
    %c0_i32 = arith.constant 0 : i32
    %0 = arith.cmpi eq, %arg1, %c0_i32 : i32
    %1 = arith.extui %0 : i1 to i32
    %c0_i32_0 = arith.constant 0 : i32
    %2 = arith.cmpi ne, %1, %c0_i32_0 : i32
    scf.if %2 {
      %cst_28 = arith.constant 0.000000e+00 : f32
      %44 = vector.broadcast %cst_28 : f32 to vector<128x128xf32>
      %c0_29 = arith.constant 0 : index
      %c0_30 = arith.constant 0 : index
      %45 = vector.load %arg9[%c0_29, %c0_30] : memref<128x128xf32, #tpu.memory_space<vmem>>, vector<128x128xf32>
      tpu.vector_store %arg9[%c0_29, %c0_30], %44 {strides = array<i32>} : memref<128x128xf32, #tpu.memory_space<vmem>>, vector<128x128xf32>,
      %cst_31 = arith.constant 0.000000e+00 : f32
      %46 = vector.broadcast %cst_31 : f32 to vector<128x1xf32>
      %c0_32 = arith.constant 0 : index
      %c0_33 = arith.constant 0 : index
      %47 = vector.load %arg10[%c0_32, %c0_33] : memref<128x1xf32, #tpu.memory_space<vmem>>, vector<128x1xf32>
      tpu.vector_store %arg10[%c0_32, %c0_33], %46 {strides = array<i32>} : memref<128x1xf32, #tpu.memory_space<vmem>>, vector<128x1xf32>,
      %cst_34 = arith.constant 0.000000e+00 : f32
      %48 = vector.broadcast %cst_34 : f32 to vector<128x1xf32>
      %c0_35 = arith.constant 0 : index
      %c0_36 = arith.constant 0 : index
      %49 = vector.load %arg11[%c0_35, %c0_36] : memref<128x1xf32, #tpu.memory_space<vmem>>, vector<128x1xf32>
      tpu.vector_store %arg11[%c0_35, %c0_36], %48 {strides = array<i32>} : memref<128x1xf32, #tpu.memory_space<vmem>>, vector<128x1xf32>,
    } else {
    }
    %c0 = arith.constant 0 : index
    %c0_1 = arith.constant 0 : index
    %c0_2 = arith.constant 0 : index
    %3 = vector.load %arg2[%c0, %c0_1, %c0_2] : memref<1x128x64xf32, #tpu.memory_space<vmem>>, vector<1x128x64xf32>
    %4 = vector.shape_cast %3 : vector<1x128x64xf32> to vector<128x64xf32>
    %5 = arith.mulf %4, %4 : vector<128x64xf32>
    %cst = arith.constant dense<0.000000e+00> : vector<128xf32>
    %6 = vector.multi_reduction <add>, %5, %cst [1] : vector<128x64xf32> to vector<128xf32>
    %7 = vector.shape_cast %6 : vector<128xf32> to vector<128x1xf32>
    %8 = math.sqrt %7 : vector<128x1xf32>
    %cst_3 = arith.constant 9.99999996E-13 : f32
    %9 = vector.broadcast %cst_3 : f32 to vector<128x1xf32>
    %10 = arith.maximumf %8, %9 : vector<128x1xf32>
    %11 = vector.broadcast %10 : vector<128x1xf32> to vector<128x64xf32>
    %12 = arith.divf %4, %11 : vector<128x64xf32>
    %c0_4 = arith.constant 0 : index
    %c0_5 = arith.constant 0 : index
    %13 = vector.load %arg3[%c0_4, %c0_5] : memref<1x64xf32, #tpu.memory_space<vmem>>, vector<1x64xf32>
    %14 = vector.broadcast %13 : vector<1x64xf32> to vector<128x64xf32>
    %15 = arith.mulf %12, %14 : vector<128x64xf32>
    %c0_6 = arith.constant 0 : index
    %c0_7 = arith.constant 0 : index
    %16 = vector.load %arg4[%c0_6, %c0_7] : memref<384x64xbf16, #tpu.memory_space<vmem>>, vector<384x64xbf16>
    %17 = arith.truncf %15 : vector<128x64xf32> to vector<128x64xbf16>
    %cst_8 = arith.constant dense<0.000000e+00> : vector<384x128xf32>
    %18 = tpu.matmul %16, %17, %cst_8 {dimension_numbers = #tpu.dot_dimension_numbers<[1], [1], [0], [0], [0, 0, 1, 0], [], []>} : vector<384x64xbf16>, vector<128x64xbf16>, vector<384x128xf32> -> vector<384x128xf32>
    %19 = vector.extract_strided_slice %18 {offsets = [0, 0], sizes = [128, 128], strides = [1, 1]} : vector<384x128xf32> to vector<128x128xf32>
    %20 = vector.extract_strided_slice %18 {offsets = [128, 0], sizes = [128, 128], strides = [1, 1]} : vector<384x128xf32> to vector<128x128xf32>
    %21 = vector.extract_strided_slice %18 {offsets = [256, 0], sizes = [128, 128], strides = [1, 1]} : vector<384x128xf32> to vector<128x128xf32>
    %c0_9 = arith.constant 0 : index
    %c0_10 = arith.constant 0 : index
    %c0_11 = arith.constant 0 : index
    %22 = vector.load %arg7[%c0_9, %c0_10, %c0_11] : memref<1x128x128xf32, #tpu.memory_space<vmem>>, vector<1x128x128xf32>
    %23 = vector.shape_cast %22 : vector<1x128x128xf32> to vector<128x128xf32>
    %24 = vector.shape_cast %21 : vector<128x128xf32> to vector<1x128x128xf32>
    tpu.vector_store %arg7[%c0_9, %c0_10, %c0_11], %24 {strides = array<i32>} : memref<1x128x128xf32, #tpu.memory_space<vmem>>, vector<1x128x128xf32>,
    %c0_12 = arith.constant 0 : index
    %c0_13 = arith.constant 0 : index
    %25 = vector.load %arg10[%c0_12, %c0_13] : memref<128x1xf32, #tpu.memory_space<vmem>>, vector<128x1xf32>
    %26 = arith.mulf %19, %19 : vector<128x128xf32>
    %cst_14 = arith.constant dense<0.000000e+00> : vector<128xf32>
    %27 = vector.multi_reduction <add>, %26, %cst_14 [1] : vector<128x128xf32> to vector<128xf32>
    %28 = vector.shape_cast %27 : vector<128xf32> to vector<128x1xf32>
    %29 = arith.addf %25, %28 : vector<128x1xf32>
    %c0_15 = arith.constant 0 : index
    %c0_16 = arith.constant 0 : index
    %30 = vector.load %arg10[%c0_15, %c0_16] : memref<128x1xf32, #tpu.memory_space<vmem>>, vector<128x1xf32>
    tpu.vector_store %arg10[%c0_15, %c0_16], %29 {strides = array<i32>} : memref<128x1xf32, #tpu.memory_space<vmem>>, vector<128x1xf32>,
    %c0_17 = arith.constant 0 : index
    %c0_18 = arith.constant 0 : index
    %31 = vector.load %arg11[%c0_17, %c0_18] : memref<128x1xf32, #tpu.memory_space<vmem>>, vector<128x1xf32>
    %32 = arith.mulf %20, %20 : vector<128x128xf32>
    %cst_19 = arith.constant dense<0.000000e+00> : vector<128xf32>
    %33 = vector.multi_reduction <add>, %32, %cst_19 [1] : vector<128x128xf32> to vector<128xf32>
    %34 = vector.shape_cast %33 : vector<128xf32> to vector<128x1xf32>
    %35 = arith.addf %31, %34 : vector<128x1xf32>
    %c0_20 = arith.constant 0 : index
    %c0_21 = arith.constant 0 : index
    %36 = vector.load %arg11[%c0_20, %c0_21] : memref<128x1xf32, #tpu.memory_space<vmem>>, vector<128x1xf32>
    tpu.vector_store %arg11[%c0_20, %c0_21], %35 {strides = array<i32>} : memref<128x1xf32, #tpu.memory_space<vmem>>, vector<128x1xf32>,
    %c0_22 = arith.constant 0 : index
    %c0_23 = arith.constant 0 : index
    %37 = vector.load %arg9[%c0_22, %c0_23] : memref<128x128xf32, #tpu.memory_space<vmem>>, vector<128x128xf32>
    %cst_24 = arith.constant dense<0.000000e+00> : vector<128x128xf32>
    %38 = tpu.matmul %19, %20, %cst_24 {dimension_numbers = #tpu.dot_dimension_numbers<[1], [1], [0], [0], [0, 0, 1, 0], [], []>, precision = #tpu.contract_precision<fp32>} : vector<128x128xf32>, vector<128x128xf32>, vector<128x128xf32> -> vector<128x128xf32>
    %39 = arith.addf %37, %38 : vector<128x128xf32>
    %c0_25 = arith.constant 0 : index
    %c0_26 = arith.constant 0 : index
    %40 = vector.load %arg9[%c0_25, %c0_26] : memref<128x128xf32, #tpu.memory_space<vmem>>, vector<128x128xf32>
    tpu.vector_store %arg9[%c0_25, %c0_26], %39 {strides = array<i32>} : memref<128x128xf32, #tpu.memory_space<vmem>>, vector<128x128xf32>,
    %c1_i32 = arith.constant 1 : i32
    %41 = arith.cmpi eq, %arg1, %c1_i32 : i32
    %42 = arith.extui %41 : i1 to i32
    %c0_i32_27 = arith.constant 0 : i32
    %43 = arith.cmpi ne, %42, %c0_i32_27 : i32
    scf.if %43 {
      %c0_28 = arith.constant 0 : index
      %c0_29 = arith.constant 0 : index
      %44 = vector.load %arg10[%c0_28, %c0_29] : memref<128x1xf32, #tpu.memory_space<vmem>>, vector<128x1xf32>
      %45 = math.sqrt %44 : vector<128x1xf32>
      %cst_30 = arith.constant 9.99999996E-13 : f32
      %46 = vector.broadcast %cst_30 : f32 to vector<128x1xf32>
      %47 = arith.maximumf %45, %46 : vector<128x1xf32>
      %cst_31 = arith.constant 1.000000e+00 : f32
      %48 = vector.broadcast %cst_31 : f32 to vector<128x1xf32>
      %49 = arith.divf %48, %47 : vector<128x1xf32>
      %c0_32 = arith.constant 0 : index
      %c0_33 = arith.constant 0 : index
      %50 = vector.load %arg11[%c0_32, %c0_33] : memref<128x1xf32, #tpu.memory_space<vmem>>, vector<128x1xf32>
      %51 = math.sqrt %50 : vector<128x1xf32>
      %cst_34 = arith.constant 9.99999996E-13 : f32
      %52 = vector.broadcast %cst_34 : f32 to vector<128x1xf32>
      %53 = arith.maximumf %51, %52 : vector<128x1xf32>
      %cst_35 = arith.constant 1.000000e+00 : f32
      %54 = vector.broadcast %cst_35 : f32 to vector<128x1xf32>
      %55 = arith.divf %54, %53 : vector<128x1xf32>
      %c0_36 = arith.constant 0 : index
      %c0_37 = arith.constant 0 : index
      %56 = vector.load %arg5[%c0_36, %c0_37] : memref<128x1xf32, #tpu.memory_space<vmem>>, vector<128x1xf32>
      %cst_38 = arith.constant 8.000000e+00 : f32
      %57 = vector.broadcast %cst_38 : f32 to vector<128x1xf32>
      %58 = arith.mulf %57, %56 : vector<128x1xf32>
      %59 = arith.mulf %58, %49 : vector<128x1xf32>
      %c0_39 = arith.constant 0 : index
      %c0_40 = arith.constant 0 : index
      %60 = vector.load %arg9[%c0_39, %c0_40] : memref<128x128xf32, #tpu.memory_space<vmem>>, vector<128x128xf32>
      %61 = vector.broadcast %59 : vector<128x1xf32> to vector<128x128xf32>
      %62 = arith.mulf %60, %61 : vector<128x128xf32>
      %63 = tpu.transpose %55, [1, 0] : vector<128x1xf32> -> vector<1x128xf32>
      %64 = vector.broadcast %63 : vector<1x128xf32> to vector<128x128xf32>
      %65 = arith.mulf %62, %64 : vector<128x128xf32>
      %c0_41 = arith.constant 0 : index
      %c0_42 = arith.constant 0 : index
      %66 = vector.load %arg6[%c0_41, %c0_42] : memref<128x128xf32, #tpu.memory_space<vmem>>, vector<128x128xf32>
      %67 = arith.addf %65, %66 : vector<128x128xf32>
      %cst_43 = arith.constant dense<0xFF800000> : vector<128xf32>
      %68 = vector.multi_reduction <maximumf>, %67, %cst_43 [1] : vector<128x128xf32> to vector<128xf32>
      %69 = vector.shape_cast %68 : vector<128xf32> to vector<128x1xf32>
      %70 = vector.broadcast %69 : vector<128x1xf32> to vector<128x128xf32>
      %71 = arith.subf %67, %70 : vector<128x128xf32>
      %72 = math.exp %71 : vector<128x128xf32>
      %cst_44 = arith.constant dense<0.000000e+00> : vector<128xf32>
      %73 = vector.multi_reduction <add>, %72, %cst_44 [1] : vector<128x128xf32> to vector<128xf32>
      %74 = vector.shape_cast %73 : vector<128xf32> to vector<128x1xf32>
      %75 = tpu.reciprocal %74 {approx = true} : vector<128x1xf32> -> vector<128x1xf32>
      %76 = vector.broadcast %75 : vector<128x1xf32> to vector<128x128xf32>
      %77 = arith.mulf %72, %76 : vector<128x128xf32>
      %c0_45 = arith.constant 0 : index
      %c0_46 = arith.constant 0 : index
      %c0_47 = arith.constant 0 : index
      %78 = vector.load %arg8[%c0_45, %c0_46, %c0_47] : memref<1x128x128xf32, #tpu.memory_space<vmem>>, vector<1x128x128xf32>
      %79 = vector.shape_cast %78 : vector<1x128x128xf32> to vector<128x128xf32>
      %80 = vector.shape_cast %77 : vector<128x128xf32> to vector<1x128x128xf32>
      tpu.vector_store %arg8[%c0_45, %c0_46, %c0_47], %80 {strides = array<i32>} : memref<1x128x128xf32, #tpu.memory_space<vmem>>, vector<1x128x128xf32>,
    } else {
    }
    return
  }
  func.func @transform_0(%arg0: i32, %arg1: i32) -> (i32, i32, i32) {
    %c0_i32 = arith.constant 0 : i32
    %c0_i32_0 = arith.constant 0 : i32
    return %arg0, %arg1, %c0_i32 : i32, i32, i32
  }
  func.func @transform_1(%arg0: i32, %arg1: i32) -> (i32, i32) {
    %c0_i32 = arith.constant 0 : i32
    %c0_i32_0 = arith.constant 0 : i32
    %c0_i32_1 = arith.constant 0 : i32
    return %c0_i32, %c0_i32_0 : i32, i32
  }
  func.func @transform_2(%arg0: i32, %arg1: i32) -> (i32, i32) {
    %c0_i32 = arith.constant 0 : i32
    %c0_i32_0 = arith.constant 0 : i32
    %c0_i32_1 = arith.constant 0 : i32
    return %c0_i32, %c0_i32_0 : i32, i32
  }
  func.func @transform_3(%arg0: i32, %arg1: i32) -> (i32, i32) {
    %c0_i32 = arith.constant 0 : i32
    %c0_i32_0 = arith.constant 0 : i32
    %c0_i32_1 = arith.constant 0 : i32
    return %c0_i32, %c0_i32_0 : i32, i32
  }
  func.func @transform_4(%arg0: i32, %arg1: i32) -> (i32, i32) {
    %c0_i32 = arith.constant 0 : i32
    %c0_i32_0 = arith.constant 0 : i32
    %c0_i32_1 = arith.constant 0 : i32
    return %c0_i32, %c0_i32_0 : i32, i32
  }
  func.func @transform_5(%arg0: i32, %arg1: i32) -> (i32, i32, i32) {
    %c0_i32 = arith.constant 0 : i32
    %c0_i32_0 = arith.constant 0 : i32
    return %arg0, %c0_i32, %arg1 : i32, i32, i32
  }
  func.func @transform_6(%arg0: i32, %arg1: i32) -> (i32, i32, i32) {
    %c0_i32 = arith.constant 0 : i32
    %c0_i32_0 = arith.constant 0 : i32
    %c0_i32_1 = arith.constant 0 : i32
    return %arg0, %c0_i32, %c0_i32_0 : i32, i32, i32
  }
}

</mosaic_0001>

<llo_original>
// kernel: tpu_custom_call.1
$region0: #{tpu_custom_call.1}
  #allocation0 [shape = 'u32[]', space=smem, size = 0x4, offset = 0x4, fixed_abs, tag = 'smem constant byte address 0x4 - core index']
  #allocation1 [shape = 'u32[72,128]{1,0:T(1,128)}', space=vmem, size = 0x9000, scoped, tag = 'internal scratch']
  #allocation2 [shape = 'f32[128,128]{1,0:T(8,128)}', space=vmem, size = 0x10000, scoped, tag = 'scratch operand']
  #allocation3 [shape = 'f32[128,1]{1,0:T(8,128)}', space=vmem, size = 0x10000, scoped, tag = 'scratch operand']
  #allocation4 [shape = 'f32[128,1]{1,0:T(8,128)}', space=vmem, size = 0x10000, scoped, tag = 'scratch operand']
  %s0 = inlined_call_operand.vmem [shape: f32[2,256,64], index: 0, kind: input, shape index: {}]
  %s1 = inlined_call_operand.vmem [shape: f32[1,64], index: 1, kind: input, shape index: {}]
  %s2 = inlined_call_operand.vmem [shape: bf16[384,64], index: 2, kind: input, shape index: {}]
  %s3 = inlined_call_operand.vmem [shape: f32[128,1], index: 3, kind: input, shape index: {}]
  %s4 = inlined_call_operand.vmem [shape: f32[128,128], index: 4, kind: input, shape index: {}]
  %s5 = inlined_call_operand.hbm [shape: f32[2,128,256], index: 5, kind: output, shape index: {0}]
  %s6 = inlined_call_operand.hbm [shape: f32[2,128,128], index: 6, kind: output, shape index: {1}]
  %7 = xla_tuple %s5, %s6
  %s8 = sld [smem:[#allocation0]]
  $region69: #{tpu_custom_call.1} parent=0
    _
  %s10 = ssub.s32 1, %s8
  %s11 = scalar_select 0, %s10, %s8
  $region1: #{tpu_custom_call.1} parent=0
    #allocation5 [shape = 'u8[131072]{0}', space=vmem, size = 0x20000, scoped, tag = 'output window, operand 0']
    #allocation6 [shape = 's32[2]{0}', space=sflag, size = 0x8, scoped, tag = 'scoped memory for tpu_custom_call.1']
    #allocation7 [shape = 'u8[131072]{0}', space=vmem, size = 0x20000, scoped, tag = 'output window, operand 1']
    #allocation8 [shape = 's32[2]{0}', space=sflag, size = 0x8, scoped, tag = 'scoped memory for tpu_custom_call.1']
    %12 = vsyncpa [#allocation6], 0
    %s13 = scalar_lea.sflag [#allocation6], 1
    %14 = vsyncpa %s13, 0
    %15 = vsyncpa [#allocation8], 0
    %s16 = scalar_lea.sflag [#allocation8], 1
    %17 = vsyncpa %s16, 0
    loop: start=0, step=1, limit=6
    $region2: #{tpu_custom_call.1} parent=1 // loop_pre_header
      _
    $region3: #{tpu_custom_call.1} parent=1 // loop_header
      %s19 = sphi 0, %s23
      %p20 = scmp.ge.s32.totalorder %s19, 6
      %s26 = sphi 0, %s38
      %s27 = sphi 0, %s34
      %s28 = sphi 0, %s26
      %s29 = sphi 0, %s27
      %s30 = sphi 0, %s28
      %s31 = sphi 0, %s29
      %s43 = sphi 0, %s45
      %s46 = sphi 0, %s43
      %s47 = sphi 0, %s46
      %s63 = sphi 0, %s47
      %s67 = sphi 0, %s67
      %s69 = sphi 0, %s67
      %s70 = sphi 0, %s69
      %s84 = sphi 0, %s70
      %s88 = sphi 0, %s88
      %s90 = sphi 0, %s88
      %s91 = sphi 0, %s90
      %s105 = sphi 0, %s91
      %s109 = sphi 0, %s109
      %s111 = sphi 0, %s109
      %s112 = sphi 0, %s111
      %s126 = sphi 0, %s112
      %s130 = sphi 0, %s130
      %s132 = sphi 0, %s130
      %s133 = sphi 0, %s132
      %s147 = sphi 0, %s133
      %s155 = sphi 0, %s157
      %s158 = sphi 0, %s155
      %s159 = sphi 0, %s158
      %s175 = sphi 0, %s159
      %s181 = sphi 0, %s183
      %s184 = sphi 0, %s181
      %s185 = sphi 0, %s184
      %s201 = sphi 0, %s185
    $region4: #{tpu_custom_call.1} parent=1 // loop_header_branch
      %22 = sbr.rel (%p20) target = $region8
    $region5: #{tpu_custom_call.1} parent=1 // loop_body
      %s24 = ssub.s32 %s19, 1
      %s25 = ssub.s32 %s19, 2
      %s32 = sadd.s32 1, %s27
      %p33 = scmp.ge.s32.totalorder %s32, 2
      %s34 = scalar_select %p33, 0, %s32
      %s35 = sadd.s32 1, %s26
      %s36 = scalar_select %p33, %s35, %s26
      %p37 = scmp.ge.s32.totalorder %s36, 2
      %s38 = scalar_select %p37, 0, %s36
      %s39 = ssub.s32 %s26, %s38
      %s40 = ssub.s32 %s27, %s34
      %s41 = sor.u32 %s39, %s40
      %p42 = scmp.eq.s32.totalorder %s41, 0
      %s44 = sadd.s32 %s43, 1
      %s45 = scalar_select %p42, %s43, %s44
      %p48 = pneg %p42
      %p49 = scmp.eq.s32.totalorder %s19, 3
      %p50 = por %p48, %p49
      %p51 = scmp.ne.s32.totalorder %s43, %s46
      %p52 = scmp.eq.s32.totalorder %s19, 0
      %p53 = por %p51, %p52
      %p54 = scmp.ne.s32.totalorder %s43, %s46
      %p55 = scmp.eq.s32.totalorder %s24, 3
      %p56 = por %p54, %p55
      %p57 = scmp.ne.s32.totalorder %s46, %s47
      %p58 = scmp.eq.s32.totalorder %s24, 0
      %p59 = por %p57, %p58
      %p60 = scmp.ne.s32.totalorder %s46, %s47
      %p61 = scmp.eq.s32.totalorder %s25, 3
      %p62 = por %p60, %p61
      %p64 = scmp.ne.s32.totalorder %s47, %s63
      %p65 = scmp.eq.s32.totalorder %s25, 0
      %p66 = por %p64, %p65
      %s68 = sadd.s32 %s67, 1
      %p71 = scmp.eq.s32.totalorder %s19, 3
      %p72 = scmp.ne.s32.totalorder %s67, %s69
      %p73 = scmp.eq.s32.totalorder %s19, 0
      %p74 = por %p72, %p73
      %p75 = scmp.ne.s32.totalorder %s67, %s69
      %p76 = scmp.eq.s32.totalorder %s24, 3
      %p77 = por %p75, %p76
      %p78 = scmp.ne.s32.totalorder %s69, %s70
      %p79 = scmp.eq.s32.totalorder %s24, 0
      %p80 = por %p78, %p79
      %p81 = scmp.ne.s32.totalorder %s69, %s70
      %p82 = scmp.eq.s32.totalorder %s25, 3
      %p83 = por %p81, %p82
      %p85 = scmp.ne.s32.totalorder %s70, %s84
      %p86 = scmp.eq.s32.totalorder %s25, 0
      %p87 = por %p85, %p86
      %s89 = sadd.s32 %s88, 1
      %p92 = scmp.eq.s32.totalorder %s19, 3
      %p93 = scmp.ne.s32.totalorder %s88, %s90
      %p94 = scmp.eq.s32.totalorder %s19, 0
      %p95 = por %p93, %p94
      %p96 = scmp.ne.s32.totalorder %s88, %s90
      %p97 = scmp.eq.s32.totalorder %s24, 3
      %p98 = por %p96, %p97
      %p99 = scmp.ne.s32.totalorder %s90, %s91
      %p100 = scmp.eq.s32.totalorder %s24, 0
      %p101 = por %p99, %p100
      %p102 = scmp.ne.s32.totalorder %s90, %s91
      %p103 = scmp.eq.s32.totalorder %s25, 3
      %p104 = por %p102, %p103
      %p106 = scmp.ne.s32.totalorder %s91, %s105
      %p107 = scmp.eq.s32.totalorder %s25, 0
      %p108 = por %p106, %p107
      %s110 = sadd.s32 %s109, 1
      %p113 = scmp.eq.s32.totalorder %s19, 3
      %p114 = scmp.ne.s32.totalorder %s109, %s111
      %p115 = scmp.eq.s32.totalorder %s19, 0
      %p116 = por %p114, %p115
      %p117 = scmp.ne.s32.totalorder %s109, %s111
      %p118 = scmp.eq.s32.totalorder %s24, 3
      %p119 = por %p117, %p118
      %p120 = scmp.ne.s32.totalorder %s111, %s112
      %p121 = scmp.eq.s32.totalorder %s24, 0
      %p122 = por %p120, %p121
      %p123 = scmp.ne.s32.totalorder %s111, %s112
      %p124 = scmp.eq.s32.totalorder %s25, 3
      %p125 = por %p123, %p124
      %p127 = scmp.ne.s32.totalorder %s112, %s126
      %p128 = scmp.eq.s32.totalorder %s25, 0
      %p129 = por %p127, %p128
      %s131 = sadd.s32 %s130, 1
      %p134 = scmp.eq.s32.totalorder %s19, 3
      %p135 = scmp.ne.s32.totalorder %s130, %s132
      %p136 = scmp.eq.s32.totalorder %s19, 0
      %p137 = por %p135, %p136
      %p138 = scmp.ne.s32.totalorder %s130, %s132
      %p139 = scmp.eq.s32.totalorder %s24, 3
      %p140 = por %p138, %p139
      %p141 = scmp.ne.s32.totalorder %s132, %s133
      %p142 = scmp.eq.s32.totalorder %s24, 0
      %p143 = por %p141, %p142
      %p144 = scmp.ne.s32.totalorder %s132, %s133
      %p145 = scmp.eq.s32.totalorder %s25, 3
      %p146 = por %p144, %p145
      %p148 = scmp.ne.s32.totalorder %s133, %s147
      %p149 = scmp.eq.s32.totalorder %s25, 0
      %p150 = por %p148, %p149
      %s151 = ssub.s32 %s26, %s38
      %s152 = ssub.s32 %s27, %s34
      %s153 = sor.u32 %s151, %s152
      %p154 = scmp.eq.s32.totalorder %s153, 0
      %s156 = sadd.s32 %s155, 1
      %s157 = scalar_select %p154, %s155, %s156
      %p160 = pneg %p154
      %p161 = scmp.eq.s32.totalorder %s19, 3
      %p162 = por %p160, %p161
      %p163 = scmp.ne.s32.totalorder %s155, %s158
      %p164 = scmp.eq.s32.totalorder %s19, 0
      %p165 = por %p163, %p164
      %p166 = scmp.ne.s32.totalorder %s155, %s158
      %p167 = scmp.eq.s32.totalorder %s24, 3
      %p168 = por %p166, %p167
      %p169 = scmp.ne.s32.totalorder %s158, %s159
      %p170 = scmp.eq.s32.totalorder %s24, 0
      %p171 = por %p169, %p170
      %p172 = scmp.ne.s32.totalorder %s158, %s159
      %p173 = scmp.eq.s32.totalorder %s25, 3
      %p174 = por %p172, %p173
      %p176 = scmp.ne.s32.totalorder %s159, %s175
      %p177 = scmp.eq.s32.totalorder %s25, 0
      %p178 = por %p176, %p177
      %s179 = ssub.s32 %s26, %s38
      %p180 = scmp.eq.s32.totalorder %s179, 0
      %s182 = sadd.s32 %s181, 1
      %s183 = scalar_select %p180, %s181, %s182
      %p186 = pneg %p180
      %p187 = scmp.eq.s32.totalorder %s19, 3
      %p188 = por %p186, %p187
      %p189 = scmp.ne.s32.totalorder %s181, %s184
      %p190 = scmp.eq.s32.totalorder %s19, 0
      %p191 = por %p189, %p190
      %p192 = scmp.ne.s32.totalorder %s181, %s184
      %p193 = scmp.eq.s32.totalorder %s24, 3
      %p194 = por %p192, %p193
      %p195 = scmp.ne.s32.totalorder %s184, %s185
      %p196 = scmp.eq.s32.totalorder %s24, 0
      %p197 = por %p195, %p196
      %p198 = scmp.ne.s32.totalorder %s184, %s185
      %p199 = scmp.eq.s32.totalorder %s25, 3
      %p200 = por %p198, %p199
      %p202 = scmp.ne.s32.totalorder %s185, %s201
      %p203 = scmp.eq.s32.totalorder %s25, 0
      %p204 = por %p202, %p203
      %p205 = scmp.le.s32.totalorder 1, %s19
      %p206 = scmp.lt.s32.totalorder %s19, 5
      %p207 = pnand %p205, %p206
      %p208 = pneg %p207
      // Predicated region
      $region9: #{tpu_custom_call.1} parent=5 // pred_check
        _
      $region10: #{tpu_custom_call.1} parent=5 // pred_check_branch
        %210 = sbr.rel (%p207) target = $region12
      $region11: #{tpu_custom_call.1} parent=5 // pred_region
        %s211 = ssub.s32 %s19, 1
        // Predicated region
        $region13: #{tpu_custom_call.1} parent=11 // pred_check
          %p212 = pneg %p80
        $region14: #{tpu_custom_call.1} parent=11 // pred_check_branch
          %214 = sbr.rel (%p212) target = $region16
        $region15: #{tpu_custom_call.1} parent=11 // pred_region
          _
        $region16: #{tpu_custom_call.1} parent=11 // pred_fallthru
          _
        // Predicated region
        $region17: #{tpu_custom_call.1} parent=11 // pred_check
          %p215 = pneg %p101
        $region18: #{tpu_custom_call.1} parent=11 // pred_check_branch
          %217 = sbr.rel (%p215) target = $region20
        $region19: #{tpu_custom_call.1} parent=11 // pred_region
          _
        $region20: #{tpu_custom_call.1} parent=11 // pred_fallthru
          _
        // Predicated region
        $region21: #{tpu_custom_call.1} parent=11 // pred_check
          %p218 = pneg %p122
        $region22: #{tpu_custom_call.1} parent=11 // pred_check_branch
          %220 = sbr.rel (%p218) target = $region24
        $region23: #{tpu_custom_call.1} parent=11 // pred_region
          _
        $region24: #{tpu_custom_call.1} parent=11 // pred_fallthru
          _
        // Predicated region
        $region25: #{tpu_custom_call.1} parent=11 // pred_check
          %p221 = pneg %p143
        $region26: #{tpu_custom_call.1} parent=11 // pred_check_branch
          %223 = sbr.rel (%p221) target = $region28
        $region27: #{tpu_custom_call.1} parent=11 // pred_region
          _
        $region28: #{tpu_custom_call.1} parent=11 // pred_fallthru
          _
      $region12: #{tpu_custom_call.1} parent=5 // pred_fallthru
        _
      %p224 = scmp.lt.s32.totalorder %s19, 4
      // Predicated region
      $region29: #{tpu_custom_call.1} parent=5 // pred_check
        %p225 = pneg %p224
      $region30: #{tpu_custom_call.1} parent=5 // pred_check_branch
        %227 = sbr.rel (%p225) target = $region32
      $region31: #{tpu_custom_call.1} parent=5 // pred_region
        // Predicated region
        $region33: #{tpu_custom_call.1} parent=31 // pred_check
          %p228 = pneg %p53
        $region34: #{tpu_custom_call.1} parent=31 // pred_check_branch
          %230 = sbr.rel (%p228) target = $region36
        $region35: #{tpu_custom_call.1} parent=31 // pred_region
          %s231 = smul.u32 16, %s27
          %p232 = scmp.lt.s32.totalorder %s26, 1
          %s233 = scalar_select %p232, %s26, 1
          %p234 = scmp.lt.s32.totalorder %s231, 31
          %s235 = scalar_select %p234, %s231, 31
          %s236 = smul.addr %s233, 32
          %s237 = sadd.s32 %s235, %s236
          %s238 = smul.addr %s237, 8
          %s239 = scalar_lea.vmem %s0, %s238
          %s240 = smul.u32 16, %s27
        $region36: #{tpu_custom_call.1} parent=31 // pred_fallthru
          _
      $region32: #{tpu_custom_call.1} parent=5 // pred_fallthru
        _
      %p241 = scmp.le.s32.totalorder 1, %s19
      %p242 = scmp.lt.s32.totalorder %s19, 5
      %p243 = pnand %p241, %p242
      %p244 = pneg %p243
      // Predicated region
      $region37: #{tpu_custom_call.1} parent=5 // pred_check
        _
      $region38: #{tpu_custom_call.1} parent=5 // pred_check_branch
        %246 = sbr.rel (%p243) target = $region40
      $region39: #{tpu_custom_call.1} parent=5 // pred_region
        %s247 = ssub.s32 %s19, 1
        %s248 = smul.u32 16, %s29
        %p249 = scmp.lt.s32.totalorder %s28, 1
        %s250 = scalar_select %p249, %s28, 1
        %p251 = scmp.lt.s32.totalorder %s248, 31
        %s252 = scalar_select %p251, %s248, 31
        %s253 = smul.addr %s250, 32
        %s254 = sadd.s32 %s252, %s253
        %s255 = smul.addr %s254, 8
        %s256 = scalar_lea.vmem %s0, %s255
        %p257 = pneg %p59
        %p258 = pneg %p56
        %p259 = pneg %p80
        %p260 = pneg %p77
        %p261 = pneg %p101
        %p262 = pneg %p98
        %p263 = pneg %p122
        %p264 = pneg %p119
        %p265 = pneg %p143
        %p266 = pneg %p140
        %p267 = pneg %p171
        %p268 = pneg %p168
        %s269 = sand.u32 %s158, 1
        %s270 = scalar_lea.sflag [#allocation6], %s269
        %s271 = sand.u32 %s158, 1
        %s272 = smul.addr %s271, 128
        %s273 = scalar_lea.vmem [#allocation5], %s272
        %p274 = pneg %p197
        %p275 = pneg %p194
        %s276 = sand.u32 %s184, 1
        %s277 = scalar_lea.sflag [#allocation8], %s276
        %s278 = sand.u32 %s184, 1
        %s279 = smul.addr %s278, 128
        %s280 = scalar_lea.vmem [#allocation7], %s279
        %s281 = smul.u32 16, %s29
        %p282 = scmp.lt.s32.totalorder %s28, 1
        %s283 = scalar_select %p282, %s28, 1
        %p284 = scmp.lt.s32.totalorder %s281, 31
        %s285 = scalar_select %p284, %s281, 31
        %s286 = smul.addr %s283, 32
        %s287 = sadd.s32 %s285, %s286
        %s288 = smul.addr %s287, 8
        %s289 = scalar_lea.vmem %s0, %s288
        %s290 = smul.u32 16, %s29
        %p291 = scmp.eq.s32.totalorder %s29, 0
        // Predicated region
        $region41: #{tpu_custom_call.1} parent=39 // pred_check
          %p292 = pneg %p291
        $region42: #{tpu_custom_call.1} parent=39 // pred_check_branch
          %294 = sbr.rel (%p292) target = $region44
        $region43: #{tpu_custom_call.1} parent=39 // pred_region
          %295 = vst [vmem:[#allocation2] sm:$0xff] 0.0
          %296 = vst [vmem:[#allocation2 + $0x8] sm:$0xff] 0.0
          %297 = vst [vmem:[#allocation2 + $0x10] sm:$0xff] 0.0
          %298 = vst [vmem:[#allocation2 + $0x18] sm:$0xff] 0.0
          %299 = vst [vmem:[#allocation2 + $0x20] sm:$0xff] 0.0
          %300 = vst [vmem:[#allocation2 + $0x28] sm:$0xff] 0.0
          %301 = vst [vmem:[#allocation2 + $0x30] sm:$0xff] 0.0
          %302 = vst [vmem:[#allocation2 + $0x38] sm:$0xff] 0.0
          %303 = vst [vmem:[#allocation2 + $0x40] sm:$0xff] 0.0
          %304 = vst [vmem:[#allocation2 + $0x48] sm:$0xff] 0.0
          %305 = vst [vmem:[#allocation2 + $0x50] sm:$0xff] 0.0
          %306 = vst [vmem:[#allocation2 + $0x58] sm:$0xff] 0.0
          %307 = vst [vmem:[#allocation2 + $0x60] sm:$0xff] 0.0
          %308 = vst [vmem:[#allocation2 + $0x68] sm:$0xff] 0.0
          %309 = vst [vmem:[#allocation2 + $0x70] sm:$0xff] 0.0
          %310 = vst [vmem:[#allocation2 + $0x78] sm:$0xff] 0.0
          %vm311 = vcmask 7168
          %312 = vst.msk [vmem:[#allocation3] sm:$0xff] %vm311, 0.0
          %313 = vst.msk [vmem:[#allocation3 + $0x8] sm:$0xff] %vm311, 0.0
          %314 = vst.msk [vmem:[#allocation3 + $0x10] sm:$0xff] %vm311, 0.0
          %315 = vst.msk [vmem:[#allocation3 + $0x18] sm:$0xff] %vm311, 0.0
          %316 = vst.msk [vmem:[#allocation3 + $0x20] sm:$0xff] %vm311, 0.0
          %317 = vst.msk [vmem:[#allocation3 + $0x28] sm:$0xff] %vm311, 0.0
          %318 = vst.msk [vmem:[#allocation3 + $0x30] sm:$0xff] %vm311, 0.0
          %319 = vst.msk [vmem:[#allocation3 + $0x38] sm:$0xff] %vm311, 0.0
          %320 = vst.msk [vmem:[#allocation3 + $0x40] sm:$0xff] %vm311, 0.0
          %321 = vst.msk [vmem:[#allocation3 + $0x48] sm:$0xff] %vm311, 0.0
          %322 = vst.msk [vmem:[#allocation3 + $0x50] sm:$0xff] %vm311, 0.0
          %323 = vst.msk [vmem:[#allocation3 + $0x58] sm:$0xff] %vm311, 0.0
          %324 = vst.msk [vmem:[#allocation3 + $0x60] sm:$0xff] %vm311, 0.0
          %325 = vst.msk [vmem:[#allocation3 + $0x68] sm:$0xff] %vm311, 0.0
          %326 = vst.msk [vmem:[#allocation3 + $0x70] sm:$0xff] %vm311, 0.0
          %327 = vst.msk [vmem:[#allocation3 + $0x78] sm:$0xff] %vm311, 0.0
          %328 = vst.msk [vmem:[#allocation4] sm:$0xff] %vm311, 0.0
          %329 = vst.msk [vmem:[#allocation4 + $0x8] sm:$0xff] %vm311, 0.0
          %330 = vst.msk [vmem:[#allocation4 + $0x10] sm:$0xff] %vm311, 0.0
          %331 = vst.msk [vmem:[#allocation4 + $0x18] sm:$0xff] %vm311, 0.0
          %332 = vst.msk [vmem:[#allocation4 + $0x20] sm:$0xff] %vm311, 0.0
          %333 = vst.msk [vmem:[#allocation4 + $0x28] sm:$0xff] %vm311, 0.0
          %334 = vst.msk [vmem:[#allocation4 + $0x30] sm:$0xff] %vm311, 0.0
          %335 = vst.msk [vmem:[#allocation4 + $0x38] sm:$0xff] %vm311, 0.0
          %336 = vst.msk [vmem:[#allocation4 + $0x40] sm:$0xff] %vm311, 0.0
          %337 = vst.msk [vmem:[#allocation4 + $0x48] sm:$0xff] %vm311, 0.0
          %338 = vst.msk [vmem:[#allocation4 + $0x50] sm:$0xff] %vm311, 0.0
          %339 = vst.msk [vmem:[#allocation4 + $0x58] sm:$0xff] %vm311, 0.0
          %340 = vst.msk [vmem:[#allocation4 + $0x60] sm:$0xff] %vm311, 0.0
          %341 = vst.msk [vmem:[#allocation4 + $0x68] sm:$0xff] %vm311, 0.0
          %342 = vst.msk [vmem:[#allocation4 + $0x70] sm:$0xff] %vm311, 0.0
          %343 = vst.msk [vmem:[#allocation4 + $0x78] sm:$0xff] %vm311, 0.0
        $region44: #{tpu_custom_call.1} parent=39 // pred_fallthru
          _
        %v344 = vld [vmem:[%s289] sm:$0xff]
        %v345 = vld [vmem:[%s289 + $0x8] sm:$0xff]
        %v346 = vld [vmem:[%s289 + $0x10] sm:$0xff]
        %v347 = vld [vmem:[%s289 + $0x18] sm:$0xff]
        %v348 = vld [vmem:[%s289 + $0x20] sm:$0xff]
        %v349 = vld [vmem:[%s289 + $0x28] sm:$0xff]
        %v350 = vld [vmem:[%s289 + $0x30] sm:$0xff]
        %v351 = vld [vmem:[%s289 + $0x38] sm:$0xff]
        %v352 = vld [vmem:[%s289 + $0x40] sm:$0xff]
        %v353 = vld [vmem:[%s289 + $0x48] sm:$0xff]
        %v354 = vld [vmem:[%s289 + $0x50] sm:$0xff]
        %v355 = vld [vmem:[%s289 + $0x58] sm:$0xff]
        %v356 = vld [vmem:[%s289 + $0x60] sm:$0xff]
        %v357 = vld [vmem:[%s289 + $0x68] sm:$0xff]
        %v358 = vld [vmem:[%s289 + $0x70] sm:$0xff]
        %v359 = vld [vmem:[%s289 + $0x78] sm:$0xff]
        %v360 = vmul.f32 %v344, %v344
        %v361 = vmul.f32 %v345, %v345
        %v362 = vmul.f32 %v346, %v346
        %v363 = vmul.f32 %v347, %v347
        %v364 = vmul.f32 %v348, %v348
        %v365 = vmul.f32 %v349, %v349
        %v366 = vmul.f32 %v350, %v350
        %v367 = vmul.f32 %v351, %v351
        %v368 = vmul.f32 %v352, %v352
        %v369 = vmul.f32 %v353, %v353
        %v370 = vmul.f32 %v354, %v354
        %v371 = vmul.f32 %v355, %v355
        %v372 = vmul.f32 %v356, %v356
        %v373 = vmul.f32 %v357, %v357
        %v374 = vmul.f32 %v358, %v358
        %v375 = vmul.f32 %v359, %v359
        %vm376 = vcmask 523264
        %v377 = vsel %vm376, %v360, 0.0
        %378 = vadd.xlane.f32.xlu0 %v377
        %v379 = vpop.xlane.xlu0 %378
        %v380 = vsel %vm376, %v361, 0.0
        %381 = vadd.xlane.f32.xlu0 %v380
        %v382 = vpop.xlane.xlu0 %381
        %v383 = vsel %vm376, %v362, 0.0
        %384 = vadd.xlane.f32.xlu0 %v383
        %v385 = vpop.xlane.xlu0 %384
        %v386 = vsel %vm376, %v363, 0.0
        %387 = vadd.xlane.f32.xlu0 %v386
        %v388 = vpop.xlane.xlu0 %387
        %v389 = vsel %vm376, %v364, 0.0
        %390 = vadd.xlane.f32.xlu0 %v389
        %v391 = vpop.xlane.xlu0 %390
        %v392 = vsel %vm376, %v365, 0.0
        %393 = vadd.xlane.f32.xlu0 %v392
        %v394 = vpop.xlane.xlu0 %393
        %v395 = vsel %vm376, %v366, 0.0
        %396 = vadd.xlane.f32.xlu0 %v395
        %v397 = vpop.xlane.xlu0 %396
        %v398 = vsel %vm376, %v367, 0.0
        %399 = vadd.xlane.f32.xlu0 %v398
        %v400 = vpop.xlane.xlu0 %399
        %v401 = vsel %vm376, %v368, 0.0
        %402 = vadd.xlane.f32.xlu0 %v401
        %v403 = vpop.xlane.xlu0 %402
        %v404 = vsel %vm376, %v369, 0.0
        %405 = vadd.xlane.f32.xlu0 %v404
        %v406 = vpop.xlane.xlu0 %405
        %v407 = vsel %vm376, %v370, 0.0
        %408 = vadd.xlane.f32.xlu0 %v407
        %v409 = vpop.xlane.xlu0 %408
        %v410 = vsel %vm376, %v371, 0.0
        %411 = vadd.xlane.f32.xlu0 %v410
        %v412 = vpop.xlane.xlu0 %411
        %v413 = vsel %vm376, %v372, 0.0
        %414 = vadd.xlane.f32.xlu0 %v413
        %v415 = vpop.xlane.xlu0 %414
        %v416 = vsel %vm376, %v373, 0.0
        %417 = vadd.xlane.f32.xlu0 %v416
        %v418 = vpop.xlane.xlu0 %417
        %v419 = vsel %vm376, %v374, 0.0
        %420 = vadd.xlane.f32.xlu0 %v419
        %v421 = vpop.xlane.xlu0 %420
        %v422 = vsel %vm376, %v375, 0.0
        %423 = vadd.xlane.f32.xlu0 %v422
        %v424 = vpop.xlane.xlu0 %423
        %v425 = vrsqrt.pop %v379
        %v426 = vmul.f32 %v425, %v379
        %v427 = vmul.f32 %v426, %v425
        %v428 = vmul.f32 0.5, %v427
        %v429 = vsub.f32 1.5, %v428
        %v430 = vmul.f32 %v425, %v429
        %v431 = vmul.f32 %v379, %v430
        %vm432 = vcmp.eq.f32.partialorder %v379, inf
        %v433 = vsel %vm432, %v379, %v431
        %vm434 = vcmp.eq.f32.partialorder %v379, 0.0
        %v435 = vand.u32 %v379, 2147483648
        %v436 = vsel %vm434, %v435, %v433
        %v437 = vrsqrt.pop %v382
        %v438 = vmul.f32 %v437, %v382
        %v439 = vmul.f32 %v438, %v437
        %v440 = vmul.f32 0.5, %v439
        %v441 = vsub.f32 1.5, %v440
        %v442 = vmul.f32 %v437, %v441
        %v443 = vmul.f32 %v382, %v442
        %vm444 = vcmp.eq.f32.partialorder %v382, inf
        %v445 = vsel %vm444, %v382, %v443
        %vm446 = vcmp.eq.f32.partialorder %v382, 0.0
        %v447 = vand.u32 %v382, 2147483648
        %v448 = vsel %vm446, %v447, %v445
        %v449 = vrsqrt.pop %v385
        %v450 = vmul.f32 %v449, %v385
        %v451 = vmul.f32 %v450, %v449
        %v452 = vmul.f32 0.5, %v451
        %v453 = vsub.f32 1.5, %v452
        %v454 = vmul.f32 %v449, %v453
        %v455 = vmul.f32 %v385, %v454
        %vm456 = vcmp.eq.f32.partialorder %v385, inf
        %v457 = vsel %vm456, %v385, %v455
        %vm458 = vcmp.eq.f32.partialorder %v385, 0.0
        %v459 = vand.u32 %v385, 2147483648
        %v460 = vsel %vm458, %v459, %v457
        %v461 = vrsqrt.pop %v388
        %v462 = vmul.f32 %v461, %v388
        %v463 = vmul.f32 %v462, %v461
        %v464 = vmul.f32 0.5, %v463
        %v465 = vsub.f32 1.5, %v464
        %v466 = vmul.f32 %v461, %v465
        %v467 = vmul.f32 %v388, %v466
        %vm468 = vcmp.eq.f32.partialorder %v388, inf
        %v469 = vsel %vm468, %v388, %v467
        %vm470 = vcmp.eq.f32.partialorder %v388, 0.0
        %v471 = vand.u32 %v388, 2147483648
        %v472 = vsel %vm470, %v471, %v469
        %v473 = vrsqrt.pop %v391
        %v474 = vmul.f32 %v473, %v391
        %v475 = vmul.f32 %v474, %v473
        %v476 = vmul.f32 0.5, %v475
        %v477 = vsub.f32 1.5, %v476
        %v478 = vmul.f32 %v473, %v477
        %v479 = vmul.f32 %v391, %v478
        %vm480 = vcmp.eq.f32.partialorder %v391, inf
        %v481 = vsel %vm480, %v391, %v479
        %vm482 = vcmp.eq.f32.partialorder %v391, 0.0
        %v483 = vand.u32 %v391, 2147483648
        %v484 = vsel %vm482, %v483, %v481
        %v485 = vrsqrt.pop %v394
        %v486 = vmul.f32 %v485, %v394
        %v487 = vmul.f32 %v486, %v485
        %v488 = vmul.f32 0.5, %v487
        %v489 = vsub.f32 1.5, %v488
        %v490 = vmul.f32 %v485, %v489
        %v491 = vmul.f32 %v394, %v490
        %vm492 = vcmp.eq.f32.partialorder %v394, inf
        %v493 = vsel %vm492, %v394, %v491
        %vm494 = vcmp.eq.f32.partialorder %v394, 0.0
        %v495 = vand.u32 %v394, 2147483648
        %v496 = vsel %vm494, %v495, %v493
        %v497 = vrsqrt.pop %v397
        %v498 = vmul.f32 %v497, %v397
        %v499 = vmul.f32 %v498, %v497
        %v500 = vmul.f32 0.5, %v499
        %v501 = vsub.f32 1.5, %v500
        %v502 = vmul.f32 %v497, %v501
        %v503 = vmul.f32 %v397, %v502
        %vm504 = vcmp.eq.f32.partialorder %v397, inf
        %v505 = vsel %vm504, %v397, %v503
        %vm506 = vcmp.eq.f32.partialorder %v397, 0.0
        %v507 = vand.u32 %v397, 2147483648
        %v508 = vsel %vm506, %v507, %v505
        %v509 = vrsqrt.pop %v400
        %v510 = vmul.f32 %v509, %v400
        %v511 = vmul.f32 %v510, %v509
        %v512 = vmul.f32 0.5, %v511
        %v513 = vsub.f32 1.5, %v512
        %v514 = vmul.f32 %v509, %v513
        %v515 = vmul.f32 %v400, %v514
        %vm516 = vcmp.eq.f32.partialorder %v400, inf
        %v517 = vsel %vm516, %v400, %v515
        %vm518 = vcmp.eq.f32.partialorder %v400, 0.0
        %v519 = vand.u32 %v400, 2147483648
        %v520 = vsel %vm518, %v519, %v517
        %v521 = vrsqrt.pop %v403
        %v522 = vmul.f32 %v521, %v403
        %v523 = vmul.f32 %v522, %v521
        %v524 = vmul.f32 0.5, %v523
        %v525 = vsub.f32 1.5, %v524
        %v526 = vmul.f32 %v521, %v525
        %v527 = vmul.f32 %v403, %v526
        %vm528 = vcmp.eq.f32.partialorder %v403, inf
        %v529 = vsel %vm528, %v403, %v527
        %vm530 = vcmp.eq.f32.partialorder %v403, 0.0
        %v531 = vand.u32 %v403, 2147483648
        %v532 = vsel %vm530, %v531, %v529
        %v533 = vrsqrt.pop %v406
        %v534 = vmul.f32 %v533, %v406
        %v535 = vmul.f32 %v534, %v533
        %v536 = vmul.f32 0.5, %v535
        %v537 = vsub.f32 1.5, %v536
        %v538 = vmul.f32 %v533, %v537
        %v539 = vmul.f32 %v406, %v538
        %vm540 = vcmp.eq.f32.partialorder %v406, inf
        %v541 = vsel %vm540, %v406, %v539
        %vm542 = vcmp.eq.f32.partialorder %v406, 0.0
        %v543 = vand.u32 %v406, 2147483648
        %v544 = vsel %vm542, %v543, %v541
        %v545 = vrsqrt.pop %v409
        %v546 = vmul.f32 %v545, %v409
        %v547 = vmul.f32 %v546, %v545
        %v548 = vmul.f32 0.5, %v547
        %v549 = vsub.f32 1.5, %v548
        %v550 = vmul.f32 %v545, %v549
        %v551 = vmul.f32 %v409, %v550
        %vm552 = vcmp.eq.f32.partialorder %v409, inf
        %v553 = vsel %vm552, %v409, %v551
        %vm554 = vcmp.eq.f32.partialorder %v409, 0.0
        %v555 = vand.u32 %v409, 2147483648
        %v556 = vsel %vm554, %v555, %v553
        %v557 = vrsqrt.pop %v412
        %v558 = vmul.f32 %v557, %v412
        %v559 = vmul.f32 %v558, %v557
        %v560 = vmul.f32 0.5, %v559
        %v561 = vsub.f32 1.5, %v560
        %v562 = vmul.f32 %v557, %v561
        %v563 = vmul.f32 %v412, %v562
        %vm564 = vcmp.eq.f32.partialorder %v412, inf
        %v565 = vsel %vm564, %v412, %v563
        %vm566 = vcmp.eq.f32.partialorder %v412, 0.0
        %v567 = vand.u32 %v412, 2147483648
        %v568 = vsel %vm566, %v567, %v565
        %v569 = vrsqrt.pop %v415
        %v570 = vmul.f32 %v569, %v415
        %v571 = vmul.f32 %v570, %v569
        %v572 = vmul.f32 0.5, %v571
        %v573 = vsub.f32 1.5, %v572
        %v574 = vmul.f32 %v569, %v573
        %v575 = vmul.f32 %v415, %v574
        %vm576 = vcmp.eq.f32.partialorder %v415, inf
        %v577 = vsel %vm576, %v415, %v575
        %vm578 = vcmp.eq.f32.partialorder %v415, 0.0
        %v579 = vand.u32 %v415, 2147483648
        %v580 = vsel %vm578, %v579, %v577
        %v581 = vrsqrt.pop %v418
        %v582 = vmul.f32 %v581, %v418
        %v583 = vmul.f32 %v582, %v581
        %v584 = vmul.f32 0.5, %v583
        %v585 = vsub.f32 1.5, %v584
        %v586 = vmul.f32 %v581, %v585
        %v587 = vmul.f32 %v418, %v586
        %vm588 = vcmp.eq.f32.partialorder %v418, inf
        %v589 = vsel %vm588, %v418, %v587
        %vm590 = vcmp.eq.f32.partialorder %v418, 0.0
        %v591 = vand.u32 %v418, 2147483648
        %v592 = vsel %vm590, %v591, %v589
        %v593 = vrsqrt.pop %v421
        %v594 = vmul.f32 %v593, %v421
        %v595 = vmul.f32 %v594, %v593
        %v596 = vmul.f32 0.5, %v595
        %v597 = vsub.f32 1.5, %v596
        %v598 = vmul.f32 %v593, %v597
        %v599 = vmul.f32 %v421, %v598
        %vm600 = vcmp.eq.f32.partialorder %v421, inf
        %v601 = vsel %vm600, %v421, %v599
        %vm602 = vcmp.eq.f32.partialorder %v421, 0.0
        %v603 = vand.u32 %v421, 2147483648
        %v604 = vsel %vm602, %v603, %v601
        %v605 = vrsqrt.pop %v424
        %v606 = vmul.f32 %v605, %v424
        %v607 = vmul.f32 %v606, %v605
        %v608 = vmul.f32 0.5, %v607
        %v609 = vsub.f32 1.5, %v608
        %v610 = vmul.f32 %v605, %v609
        %v611 = vmul.f32 %v424, %v610
        %vm612 = vcmp.eq.f32.partialorder %v424, inf
        %v613 = vsel %vm612, %v424, %v611
        %vm614 = vcmp.eq.f32.partialorder %v424, 0.0
        %v615 = vand.u32 %v424, 2147483648
        %v616 = vsel %vm614, %v615, %v613
        %v617 = vmax.f32 %v436, 1e-12
        %v618 = vmax.f32 %v448, 1e-12
        %v619 = vmax.f32 %v460, 1e-12
        %v620 = vmax.f32 %v472, 1e-12
        %v621 = vmax.f32 %v484, 1e-12
        %v622 = vmax.f32 %v496, 1e-12
        %v623 = vmax.f32 %v508, 1e-12
        %v624 = vmax.f32 %v520, 1e-12
        %v625 = vmax.f32 %v532, 1e-12
        %v626 = vmax.f32 %v544, 1e-12
        %v627 = vmax.f32 %v556, 1e-12
        %v628 = vmax.f32 %v568, 1e-12
        %v629 = vmax.f32 %v580, 1e-12
        %v630 = vmax.f32 %v592, 1e-12
        %v631 = vmax.f32 %v604, 1e-12
        %v632 = vmax.f32 %v616, 1e-12
        %v633 = vrcp.pop %v617
        %v634 = vmul.f32 %v617, %v633
        %v635 = vsub.f32 1.0, %v634
        %v636 = vmul.f32 %v633, %v635
        %v637 = vadd.f32 %v633, %v636
        %vm638 = vweird.f32 %v617
        %vm639 = vweird.f32 %v633
        %vm640 = vmor %vm638, %vm639
        %v641 = vsel %vm640, %v633, %v637
        %v642 = vand.u32 2147483647, %v617
        %vm643 = vcmp.eq.f32.partialorder %v642, 8.507059e+37
        %v644 = vand.u32 %v617, 2147483648
        %v645 = vor.u32 1.1754944e-38, %v644
        %v646 = vsel %vm643, %v645, %v641
        %v647 = vmul.f32 %v344, %v646
        %v648 = vrcp.pop %v618
        %v649 = vmul.f32 %v618, %v648
        %v650 = vsub.f32 1.0, %v649
        %v651 = vmul.f32 %v648, %v650
        %v652 = vadd.f32 %v648, %v651
        %vm653 = vweird.f32 %v618
        %vm654 = vweird.f32 %v648
        %vm655 = vmor %vm653, %vm654
        %v656 = vsel %vm655, %v648, %v652
        %v657 = vand.u32 2147483647, %v618
        %vm658 = vcmp.eq.f32.partialorder %v657, 8.507059e+37
        %v659 = vand.u32 %v618, 2147483648
        %v660 = vor.u32 1.1754944e-38, %v659
        %v661 = vsel %vm658, %v660, %v656
        %v662 = vmul.f32 %v345, %v661
        %v663 = vrcp.pop %v619
        %v664 = vmul.f32 %v619, %v663
        %v665 = vsub.f32 1.0, %v664
        %v666 = vmul.f32 %v663, %v665
        %v667 = vadd.f32 %v663, %v666
        %vm668 = vweird.f32 %v619
        %vm669 = vweird.f32 %v663
        %vm670 = vmor %vm668, %vm669
        %v671 = vsel %vm670, %v663, %v667
        %v672 = vand.u32 2147483647, %v619
        %vm673 = vcmp.eq.f32.partialorder %v672, 8.507059e+37
        %v674 = vand.u32 %v619, 2147483648
        %v675 = vor.u32 1.1754944e-38, %v674
        %v676 = vsel %vm673, %v675, %v671
        %v677 = vmul.f32 %v346, %v676
        %v678 = vrcp.pop %v620
        %v679 = vmul.f32 %v620, %v678
        %v680 = vsub.f32 1.0, %v679
        %v681 = vmul.f32 %v678, %v680
        %v682 = vadd.f32 %v678, %v681
        %vm683 = vweird.f32 %v620
        %vm684 = vweird.f32 %v678
        %vm685 = vmor %vm683, %vm684
        %v686 = vsel %vm685, %v678, %v682
        %v687 = vand.u32 2147483647, %v620
        %vm688 = vcmp.eq.f32.partialorder %v687, 8.507059e+37
        %v689 = vand.u32 %v620, 2147483648
        %v690 = vor.u32 1.1754944e-38, %v689
        %v691 = vsel %vm688, %v690, %v686
        %v692 = vmul.f32 %v347, %v691
        %v693 = vrcp.pop %v621
        %v694 = vmul.f32 %v621, %v693
        %v695 = vsub.f32 1.0, %v694
        %v696 = vmul.f32 %v693, %v695
        %v697 = vadd.f32 %v693, %v696
        %vm698 = vweird.f32 %v621
        %vm699 = vweird.f32 %v693
        %vm700 = vmor %vm698, %vm699
        %v701 = vsel %vm700, %v693, %v697
        %v702 = vand.u32 2147483647, %v621
        %vm703 = vcmp.eq.f32.partialorder %v702, 8.507059e+37
        %v704 = vand.u32 %v621, 2147483648
        %v705 = vor.u32 1.1754944e-38, %v704
        %v706 = vsel %vm703, %v705, %v701
        %v707 = vmul.f32 %v348, %v706
        %v708 = vrcp.pop %v622
        %v709 = vmul.f32 %v622, %v708
        %v710 = vsub.f32 1.0, %v709
        %v711 = vmul.f32 %v708, %v710
        %v712 = vadd.f32 %v708, %v711
        %vm713 = vweird.f32 %v622
        %vm714 = vweird.f32 %v708
        %vm715 = vmor %vm713, %vm714
        %v716 = vsel %vm715, %v708, %v712
        %v717 = vand.u32 2147483647, %v622
        %vm718 = vcmp.eq.f32.partialorder %v717, 8.507059e+37
        %v719 = vand.u32 %v622, 2147483648
        %v720 = vor.u32 1.1754944e-38, %v719
        %v721 = vsel %vm718, %v720, %v716
        %v722 = vmul.f32 %v349, %v721
        %v723 = vrcp.pop %v623
        %v724 = vmul.f32 %v623, %v723
        %v725 = vsub.f32 1.0, %v724
        %v726 = vmul.f32 %v723, %v725
        %v727 = vadd.f32 %v723, %v726
        %vm728 = vweird.f32 %v623
        %vm729 = vweird.f32 %v723
        %vm730 = vmor %vm728, %vm729
        %v731 = vsel %vm730, %v723, %v727
        %v732 = vand.u32 2147483647, %v623
        %vm733 = vcmp.eq.f32.partialorder %v732, 8.507059e+37
        %v734 = vand.u32 %v623, 2147483648
        %v735 = vor.u32 1.1754944e-38, %v734
        %v736 = vsel %vm733, %v735, %v731
        %v737 = vmul.f32 %v350, %v736
        %v738 = vrcp.pop %v624
        %v739 = vmul.f32 %v624, %v738
        %v740 = vsub.f32 1.0, %v739
        %v741 = vmul.f32 %v738, %v740
        %v742 = vadd.f32 %v738, %v741
        %vm743 = vweird.f32 %v624
        %vm744 = vweird.f32 %v738
        %vm745 = vmor %vm743, %vm744
        %v746 = vsel %vm745, %v738, %v742
        %v747 = vand.u32 2147483647, %v624
        %vm748 = vcmp.eq.f32.partialorder %v747, 8.507059e+37
        %v749 = vand.u32 %v624, 2147483648
        %v750 = vor.u32 1.1754944e-38, %v749
        %v751 = vsel %vm748, %v750, %v746
        %v752 = vmul.f32 %v351, %v751
        %v753 = vrcp.pop %v625
        %v754 = vmul.f32 %v625, %v753
        %v755 = vsub.f32 1.0, %v754
        %v756 = vmul.f32 %v753, %v755
        %v757 = vadd.f32 %v753, %v756
        %vm758 = vweird.f32 %v625
        %vm759 = vweird.f32 %v753
        %vm760 = vmor %vm758, %vm759
        %v761 = vsel %vm760, %v753, %v757
        %v762 = vand.u32 2147483647, %v625
        %vm763 = vcmp.eq.f32.partialorder %v762, 8.507059e+37
        %v764 = vand.u32 %v625, 2147483648
        %v765 = vor.u32 1.1754944e-38, %v764
        %v766 = vsel %vm763, %v765, %v761
        %v767 = vmul.f32 %v352, %v766
        %v768 = vrcp.pop %v626
        %v769 = vmul.f32 %v626, %v768
        %v770 = vsub.f32 1.0, %v769
        %v771 = vmul.f32 %v768, %v770
        %v772 = vadd.f32 %v768, %v771
        %vm773 = vweird.f32 %v626
        %vm774 = vweird.f32 %v768
        %vm775 = vmor %vm773, %vm774
        %v776 = vsel %vm775, %v768, %v772
        %v777 = vand.u32 2147483647, %v626
        %vm778 = vcmp.eq.f32.partialorder %v777, 8.507059e+37
        %v779 = vand.u32 %v626, 2147483648
        %v780 = vor.u32 1.1754944e-38, %v779
        %v781 = vsel %vm778, %v780, %v776
        %v782 = vmul.f32 %v353, %v781
        %v783 = vrcp.pop %v627
        %v784 = vmul.f32 %v627, %v783
        %v785 = vsub.f32 1.0, %v784
        %v786 = vmul.f32 %v783, %v785
        %v787 = vadd.f32 %v783, %v786
        %vm788 = vweird.f32 %v627
        %vm789 = vweird.f32 %v783
        %vm790 = vmor %vm788, %vm789
        %v791 = vsel %vm790, %v783, %v787
        %v792 = vand.u32 2147483647, %v627
        %vm793 = vcmp.eq.f32.partialorder %v792, 8.507059e+37
        %v794 = vand.u32 %v627, 2147483648
        %v795 = vor.u32 1.1754944e-38, %v794
        %v796 = vsel %vm793, %v795, %v791
        %v797 = vmul.f32 %v354, %v796
        %v798 = vrcp.pop %v628
        %v799 = vmul.f32 %v628, %v798
        %v800 = vsub.f32 1.0, %v799
        %v801 = vmul.f32 %v798, %v800
        %v802 = vadd.f32 %v798, %v801
        %vm803 = vweird.f32 %v628
        %vm804 = vweird.f32 %v798
        %vm805 = vmor %vm803, %vm804
        %v806 = vsel %vm805, %v798, %v802
        %v807 = vand.u32 2147483647, %v628
        %vm808 = vcmp.eq.f32.partialorder %v807, 8.507059e+37
        %v809 = vand.u32 %v628, 2147483648
        %v810 = vor.u32 1.1754944e-38, %v809
        %v811 = vsel %vm808, %v810, %v806
        %v812 = vmul.f32 %v355, %v811
        %v813 = vrcp.pop %v629
        %v814 = vmul.f32 %v629, %v813
        %v815 = vsub.f32 1.0, %v814
        %v816 = vmul.f32 %v813, %v815
        %v817 = vadd.f32 %v813, %v816
        %vm818 = vweird.f32 %v629
        %vm819 = vweird.f32 %v813
        %vm820 = vmor %vm818, %vm819
        %v821 = vsel %vm820, %v813, %v817
        %v822 = vand.u32 2147483647, %v629
        %vm823 = vcmp.eq.f32.partialorder %v822, 8.507059e+37
        %v824 = vand.u32 %v629, 2147483648
        %v825 = vor.u32 1.1754944e-38, %v824
        %v826 = vsel %vm823, %v825, %v821
        %v827 = vmul.f32 %v356, %v826
        %v828 = vrcp.pop %v630
        %v829 = vmul.f32 %v630, %v828
        %v830 = vsub.f32 1.0, %v829
        %v831 = vmul.f32 %v828, %v830
        %v832 = vadd.f32 %v828, %v831
        %vm833 = vweird.f32 %v630
        %vm834 = vweird.f32 %v828
        %vm835 = vmor %vm833, %vm834
        %v836 = vsel %vm835, %v828, %v832
        %v837 = vand.u32 2147483647, %v630
        %vm838 = vcmp.eq.f32.partialorder %v837, 8.507059e+37
        %v839 = vand.u32 %v630, 2147483648
        %v840 = vor.u32 1.1754944e-38, %v839
        %v841 = vsel %vm838, %v840, %v836
        %v842 = vmul.f32 %v357, %v841
        %v843 = vrcp.pop %v631
        %v844 = vmul.f32 %v631, %v843
        %v845 = vsub.f32 1.0, %v844
        %v846 = vmul.f32 %v843, %v845
        %v847 = vadd.f32 %v843, %v846
        %vm848 = vweird.f32 %v631
        %vm849 = vweird.f32 %v843
        %vm850 = vmor %vm848, %vm849
        %v851 = vsel %vm850, %v843, %v847
        %v852 = vand.u32 2147483647, %v631
        %vm853 = vcmp.eq.f32.partialorder %v852, 8.507059e+37
        %v854 = vand.u32 %v631, 2147483648
        %v855 = vor.u32 1.1754944e-38, %v854
        %v856 = vsel %vm853, %v855, %v851
        %v857 = vmul.f32 %v358, %v856
        %v858 = vrcp.pop %v632
        %v859 = vmul.f32 %v632, %v858
        %v860 = vsub.f32 1.0, %v859
        %v861 = vmul.f32 %v858, %v860
        %v862 = vadd.f32 %v858, %v861
        %vm863 = vweird.f32 %v632
        %vm864 = vweird.f32 %v858
        %vm865 = vmor %vm863, %vm864
        %v866 = vsel %vm865, %v858, %v862
        %v867 = vand.u32 2147483647, %v632
        %vm868 = vcmp.eq.f32.partialorder %v867, 8.507059e+37
        %v869 = vand.u32 %v632, 2147483648
        %v870 = vor.u32 1.1754944e-38, %v869
        %v871 = vsel %vm868, %v870, %v866
        %v872 = vmul.f32 %v359, %v871
        %v873 = vld [vmem:[%s1] sm:$0x1]
        %v875 = vperm.slane %v873, 0
        %v877 = vmul.f32 %v647, %v875
        %v878 = vmul.f32 %v662, %v875
        %v879 = vmul.f32 %v677, %v875
        %v880 = vmul.f32 %v692, %v875
        %v881 = vmul.f32 %v707, %v875
        %v882 = vmul.f32 %v722, %v875
        %v883 = vmul.f32 %v737, %v875
        %v884 = vmul.f32 %v752, %v875
        %v885 = vmul.f32 %v767, %v875
        %v886 = vmul.f32 %v782, %v875
        %v887 = vmul.f32 %v797, %v875
        %v888 = vmul.f32 %v812, %v875
        %v889 = vmul.f32 %v827, %v875
        %v890 = vmul.f32 %v842, %v875
        %v891 = vmul.f32 %v857, %v875
        %v892 = vmul.f32 %v872, %v875
        %v893 = vld [vmem:[%s2] sm:$0xf]
        %v894 = vld [vmem:[%s2 + $0x4] sm:$0xf]
        %v895 = vld [vmem:[%s2 + $0x8] sm:$0xf]
        %v896 = vld [vmem:[%s2 + $0xc] sm:$0xf]
        %v897 = vld [vmem:[%s2 + $0x10] sm:$0xf]
        %v898 = vld [vmem:[%s2 + $0x14] sm:$0xf]
        %v899 = vld [vmem:[%s2 + $0x18] sm:$0xf]
        %v900 = vld [vmem:[%s2 + $0x1c] sm:$0xf]
        %v901 = vld [vmem:[%s2 + $0x20] sm:$0xf]
        %v902 = vld [vmem:[%s2 + $0x24] sm:$0xf]
        %v903 = vld [vmem:[%s2 + $0x28] sm:$0xf]
        %v904 = vld [vmem:[%s2 + $0x2c] sm:$0xf]
        %v905 = vld [vmem:[%s2 + $0x30] sm:$0xf]
        %v906 = vld [vmem:[%s2 + $0x34] sm:$0xf]
        %v907 = vld [vmem:[%s2 + $0x38] sm:$0xf]
        %v908 = vld [vmem:[%s2 + $0x3c] sm:$0xf]
        %v909 = vld [vmem:[%s2 + $0x40] sm:$0xf]
        %v910 = vld [vmem:[%s2 + $0x44] sm:$0xf]
        %v911 = vld [vmem:[%s2 + $0x48] sm:$0xf]
        %v912 = vld [vmem:[%s2 + $0x4c] sm:$0xf]
        %v913 = vld [vmem:[%s2 + $0x50] sm:$0xf]
        %v914 = vld [vmem:[%s2 + $0x54] sm:$0xf]
        %v915 = vld [vmem:[%s2 + $0x58] sm:$0xf]
        %v916 = vld [vmem:[%s2 + $0x5c] sm:$0xf]
        %v917 = vld [vmem:[%s2 + $0x60] sm:$0xf]
        %v918 = vld [vmem:[%s2 + $0x64] sm:$0xf]
        %v919 = vld [vmem:[%s2 + $0x68] sm:$0xf]
        %v920 = vld [vmem:[%s2 + $0x6c] sm:$0xf]
        %v921 = vld [vmem:[%s2 + $0x70] sm:$0xf]
        %v922 = vld [vmem:[%s2 + $0x74] sm:$0xf]
        %v923 = vld [vmem:[%s2 + $0x78] sm:$0xf]
        %v924 = vld [vmem:[%s2 + $0x7c] sm:$0xf]
        %v925 = vld [vmem:[%s2 + $0x80] sm:$0xf]
        %v926 = vld [vmem:[%s2 + $0x84] sm:$0xf]
        %v927 = vld [vmem:[%s2 + $0x88] sm:$0xf]
        %v928 = vld [vmem:[%s2 + $0x8c] sm:$0xf]
        %v929 = vld [vmem:[%s2 + $0x90] sm:$0xf]
        %v930 = vld [vmem:[%s2 + $0x94] sm:$0xf]
        %v931 = vld [vmem:[%s2 + $0x98] sm:$0xf]
        %v932 = vld [vmem:[%s2 + $0x9c] sm:$0xf]
        %v933 = vld [vmem:[%s2 + $0xa0] sm:$0xf]
        %v934 = vld [vmem:[%s2 + $0xa4] sm:$0xf]
        %v935 = vld [vmem:[%s2 + $0xa8] sm:$0xf]
        %v936 = vld [vmem:[%s2 + $0xac] sm:$0xf]
        %v937 = vld [vmem:[%s2 + $0xb0] sm:$0xf]
        %v938 = vld [vmem:[%s2 + $0xb4] sm:$0xf]
        %v939 = vld [vmem:[%s2 + $0xb8] sm:$0xf]
        %v940 = vld [vmem:[%s2 + $0xbc] sm:$0xf]
        %v941 = vpack.c.bf16 %v878, %v877
        %v942 = vpack.c.bf16 %v880, %v879
        %v943 = vpack.c.bf16 %v882, %v881
        %v944 = vpack.c.bf16 %v884, %v883
        %v945 = vpack.c.bf16 %v886, %v885
        %v946 = vpack.c.bf16 %v888, %v887
        %v947 = vpack.c.bf16 %v890, %v889
        %v948 = vpack.c.bf16 %v892, %v891
        %v997 = vunpack.c.l.b16 %v893
        %v998 = vunpack.c.l.b16 %v894
        %v999 = vunpack.c.l.b16 %v895
        %v1000 = vunpack.c.l.b16 %v896
        %v1001 = vunpack.c.l.b16 %v897
        %v1002 = vunpack.c.l.b16 %v898
        %v1003 = vunpack.c.l.b16 %v899
        %v1004 = vunpack.c.l.b16 %v900
        %v1005 = vunpack.c.l.b16 %v901
        %v1006 = vunpack.c.l.b16 %v902
        %v1007 = vunpack.c.l.b16 %v903
        %v1008 = vunpack.c.l.b16 %v904
        %v1009 = vunpack.c.l.b16 %v905
        %v1010 = vunpack.c.l.b16 %v906
        %v1011 = vunpack.c.l.b16 %v907
        %v1012 = vunpack.c.l.b16 %v908
        %v1013 = vunpack.c.l.b16 %v909
        %v1014 = vunpack.c.l.b16 %v910
        %v1015 = vunpack.c.l.b16 %v911
        %v1016 = vunpack.c.l.b16 %v912
        %v1017 = vunpack.c.l.b16 %v913
        %v1018 = vunpack.c.l.b16 %v914
        %v1019 = vunpack.c.l.b16 %v915
        %v1020 = vunpack.c.l.b16 %v916
        %v1021 = vunpack.c.l.b16 %v917
        %v1022 = vunpack.c.l.b16 %v918
        %v1023 = vunpack.c.l.b16 %v919
        %v1024 = vunpack.c.l.b16 %v920
        %v1025 = vunpack.c.l.b16 %v921
        %v1026 = vunpack.c.l.b16 %v922
        %v1027 = vunpack.c.l.b16 %v923
        %v1028 = vunpack.c.l.b16 %v924
        %v1029 = vunpack.c.l.b16 %v925
        %v1030 = vunpack.c.l.b16 %v926
        %v1031 = vunpack.c.l.b16 %v927
        %v1032 = vunpack.c.l.b16 %v928
        %v1033 = vunpack.c.l.b16 %v929
        %v1034 = vunpack.c.l.b16 %v930
        %v1035 = vunpack.c.l.b16 %v931
        %v1036 = vunpack.c.l.b16 %v932
        %v1037 = vunpack.c.l.b16 %v933
        %v1038 = vunpack.c.l.b16 %v934
        %v1039 = vunpack.c.l.b16 %v935
        %v1040 = vunpack.c.l.b16 %v936
        %v1041 = vunpack.c.l.b16 %v937
        %v1042 = vunpack.c.l.b16 %v938
        %v1043 = vunpack.c.l.b16 %v939
        %v1044 = vunpack.c.l.b16 %v940
        %v1045 = vpack.c.b16 %v998, %v997
        %v1046 = vpack.c.b16 %v1000, %v999
        %v1047 = vpack.c.b16 %v1002, %v1001
        %v1048 = vpack.c.b16 %v1004, %v1003
        %v1049 = vpack.c.b16 %v1006, %v1005
        %v1050 = vpack.c.b16 %v1008, %v1007
        %v1051 = vpack.c.b16 %v1010, %v1009
        %v1052 = vpack.c.b16 %v1012, %v1011
        %v1053 = vpack.c.b16 %v1014, %v1013
        %v1054 = vpack.c.b16 %v1016, %v1015
        %v1055 = vpack.c.b16 %v1018, %v1017
        %v1056 = vpack.c.b16 %v1020, %v1019
        %v1057 = vpack.c.b16 %v1022, %v1021
        %v1058 = vpack.c.b16 %v1024, %v1023
        %v1059 = vpack.c.b16 %v1026, %v1025
        %v1060 = vpack.c.b16 %v1028, %v1027
        %v1061 = vpack.c.b16 %v1030, %v1029
        %v1062 = vpack.c.b16 %v1032, %v1031
        %v1063 = vpack.c.b16 %v1034, %v1033
        %v1064 = vpack.c.b16 %v1036, %v1035
        %v1065 = vpack.c.b16 %v1038, %v1037
        %v1066 = vpack.c.b16 %v1040, %v1039
        %v1067 = vpack.c.b16 %v1042, %v1041
        %v1068 = vpack.c.b16 %v1044, %v1043
        %v1070 = vsel %vm376, %v1045, 0
        %v1073 = vsel %vm376, %v1046, 0
        %v1076 = vsel %vm376, %v1047, 0
        %v1079 = vsel %vm376, %v1048, 0
        %v1082 = vsel %vm376, %v1049, 0
        %v1085 = vsel %vm376, %v1050, 0
        %v1088 = vsel %vm376, %v1051, 0
        %v1091 = vsel %vm376, %v1052, 0
        %v1094 = vsel %vm376, %v1053, 0
        %v1097 = vsel %vm376, %v1054, 0
        %v1100 = vsel %vm376, %v1055, 0
        %v1103 = vsel %vm376, %v1056, 0
        %v1106 = vsel %vm376, %v1057, 0
        %v1109 = vsel %vm376, %v1058, 0
        %v1112 = vsel %vm376, %v1059, 0
        %v1115 = vsel %vm376, %v1060, 0
        %v1118 = vsel %vm376, %v1061, 0
        %v1121 = vsel %vm376, %v1062, 0
        %v1124 = vsel %vm376, %v1063, 0
        %v1127 = vsel %vm376, %v1064, 0
        %v1130 = vsel %vm376, %v1065, 0
        %v1133 = vsel %vm376, %v1066, 0
        %v1136 = vsel %vm376, %v1067, 0
        %v1139 = vsel %vm376, %v1068, 0
        %v1142 = vsel %vm376, %v941, 0
        %v1145 = vsel %vm376, %v942, 0
        %v1148 = vsel %vm376, %v943, 0
        %v1151 = vsel %vm376, %v944, 0
        %v1154 = vsel %vm376, %v945, 0
        %v1157 = vsel %vm376, %v946, 0
        %v1160 = vsel %vm376, %v947, 0
        %v1163 = vsel %vm376, %v948, 0
        %1165 = vmatpush.bf16.xpose.msra.mxu0 %v1163
        %1166 = vmatpush.bf16.xpose.msra.mxu0 %v1160
        %1167 = vmatpush.bf16.xpose.msra.mxu0 %v1157
        %1168 = vmatpush.bf16.xpose.msra.mxu0 %v1154
        %1169 = vmatpush.bf16.xpose.msra.mxu0 %v1151
        %1170 = vmatpush.bf16.xpose.msra.mxu0 %v1148
        %1171 = vmatpush.bf16.xpose.msra.mxu0 %v1145
        %1172 = vmatpush.bf16.xpose.msra.mxu0 %v1142
        %1173 = vmatmul.bf16.gmra.mxu0 %v1070
        %v1174 = vpop.f32.mrf.mxu0
        %v1175 = vadd.f32 0.0, %v1174
        %v1176 = vpop.f32.mrf.mxu0
        %v1177 = vadd.f32 0.0, %v1176
        %1178 = vmatmul.bf16.gmra.mxu0 %v1073
        %v1179 = vpop.f32.mrf.mxu0
        %v1180 = vadd.f32 0.0, %v1179
        %v1181 = vpop.f32.mrf.mxu0
        %v1182 = vadd.f32 0.0, %v1181
        %1183 = vmatmul.bf16.gmra.mxu0 %v1076
        %v1184 = vpop.f32.mrf.mxu0
        %v1185 = vadd.f32 0.0, %v1184
        %v1186 = vpop.f32.mrf.mxu0
        %v1187 = vadd.f32 0.0, %v1186
        %1188 = vmatmul.bf16.gmra.mxu0 %v1079
        %v1189 = vpop.f32.mrf.mxu0
        %v1190 = vadd.f32 0.0, %v1189
        %v1191 = vpop.f32.mrf.mxu0
        %v1192 = vadd.f32 0.0, %v1191
        %1193 = vmatmul.bf16.gmra.mxu0 %v1082
        %v1194 = vpop.f32.mrf.mxu0
        %v1195 = vadd.f32 0.0, %v1194
        %v1196 = vpop.f32.mrf.mxu0
        %v1197 = vadd.f32 0.0, %v1196
        %1198 = vmatmul.bf16.gmra.mxu0 %v1085
        %v1199 = vpop.f32.mrf.mxu0
        %v1200 = vadd.f32 0.0, %v1199
        %v1201 = vpop.f32.mrf.mxu0
        %v1202 = vadd.f32 0.0, %v1201
        %1203 = vmatmul.bf16.gmra.mxu0 %v1088
        %v1204 = vpop.f32.mrf.mxu0
        %v1205 = vadd.f32 0.0, %v1204
        %v1206 = vpop.f32.mrf.mxu0
        %v1207 = vadd.f32 0.0, %v1206
        %1208 = vmatmul.bf16.gmra.mxu0 %v1091
        %v1209 = vpop.f32.mrf.mxu0
        %v1210 = vadd.f32 0.0, %v1209
        %v1211 = vpop.f32.mrf.mxu0
        %v1212 = vadd.f32 0.0, %v1211
        %1213 = vmatmul.bf16.gmra.mxu0 %v1094
        %v1214 = vpop.f32.mrf.mxu0
        %v1215 = vadd.f32 0.0, %v1214
        %v1216 = vpop.f32.mrf.mxu0
        %v1217 = vadd.f32 0.0, %v1216
        %1218 = vmatmul.bf16.gmra.mxu0 %v1097
        %v1219 = vpop.f32.mrf.mxu0
        %v1220 = vadd.f32 0.0, %v1219
        %v1221 = vpop.f32.mrf.mxu0
        %v1222 = vadd.f32 0.0, %v1221
        %1223 = vmatmul.bf16.gmra.mxu0 %v1100
        %v1224 = vpop.f32.mrf.mxu0
        %v1225 = vadd.f32 0.0, %v1224
        %v1226 = vpop.f32.mrf.mxu0
        %v1227 = vadd.f32 0.0, %v1226
        %1228 = vmatmul.bf16.gmra.mxu0 %v1103
        %v1229 = vpop.f32.mrf.mxu0
        %v1230 = vadd.f32 0.0, %v1229
        %v1231 = vpop.f32.mrf.mxu0
        %v1232 = vadd.f32 0.0, %v1231
        %1233 = vmatmul.bf16.gmra.mxu0 %v1106
        %v1234 = vpop.f32.mrf.mxu0
        %v1235 = vadd.f32 0.0, %v1234
        %v1236 = vpop.f32.mrf.mxu0
        %v1237 = vadd.f32 0.0, %v1236
        %1238 = vmatmul.bf16.gmra.mxu0 %v1109
        %v1239 = vpop.f32.mrf.mxu0
        %v1240 = vadd.f32 0.0, %v1239
        %v1241 = vpop.f32.mrf.mxu0
        %v1242 = vadd.f32 0.0, %v1241
        %1243 = vmatmul.bf16.gmra.mxu0 %v1112
        %v1244 = vpop.f32.mrf.mxu0
        %v1245 = vadd.f32 0.0, %v1244
        %v1246 = vpop.f32.mrf.mxu0
        %v1247 = vadd.f32 0.0, %v1246
        %1248 = vmatmul.bf16.gmra.mxu0 %v1115
        %v1249 = vpop.f32.mrf.mxu0
        %v1250 = vadd.f32 0.0, %v1249
        %v1251 = vpop.f32.mrf.mxu0
        %v1252 = vadd.f32 0.0, %v1251
        %1253 = vmatmul.bf16.gmra.mxu0 %v1118
        %v1254 = vpop.f32.mrf.mxu0
        %v1255 = vadd.f32 0.0, %v1254
        %v1256 = vpop.f32.mrf.mxu0
        %v1257 = vadd.f32 0.0, %v1256
        %1258 = vmatmul.bf16.gmra.mxu0 %v1121
        %v1259 = vpop.f32.mrf.mxu0
        %v1260 = vadd.f32 0.0, %v1259
        %v1261 = vpop.f32.mrf.mxu0
        %v1262 = vadd.f32 0.0, %v1261
        %1263 = vmatmul.bf16.gmra.mxu0 %v1124
        %v1264 = vpop.f32.mrf.mxu0
        %v1265 = vadd.f32 0.0, %v1264
        %v1266 = vpop.f32.mrf.mxu0
        %v1267 = vadd.f32 0.0, %v1266
        %1268 = vmatmul.bf16.gmra.mxu0 %v1127
        %v1269 = vpop.f32.mrf.mxu0
        %v1270 = vadd.f32 0.0, %v1269
        %v1271 = vpop.f32.mrf.mxu0
        %v1272 = vadd.f32 0.0, %v1271
        %1273 = vmatmul.bf16.gmra.mxu0 %v1130
        %v1274 = vpop.f32.mrf.mxu0
        %v1275 = vadd.f32 0.0, %v1274
        %v1276 = vpop.f32.mrf.mxu0
        %v1277 = vadd.f32 0.0, %v1276
        %1278 = vmatmul.bf16.gmra.mxu0 %v1133
        %v1279 = vpop.f32.mrf.mxu0
        %v1280 = vadd.f32 0.0, %v1279
        %v1281 = vpop.f32.mrf.mxu0
        %v1282 = vadd.f32 0.0, %v1281
        %1283 = vmatmul.bf16.gmra.mxu0 %v1136
        %v1284 = vpop.f32.mrf.mxu0
        %v1285 = vadd.f32 0.0, %v1284
        %v1286 = vpop.f32.mrf.mxu0
        %v1287 = vadd.f32 0.0, %v1286
        %1288 = vmatmul.bf16.gmra.mxu0 %v1139
        %v1289 = vpop.f32.mrf.mxu0
        %v1290 = vadd.f32 0.0, %v1289
        %v1291 = vpop.f32.mrf.mxu0
        %v1292 = vadd.f32 0.0, %v1291
        %1293 = vdwg.mxu0
        %1294 = vst [vmem:[%s273] sm:$0xff] %v1255
        %1295 = vst [vmem:[%s273 + $0x8] sm:$0xff] %v1257
        %1296 = vst [vmem:[%s273 + $0x10] sm:$0xff] %v1260
        %1297 = vst [vmem:[%s273 + $0x18] sm:$0xff] %v1262
        %1298 = vst [vmem:[%s273 + $0x20] sm:$0xff] %v1265
        %1299 = vst [vmem:[%s273 + $0x28] sm:$0xff] %v1267
        %1300 = vst [vmem:[%s273 + $0x30] sm:$0xff] %v1270
        %1301 = vst [vmem:[%s273 + $0x38] sm:$0xff] %v1272
        %1302 = vst [vmem:[%s273 + $0x40] sm:$0xff] %v1275
        %1303 = vst [vmem:[%s273 + $0x48] sm:$0xff] %v1277
        %1304 = vst [vmem:[%s273 + $0x50] sm:$0xff] %v1280
        %1305 = vst [vmem:[%s273 + $0x58] sm:$0xff] %v1282
        %1306 = vst [vmem:[%s273 + $0x60] sm:$0xff] %v1285
        %1307 = vst [vmem:[%s273 + $0x68] sm:$0xff] %v1287
        %1308 = vst [vmem:[%s273 + $0x70] sm:$0xff] %v1290
        %1309 = vst [vmem:[%s273 + $0x78] sm:$0xff] %v1292
        %v1310 = vld [vmem:[#allocation3] sm:$0xff]
        %v1311 = vld [vmem:[#allocation3 + $0x8] sm:$0xff]
        %v1312 = vld [vmem:[#allocation3 + $0x10] sm:$0xff]
        %v1313 = vld [vmem:[#allocation3 + $0x18] sm:$0xff]
        %v1314 = vld [vmem:[#allocation3 + $0x20] sm:$0xff]
        %v1315 = vld [vmem:[#allocation3 + $0x28] sm:$0xff]
        %v1316 = vld [vmem:[#allocation3 + $0x30] sm:$0xff]
        %v1317 = vld [vmem:[#allocation3 + $0x38] sm:$0xff]
        %v1318 = vld [vmem:[#allocation3 + $0x40] sm:$0xff]
        %v1319 = vld [vmem:[#allocation3 + $0x48] sm:$0xff]
        %v1320 = vld [vmem:[#allocation3 + $0x50] sm:$0xff]
        %v1321 = vld [vmem:[#allocation3 + $0x58] sm:$0xff]
        %v1322 = vld [vmem:[#allocation3 + $0x60] sm:$0xff]
        %v1323 = vld [vmem:[#allocation3 + $0x68] sm:$0xff]
        %v1324 = vld [vmem:[#allocation3 + $0x70] sm:$0xff]
        %v1325 = vld [vmem:[#allocation3 + $0x78] sm:$0xff]
        %v1326 = vmul.f32 %v1175, %v1175
        %v1327 = vmul.f32 %v1177, %v1177
        %v1328 = vmul.f32 %v1180, %v1180
        %v1329 = vmul.f32 %v1182, %v1182
        %v1330 = vmul.f32 %v1185, %v1185
        %v1331 = vmul.f32 %v1187, %v1187
        %v1332 = vmul.f32 %v1190, %v1190
        %v1333 = vmul.f32 %v1192, %v1192
        %v1334 = vmul.f32 %v1195, %v1195
        %v1335 = vmul.f32 %v1197, %v1197
        %v1336 = vmul.f32 %v1200, %v1200
        %v1337 = vmul.f32 %v1202, %v1202
        %v1338 = vmul.f32 %v1205, %v1205
        %v1339 = vmul.f32 %v1207, %v1207
        %v1340 = vmul.f32 %v1210, %v1210
        %v1341 = vmul.f32 %v1212, %v1212
        %1342 = vadd.xlane.f32.xlu0 %v1326
        %v1343 = vpop.xlane.xlu0 %1342
        %1344 = vadd.xlane.f32.xlu0 %v1327
        %v1345 = vpop.xlane.xlu0 %1344
        %1346 = vadd.xlane.f32.xlu0 %v1328
        %v1347 = vpop.xlane.xlu0 %1346
        %1348 = vadd.xlane.f32.xlu0 %v1329
        %v1349 = vpop.xlane.xlu0 %1348
        %1350 = vadd.xlane.f32.xlu0 %v1330
        %v1351 = vpop.xlane.xlu0 %1350
        %1352 = vadd.xlane.f32.xlu0 %v1331
        %v1353 = vpop.xlane.xlu0 %1352
        %1354 = vadd.xlane.f32.xlu0 %v1332
        %v1355 = vpop.xlane.xlu0 %1354
        %1356 = vadd.xlane.f32.xlu0 %v1333
        %v1357 = vpop.xlane.xlu0 %1356
        %1358 = vadd.xlane.f32.xlu0 %v1334
        %v1359 = vpop.xlane.xlu0 %1358
        %1360 = vadd.xlane.f32.xlu0 %v1335
        %v1361 = vpop.xlane.xlu0 %1360
        %1362 = vadd.xlane.f32.xlu0 %v1336
        %v1363 = vpop.xlane.xlu0 %1362
        %1364 = vadd.xlane.f32.xlu0 %v1337
        %v1365 = vpop.xlane.xlu0 %1364
        %1366 = vadd.xlane.f32.xlu0 %v1338
        %v1367 = vpop.xlane.xlu0 %1366
        %1368 = vadd.xlane.f32.xlu0 %v1339
        %v1369 = vpop.xlane.xlu0 %1368
        %1370 = vadd.xlane.f32.xlu0 %v1340
        %v1371 = vpop.xlane.xlu0 %1370
        %1372 = vadd.xlane.f32.xlu0 %v1341
        %v1373 = vpop.xlane.xlu0 %1372
        %v1374 = vadd.f32 %v1310, %v1343
        %v1375 = vadd.f32 %v1311, %v1345
        %v1376 = vadd.f32 %v1312, %v1347
        %v1377 = vadd.f32 %v1313, %v1349
        %v1378 = vadd.f32 %v1314, %v1351
        %v1379 = vadd.f32 %v1315, %v1353
        %v1380 = vadd.f32 %v1316, %v1355
        %v1381 = vadd.f32 %v1317, %v1357
        %v1382 = vadd.f32 %v1318, %v1359
        %v1383 = vadd.f32 %v1319, %v1361
        %v1384 = vadd.f32 %v1320, %v1363
        %v1385 = vadd.f32 %v1321, %v1365
        %v1386 = vadd.f32 %v1322, %v1367
        %v1387 = vadd.f32 %v1323, %v1369
        %v1388 = vadd.f32 %v1324, %v1371
        %v1389 = vadd.f32 %v1325, %v1373
        %vm1390 = vcmask 7168
        %1391 = vst.msk [vmem:[#allocation3] sm:$0xff] %vm1390, %v1374
        %1392 = vst.msk [vmem:[#allocation3 + $0x8] sm:$0xff] %vm1390, %v1375
        %1393 = vst.msk [vmem:[#allocation3 + $0x10] sm:$0xff] %vm1390, %v1376
        %1394 = vst.msk [vmem:[#allocation3 + $0x18] sm:$0xff] %vm1390, %v1377
        %1395 = vst.msk [vmem:[#allocation3 + $0x20] sm:$0xff] %vm1390, %v1378
        %1396 = vst.msk [vmem:[#allocation3 + $0x28] sm:$0xff] %vm1390, %v1379
        %1397 = vst.msk [vmem:[#allocation3 + $0x30] sm:$0xff] %vm1390, %v1380
        %1398 = vst.msk [vmem:[#allocation3 + $0x38] sm:$0xff] %vm1390, %v1381
        %1399 = vst.msk [vmem:[#allocation3 + $0x40] sm:$0xff] %vm1390, %v1382
        %1400 = vst.msk [vmem:[#allocation3 + $0x48] sm:$0xff] %vm1390, %v1383
        %1401 = vst.msk [vmem:[#allocation3 + $0x50] sm:$0xff] %vm1390, %v1384
        %1402 = vst.msk [vmem:[#allocation3 + $0x58] sm:$0xff] %vm1390, %v1385
        %1403 = vst.msk [vmem:[#allocation3 + $0x60] sm:$0xff] %vm1390, %v1386
        %1404 = vst.msk [vmem:[#allocation3 + $0x68] sm:$0xff] %vm1390, %v1387
        %1405 = vst.msk [vmem:[#allocation3 + $0x70] sm:$0xff] %vm1390, %v1388
        %1406 = vst.msk [vmem:[#allocation3 + $0x78] sm:$0xff] %vm1390, %v1389
        %v1407 = vld [vmem:[#allocation4] sm:$0xff]
        %v1408 = vld [vmem:[#allocation4 + $0x8] sm:$0xff]
        %v1409 = vld [vmem:[#allocation4 + $0x10] sm:$0xff]
        %v1410 = vld [vmem:[#allocation4 + $0x18] sm:$0xff]
        %v1411 = vld [vmem:[#allocation4 + $0x20] sm:$0xff]
        %v1412 = vld [vmem:[#allocation4 + $0x28] sm:$0xff]
        %v1413 = vld [vmem:[#allocation4 + $0x30] sm:$0xff]
        %v1414 = vld [vmem:[#allocation4 + $0x38] sm:$0xff]
        %v1415 = vld [vmem:[#allocation4 + $0x40] sm:$0xff]
        %v1416 = vld [vmem:[#allocation4 + $0x48] sm:$0xff]
        %v1417 = vld [vmem:[#allocation4 + $0x50] sm:$0xff]
        %v1418 = vld [vmem:[#allocation4 + $0x58] sm:$0xff]
        %v1419 = vld [vmem:[#allocation4 + $0x60] sm:$0xff]
        %v1420 = vld [vmem:[#allocation4 + $0x68] sm:$0xff]
        %v1421 = vld [vmem:[#allocation4 + $0x70] sm:$0xff]
        %v1422 = vld [vmem:[#allocation4 + $0x78] sm:$0xff]
        %v1423 = vmul.f32 %v1215, %v1215
        %v1424 = vmul.f32 %v1217, %v1217
        %v1425 = vmul.f32 %v1220, %v1220
        %v1426 = vmul.f32 %v1222, %v1222
        %v1427 = vmul.f32 %v1225, %v1225
        %v1428 = vmul.f32 %v1227, %v1227
        %v1429 = vmul.f32 %v1230, %v1230
        %v1430 = vmul.f32 %v1232, %v1232
        %v1431 = vmul.f32 %v1235, %v1235
        %v1432 = vmul.f32 %v1237, %v1237
        %v1433 = vmul.f32 %v1240, %v1240
        %v1434 = vmul.f32 %v1242, %v1242
        %v1435 = vmul.f32 %v1245, %v1245
        %v1436 = vmul.f32 %v1247, %v1247
        %v1437 = vmul.f32 %v1250, %v1250
        %v1438 = vmul.f32 %v1252, %v1252
        %1439 = vadd.xlane.f32.xlu0 %v1423
        %v1440 = vpop.xlane.xlu0 %1439
        %1441 = vadd.xlane.f32.xlu0 %v1424
        %v1442 = vpop.xlane.xlu0 %1441
        %1443 = vadd.xlane.f32.xlu0 %v1425
        %v1444 = vpop.xlane.xlu0 %1443
        %1445 = vadd.xlane.f32.xlu0 %v1426
        %v1446 = vpop.xlane.xlu0 %1445
        %1447 = vadd.xlane.f32.xlu0 %v1427
        %v1448 = vpop.xlane.xlu0 %1447
        %1449 = vadd.xlane.f32.xlu0 %v1428
        %v1450 = vpop.xlane.xlu0 %1449
        %1451 = vadd.xlane.f32.xlu0 %v1429
        %v1452 = vpop.xlane.xlu0 %1451
        %1453 = vadd.xlane.f32.xlu0 %v1430
        %v1454 = vpop.xlane.xlu0 %1453
        %1455 = vadd.xlane.f32.xlu0 %v1431
        %v1456 = vpop.xlane.xlu0 %1455
        %1457 = vadd.xlane.f32.xlu0 %v1432
        %v1458 = vpop.xlane.xlu0 %1457
        %1459 = vadd.xlane.f32.xlu0 %v1433
        %v1460 = vpop.xlane.xlu0 %1459
        %1461 = vadd.xlane.f32.xlu0 %v1434
        %v1462 = vpop.xlane.xlu0 %1461
        %1463 = vadd.xlane.f32.xlu0 %v1435
        %v1464 = vpop.xlane.xlu0 %1463
        %1465 = vadd.xlane.f32.xlu0 %v1436
        %v1466 = vpop.xlane.xlu0 %1465
        %1467 = vadd.xlane.f32.xlu0 %v1437
        %v1468 = vpop.xlane.xlu0 %1467
        %1469 = vadd.xlane.f32.xlu0 %v1438
        %v1470 = vpop.xlane.xlu0 %1469
        %v1471 = vadd.f32 %v1407, %v1440
        %v1472 = vadd.f32 %v1408, %v1442
        %v1473 = vadd.f32 %v1409, %v1444
        %v1474 = vadd.f32 %v1410, %v1446
        %v1475 = vadd.f32 %v1411, %v1448
        %v1476 = vadd.f32 %v1412, %v1450
        %v1477 = vadd.f32 %v1413, %v1452
        %v1478 = vadd.f32 %v1414, %v1454
        %v1479 = vadd.f32 %v1415, %v1456
        %v1480 = vadd.f32 %v1416, %v1458
        %v1481 = vadd.f32 %v1417, %v1460
        %v1482 = vadd.f32 %v1418, %v1462
        %v1483 = vadd.f32 %v1419, %v1464
        %v1484 = vadd.f32 %v1420, %v1466
        %v1485 = vadd.f32 %v1421, %v1468
        %v1486 = vadd.f32 %v1422, %v1470
        %1487 = vst.msk [vmem:[#allocation4] sm:$0xff] %vm1390, %v1471
        %1488 = vst.msk [vmem:[#allocation4 + $0x8] sm:$0xff] %vm1390, %v1472
        %1489 = vst.msk [vmem:[#allocation4 + $0x10] sm:$0xff] %vm1390, %v1473
        %1490 = vst.msk [vmem:[#allocation4 + $0x18] sm:$0xff] %vm1390, %v1474
        %1491 = vst.msk [vmem:[#allocation4 + $0x20] sm:$0xff] %vm1390, %v1475
        %1492 = vst.msk [vmem:[#allocation4 + $0x28] sm:$0xff] %vm1390, %v1476
        %1493 = vst.msk [vmem:[#allocation4 + $0x30] sm:$0xff] %vm1390, %v1477
        %1494 = vst.msk [vmem:[#allocation4 + $0x38] sm:$0xff] %vm1390, %v1478
        %1495 = vst.msk [vmem:[#allocation4 + $0x40] sm:$0xff] %vm1390, %v1479
        %1496 = vst.msk [vmem:[#allocation4 + $0x48] sm:$0xff] %vm1390, %v1480
        %1497 = vst.msk [vmem:[#allocation4 + $0x50] sm:$0xff] %vm1390, %v1481
        %1498 = vst.msk [vmem:[#allocation4 + $0x58] sm:$0xff] %vm1390, %v1482
        %1499 = vst.msk [vmem:[#allocation4 + $0x60] sm:$0xff] %vm1390, %v1483
        %1500 = vst.msk [vmem:[#allocation4 + $0x68] sm:$0xff] %vm1390, %v1484
        %1501 = vst.msk [vmem:[#allocation4 + $0x70] sm:$0xff] %vm1390, %v1485
        %1502 = vst.msk [vmem:[#allocation4 + $0x78] sm:$0xff] %vm1390, %v1486
        %v1503 = vld [vmem:[#allocation2] sm:$0xff]
        %v1504 = vld [vmem:[#allocation2 + $0x8] sm:$0xff]
        %v1505 = vld [vmem:[#allocation2 + $0x10] sm:$0xff]
        %v1506 = vld [vmem:[#allocation2 + $0x18] sm:$0xff]
        %v1507 = vld [vmem:[#allocation2 + $0x20] sm:$0xff]
        %v1508 = vld [vmem:[#allocation2 + $0x28] sm:$0xff]
        %v1509 = vld [vmem:[#allocation2 + $0x30] sm:$0xff]
        %v1510 = vld [vmem:[#allocation2 + $0x38] sm:$0xff]
        %v1511 = vld [vmem:[#allocation2 + $0x40] sm:$0xff]
        %v1512 = vld [vmem:[#allocation2 + $0x48] sm:$0xff]
        %v1513 = vld [vmem:[#allocation2 + $0x50] sm:$0xff]
        %v1514 = vld [vmem:[#allocation2 + $0x58] sm:$0xff]
        %v1515 = vld [vmem:[#allocation2 + $0x60] sm:$0xff]
        %v1516 = vld [vmem:[#allocation2 + $0x68] sm:$0xff]
        %v1517 = vld [vmem:[#allocation2 + $0x70] sm:$0xff]
        %v1518 = vld [vmem:[#allocation2 + $0x78] sm:$0xff]
        %v1519 = vand.u32 %v1252, 4294901760
        %1520 = vmatpush.xpose.msra.mxu0 %v1519
        %v1521 = vand.u32 %v1250, 4294901760
        %1522 = vmatpush.xpose.msra.mxu0 %v1521
        %v1523 = vand.u32 %v1247, 4294901760
        %1524 = vmatpush.xpose.msra.mxu0 %v1523
        %v1525 = vand.u32 %v1245, 4294901760
        %1526 = vmatpush.xpose.msra.mxu0 %v1525
        %v1527 = vand.u32 %v1242, 4294901760
        %1528 = vmatpush.xpose.msra.mxu0 %v1527
        %v1529 = vand.u32 %v1240, 4294901760
        %1530 = vmatpush.xpose.msra.mxu0 %v1529
        %v1531 = vand.u32 %v1237, 4294901760
        %1532 = vmatpush.xpose.msra.mxu0 %v1531
        %v1533 = vand.u32 %v1235, 4294901760
        %1534 = vmatpush.xpose.msra.mxu0 %v1533
        %v1535 = vand.u32 %v1232, 4294901760
        %1536 = vmatpush.xpose.msra.mxu0 %v1535
        %v1537 = vand.u32 %v1230, 4294901760
        %1538 = vmatpush.xpose.msra.mxu0 %v1537
        %v1539 = vand.u32 %v1227, 4294901760
        %1540 = vmatpush.xpose.msra.mxu0 %v1539
        %v1541 = vand.u32 %v1225, 4294901760
        %1542 = vmatpush.xpose.msra.mxu0 %v1541
        %v1543 = vand.u32 %v1222, 4294901760
        %1544 = vmatpush.xpose.msra.mxu0 %v1543
        %v1545 = vand.u32 %v1220, 4294901760
        %1546 = vmatpush.xpose.msra.mxu0 %v1545
        %v1547 = vand.u32 %v1217, 4294901760
        %1548 = vmatpush.xpose.msra.mxu0 %v1547
        %v1549 = vand.u32 %v1215, 4294901760
        %1550 = vmatpush.xpose.msra.mxu0 %v1549
        %v1551 = vand.u32 %v1175, 4294901760
        %v1552 = vsub.f32 %v1175, %v1551
        %v1553 = vand.u32 %v1552, 4294901760
        %v1554 = vsub.f32 %v1552, %v1553
        %v1555 = vand.u32 %v1554, 4294901760
        %1556 = vmatmul.f32.gmra.mxu0 %v1555
        %v1557 = vpop.f32.mrf.mxu0
        %v1558 = vadd.f32 0.0, %v1557
        %v1559 = vand.u32 %v1177, 4294901760
        %v1560 = vsub.f32 %v1177, %v1559
        %v1561 = vand.u32 %v1560, 4294901760
        %v1562 = vsub.f32 %v1560, %v1561
        %v1563 = vand.u32 %v1562, 4294901760
        %1564 = vmatmul.f32.gmra.mxu0 %v1563
        %v1565 = vpop.f32.mrf.mxu0
        %v1566 = vadd.f32 0.0, %v1565
        %v1567 = vand.u32 %v1180, 4294901760
        %v1568 = vsub.f32 %v1180, %v1567
        %v1569 = vand.u32 %v1568, 4294901760
        %v1570 = vsub.f32 %v1568, %v1569
        %v1571 = vand.u32 %v1570, 4294901760
        %1572 = vmatmul.f32.gmra.mxu0 %v1571
        %v1573 = vpop.f32.mrf.mxu0
        %v1574 = vadd.f32 0.0, %v1573
        %v1575 = vand.u32 %v1182, 4294901760
        %v1576 = vsub.f32 %v1182, %v1575
        %v1577 = vand.u32 %v1576, 4294901760
        %v1578 = vsub.f32 %v1576, %v1577
        %v1579 = vand.u32 %v1578, 4294901760
        %1580 = vmatmul.f32.gmra.mxu0 %v1579
        %v1581 = vpop.f32.mrf.mxu0
        %v1582 = vadd.f32 0.0, %v1581
        %v1583 = vand.u32 %v1185, 4294901760
        %v1584 = vsub.f32 %v1185, %v1583
        %v1585 = vand.u32 %v1584, 4294901760
        %v1586 = vsub.f32 %v1584, %v1585
        %v1587 = vand.u32 %v1586, 4294901760
        %1588 = vmatmul.f32.gmra.mxu0 %v1587
        %v1589 = vpop.f32.mrf.mxu0
        %v1590 = vadd.f32 0.0, %v1589
        %v1591 = vand.u32 %v1187, 4294901760
        %v1592 = vsub.f32 %v1187, %v1591
        %v1593 = vand.u32 %v1592, 4294901760
        %v1594 = vsub.f32 %v1592, %v1593
        %v1595 = vand.u32 %v1594, 4294901760
        %1596 = vmatmul.f32.gmra.mxu0 %v1595
        %v1597 = vpop.f32.mrf.mxu0
        %v1598 = vadd.f32 0.0, %v1597
        %v1599 = vand.u32 %v1190, 4294901760
        %v1600 = vsub.f32 %v1190, %v1599
        %v1601 = vand.u32 %v1600, 4294901760
        %v1602 = vsub.f32 %v1600, %v1601
        %v1603 = vand.u32 %v1602, 4294901760
        %1604 = vmatmul.f32.gmra.mxu0 %v1603
        %v1605 = vpop.f32.mrf.mxu0
        %v1606 = vadd.f32 0.0, %v1605
        %v1607 = vand.u32 %v1192, 4294901760
        %v1608 = vsub.f32 %v1192, %v1607
        %v1609 = vand.u32 %v1608, 4294901760
        %v1610 = vsub.f32 %v1608, %v1609
        %v1611 = vand.u32 %v1610, 4294901760
        %1612 = vmatmul.f32.gmra.mxu0 %v1611
        %v1613 = vpop.f32.mrf.mxu0
        %v1614 = vadd.f32 0.0, %v1613
        %v1615 = vand.u32 %v1195, 4294901760
        %v1616 = vsub.f32 %v1195, %v1615
        %v1617 = vand.u32 %v1616, 4294901760
        %v1618 = vsub.f32 %v1616, %v1617
        %v1619 = vand.u32 %v1618, 4294901760
        %1620 = vmatmul.f32.gmra.mxu0 %v1619
        %v1621 = vpop.f32.mrf.mxu0
        %v1622 = vadd.f32 0.0, %v1621
        %v1623 = vand.u32 %v1197, 4294901760
        %v1624 = vsub.f32 %v1197, %v1623
        %v1625 = vand.u32 %v1624, 4294901760
        %v1626 = vsub.f32 %v1624, %v1625
        %v1627 = vand.u32 %v1626, 4294901760
        %1628 = vmatmul.f32.gmra.mxu0 %v1627
        %v1629 = vpop.f32.mrf.mxu0
        %v1630 = vadd.f32 0.0, %v1629
        %v1631 = vand.u32 %v1200, 4294901760
        %v1632 = vsub.f32 %v1200, %v1631
        %v1633 = vand.u32 %v1632, 4294901760
        %v1634 = vsub.f32 %v1632, %v1633
        %v1635 = vand.u32 %v1634, 4294901760
        %1636 = vmatmul.f32.gmra.mxu0 %v1635
        %v1637 = vpop.f32.mrf.mxu0
        %v1638 = vadd.f32 0.0, %v1637
        %v1639 = vand.u32 %v1202, 4294901760
        %v1640 = vsub.f32 %v1202, %v1639
        %v1641 = vand.u32 %v1640, 4294901760
        %v1642 = vsub.f32 %v1640, %v1641
        %v1643 = vand.u32 %v1642, 4294901760
        %1644 = vmatmul.f32.gmra.mxu0 %v1643
        %v1645 = vpop.f32.mrf.mxu0
        %v1646 = vadd.f32 0.0, %v1645
        %v1647 = vand.u32 %v1205, 4294901760
        %v1648 = vsub.f32 %v1205, %v1647
        %v1649 = vand.u32 %v1648, 4294901760
        %v1650 = vsub.f32 %v1648, %v1649
        %v1651 = vand.u32 %v1650, 4294901760
        %1652 = vmatmul.f32.gmra.mxu0 %v1651
        %v1653 = vpop.f32.mrf.mxu0
        %v1654 = vadd.f32 0.0, %v1653
        %v1655 = vand.u32 %v1207, 4294901760
        %v1656 = vsub.f32 %v1207, %v1655
        %v1657 = vand.u32 %v1656, 4294901760
        %v1658 = vsub.f32 %v1656, %v1657
        %v1659 = vand.u32 %v1658, 4294901760
        %1660 = vmatmul.f32.gmra.mxu0 %v1659
        %v1661 = vpop.f32.mrf.mxu0
        %v1662 = vadd.f32 0.0, %v1661
        %v1663 = vand.u32 %v1210, 4294901760
        %v1664 = vsub.f32 %v1210, %v1663
        %v1665 = vand.u32 %v1664, 4294901760
        %v1666 = vsub.f32 %v1664, %v1665
        %v1667 = vand.u32 %v1666, 4294901760
        %1668 = vmatmul.f32.gmra.mxu0 %v1667
        %v1669 = vpop.f32.mrf.mxu0
        %v1670 = vadd.f32 0.0, %v1669
        %v1671 = vand.u32 %v1212, 4294901760
        %v1672 = vsub.f32 %v1212, %v1671
        %v1673 = vand.u32 %v1672, 4294901760
        %v1674 = vsub.f32 %v1672, %v1673
        %v1675 = vand.u32 %v1674, 4294901760
        %1676 = vmatmul.f32.gmra.mxu0 %v1675
        %v1677 = vpop.f32.mrf.mxu0
        %v1678 = vadd.f32 0.0, %v1677
        %1679 = vdwg.mxu0
        %v1680 = vand.u32 %v1252, 4294901760
        %v1681 = vsub.f32 %v1252, %v1680
        %v1682 = vand.u32 %v1681, 4294901760
        %v1683 = vsub.f32 %v1681, %v1682
        %v1684 = vand.u32 %v1683, 4294901760
        %1685 = vmatpush.xpose.msra.mxu0 %v1684
        %v1686 = vand.u32 %v1250, 4294901760
        %v1687 = vsub.f32 %v1250, %v1686
        %v1688 = vand.u32 %v1687, 4294901760
        %v1689 = vsub.f32 %v1687, %v1688
        %v1690 = vand.u32 %v1689, 4294901760
        %1691 = vmatpush.xpose.msra.mxu0 %v1690
        %v1692 = vand.u32 %v1247, 4294901760
        %v1693 = vsub.f32 %v1247, %v1692
        %v1694 = vand.u32 %v1693, 4294901760
        %v1695 = vsub.f32 %v1693, %v1694
        %v1696 = vand.u32 %v1695, 4294901760
        %1697 = vmatpush.xpose.msra.mxu0 %v1696
        %v1698 = vand.u32 %v1245, 4294901760
        %v1699 = vsub.f32 %v1245, %v1698
        %v1700 = vand.u32 %v1699, 4294901760
        %v1701 = vsub.f32 %v1699, %v1700
        %v1702 = vand.u32 %v1701, 4294901760
        %1703 = vmatpush.xpose.msra.mxu0 %v1702
        %v1704 = vand.u32 %v1242, 4294901760
        %v1705 = vsub.f32 %v1242, %v1704
        %v1706 = vand.u32 %v1705, 4294901760
        %v1707 = vsub.f32 %v1705, %v1706
        %v1708 = vand.u32 %v1707, 4294901760
        %1709 = vmatpush.xpose.msra.mxu0 %v1708
        %v1710 = vand.u32 %v1240, 4294901760
        %v1711 = vsub.f32 %v1240, %v1710
        %v1712 = vand.u32 %v1711, 4294901760
        %v1713 = vsub.f32 %v1711, %v1712
        %v1714 = vand.u32 %v1713, 4294901760
        %1715 = vmatpush.xpose.msra.mxu0 %v1714
        %v1716 = vand.u32 %v1237, 4294901760
        %v1717 = vsub.f32 %v1237, %v1716
        %v1718 = vand.u32 %v1717, 4294901760
        %v1719 = vsub.f32 %v1717, %v1718
        %v1720 = vand.u32 %v1719, 4294901760
        %1721 = vmatpush.xpose.msra.mxu0 %v1720
        %v1722 = vand.u32 %v1235, 4294901760
        %v1723 = vsub.f32 %v1235, %v1722
        %v1724 = vand.u32 %v1723, 4294901760
        %v1725 = vsub.f32 %v1723, %v1724
        %v1726 = vand.u32 %v1725, 4294901760
        %1727 = vmatpush.xpose.msra.mxu0 %v1726
        %v1728 = vand.u32 %v1232, 4294901760
        %v1729 = vsub.f32 %v1232, %v1728
        %v1730 = vand.u32 %v1729, 4294901760
        %v1731 = vsub.f32 %v1729, %v1730
        %v1732 = vand.u32 %v1731, 4294901760
        %1733 = vmatpush.xpose.msra.mxu0 %v1732
        %v1734 = vand.u32 %v1230, 4294901760
        %v1735 = vsub.f32 %v1230, %v1734
        %v1736 = vand.u32 %v1735, 4294901760
        %v1737 = vsub.f32 %v1735, %v1736
        %v1738 = vand.u32 %v1737, 4294901760
        %1739 = vmatpush.xpose.msra.mxu0 %v1738
        %v1740 = vand.u32 %v1227, 4294901760
        %v1741 = vsub.f32 %v1227, %v1740
        %v1742 = vand.u32 %v1741, 4294901760
        %v1743 = vsub.f32 %v1741, %v1742
        %v1744 = vand.u32 %v1743, 4294901760
        %1745 = vmatpush.xpose.msra.mxu0 %v1744
        %v1746 = vand.u32 %v1225, 4294901760
        %v1747 = vsub.f32 %v1225, %v1746
        %v1748 = vand.u32 %v1747, 4294901760
        %v1749 = vsub.f32 %v1747, %v1748
        %v1750 = vand.u32 %v1749, 4294901760
        %1751 = vmatpush.xpose.msra.mxu0 %v1750
        %v1752 = vand.u32 %v1222, 4294901760
        %v1753 = vsub.f32 %v1222, %v1752
        %v1754 = vand.u32 %v1753, 4294901760
        %v1755 = vsub.f32 %v1753, %v1754
        %v1756 = vand.u32 %v1755, 4294901760
        %1757 = vmatpush.xpose.msra.mxu0 %v1756
        %v1758 = vand.u32 %v1220, 4294901760
        %v1759 = vsub.f32 %v1220, %v1758
        %v1760 = vand.u32 %v1759, 4294901760
        %v1761 = vsub.f32 %v1759, %v1760
        %v1762 = vand.u32 %v1761, 4294901760
        %1763 = vmatpush.xpose.msra.mxu0 %v1762
        %v1764 = vand.u32 %v1217, 4294901760
        %v1765 = vsub.f32 %v1217, %v1764
        %v1766 = vand.u32 %v1765, 4294901760
        %v1767 = vsub.f32 %v1765, %v1766
        %v1768 = vand.u32 %v1767, 4294901760
        %1769 = vmatpush.xpose.msra.mxu0 %v1768
        %v1770 = vand.u32 %v1215, 4294901760
        %v1771 = vsub.f32 %v1215, %v1770
        %v1772 = vand.u32 %v1771, 4294901760
        %v1773 = vsub.f32 %v1771, %v1772
        %v1774 = vand.u32 %v1773, 4294901760
        %1775 = vmatpush.xpose.msra.mxu0 %v1774
        %v1776 = vand.u32 %v1175, 4294901760
        %1777 = vmatmul.f32.gmra.mxu0 %v1776
        %v1778 = vpop.f32.mrf.mxu0
        %v1779 = vadd.f32 %v1558, %v1778
        %v1780 = vand.u32 %v1177, 4294901760
        %1781 = vmatmul.f32.gmra.mxu0 %v1780
        %v1782 = vpop.f32.mrf.mxu0
        %v1783 = vadd.f32 %v1566, %v1782
        %v1784 = vand.u32 %v1180, 4294901760
        %1785 = vmatmul.f32.gmra.mxu0 %v1784
        %v1786 = vpop.f32.mrf.mxu0
        %v1787 = vadd.f32 %v1574, %v1786
        %v1788 = vand.u32 %v1182, 4294901760
        %1789 = vmatmul.f32.gmra.mxu0 %v1788
        %v1790 = vpop.f32.mrf.mxu0
        %v1791 = vadd.f32 %v1582, %v1790
        %v1792 = vand.u32 %v1185, 4294901760
        %1793 = vmatmul.f32.gmra.mxu0 %v1792
        %v1794 = vpop.f32.mrf.mxu0
        %v1795 = vadd.f32 %v1590, %v1794
        %v1796 = vand.u32 %v1187, 4294901760
        %1797 = vmatmul.f32.gmra.mxu0 %v1796
        %v1798 = vpop.f32.mrf.mxu0
        %v1799 = vadd.f32 %v1598, %v1798
        %v1800 = vand.u32 %v1190, 4294901760
        %1801 = vmatmul.f32.gmra.mxu0 %v1800
        %v1802 = vpop.f32.mrf.mxu0
        %v1803 = vadd.f32 %v1606, %v1802
        %v1804 = vand.u32 %v1192, 4294901760
        %1805 = vmatmul.f32.gmra.mxu0 %v1804
        %v1806 = vpop.f32.mrf.mxu0
        %v1807 = vadd.f32 %v1614, %v1806
        %v1808 = vand.u32 %v1195, 4294901760
        %1809 = vmatmul.f32.gmra.mxu0 %v1808
        %v1810 = vpop.f32.mrf.mxu0
        %v1811 = vadd.f32 %v1622, %v1810
        %v1812 = vand.u32 %v1197, 4294901760
        %1813 = vmatmul.f32.gmra.mxu0 %v1812
        %v1814 = vpop.f32.mrf.mxu0
        %v1815 = vadd.f32 %v1630, %v1814
        %v1816 = vand.u32 %v1200, 4294901760
        %1817 = vmatmul.f32.gmra.mxu0 %v1816
        %v1818 = vpop.f32.mrf.mxu0
        %v1819 = vadd.f32 %v1638, %v1818
        %v1820 = vand.u32 %v1202, 4294901760
        %1821 = vmatmul.f32.gmra.mxu0 %v1820
        %v1822 = vpop.f32.mrf.mxu0
        %v1823 = vadd.f32 %v1646, %v1822
        %v1824 = vand.u32 %v1205, 4294901760
        %1825 = vmatmul.f32.gmra.mxu0 %v1824
        %v1826 = vpop.f32.mrf.mxu0
        %v1827 = vadd.f32 %v1654, %v1826
        %v1828 = vand.u32 %v1207, 4294901760
        %1829 = vmatmul.f32.gmra.mxu0 %v1828
        %v1830 = vpop.f32.mrf.mxu0
        %v1831 = vadd.f32 %v1662, %v1830
        %v1832 = vand.u32 %v1210, 4294901760
        %1833 = vmatmul.f32.gmra.mxu0 %v1832
        %v1834 = vpop.f32.mrf.mxu0
        %v1835 = vadd.f32 %v1670, %v1834
        %v1836 = vand.u32 %v1212, 4294901760
        %1837 = vmatmul.f32.gmra.mxu0 %v1836
        %v1838 = vpop.f32.mrf.mxu0
        %v1839 = vadd.f32 %v1678, %v1838
        %1840 = vdwg.mxu0
        %v1841 = vand.u32 %v1252, 4294901760
        %v1842 = vsub.f32 %v1252, %v1841
        %1843 = vmatpush.xpose.msra.mxu0 %v1842
        %v1844 = vand.u32 %v1250, 4294901760
        %v1845 = vsub.f32 %v1250, %v1844
        %1846 = vmatpush.xpose.msra.mxu0 %v1845
        %v1847 = vand.u32 %v1247, 4294901760
        %v1848 = vsub.f32 %v1247, %v1847
        %1849 = vmatpush.xpose.msra.mxu0 %v1848
        %v1850 = vand.u32 %v1245, 4294901760
        %v1851 = vsub.f32 %v1245, %v1850
        %1852 = vmatpush.xpose.msra.mxu0 %v1851
        %v1853 = vand.u32 %v1242, 4294901760
        %v1854 = vsub.f32 %v1242, %v1853
        %1855 = vmatpush.xpose.msra.mxu0 %v1854
        %v1856 = vand.u32 %v1240, 4294901760
        %v1857 = vsub.f32 %v1240, %v1856
        %1858 = vmatpush.xpose.msra.mxu0 %v1857
        %v1859 = vand.u32 %v1237, 4294901760
        %v1860 = vsub.f32 %v1237, %v1859
        %1861 = vmatpush.xpose.msra.mxu0 %v1860
        %v1862 = vand.u32 %v1235, 4294901760
        %v1863 = vsub.f32 %v1235, %v1862
        %1864 = vmatpush.xpose.msra.mxu0 %v1863
        %v1865 = vand.u32 %v1232, 4294901760
        %v1866 = vsub.f32 %v1232, %v1865
        %1867 = vmatpush.xpose.msra.mxu0 %v1866
        %v1868 = vand.u32 %v1230, 4294901760
        %v1869 = vsub.f32 %v1230, %v1868
        %1870 = vmatpush.xpose.msra.mxu0 %v1869
        %v1871 = vand.u32 %v1227, 4294901760
        %v1872 = vsub.f32 %v1227, %v1871
        %1873 = vmatpush.xpose.msra.mxu0 %v1872
        %v1874 = vand.u32 %v1225, 4294901760
        %v1875 = vsub.f32 %v1225, %v1874
        %1876 = vmatpush.xpose.msra.mxu0 %v1875
        %v1877 = vand.u32 %v1222, 4294901760
        %v1878 = vsub.f32 %v1222, %v1877
        %1879 = vmatpush.xpose.msra.mxu0 %v1878
        %v1880 = vand.u32 %v1220, 4294901760
        %v1881 = vsub.f32 %v1220, %v1880
        %1882 = vmatpush.xpose.msra.mxu0 %v1881
        %v1883 = vand.u32 %v1217, 4294901760
        %v1884 = vsub.f32 %v1217, %v1883
        %1885 = vmatpush.xpose.msra.mxu0 %v1884
        %v1886 = vand.u32 %v1215, 4294901760
        %v1887 = vsub.f32 %v1215, %v1886
        %1888 = vmatpush.xpose.msra.mxu0 %v1887
        %v1889 = vand.u32 %v1175, 4294901760
        %v1890 = vsub.f32 %v1175, %v1889
        %1891 = vmatmul.f32.gmra.mxu0 %v1890
        %v1892 = vpop.f32.mrf.mxu0
        %v1893 = vadd.f32 %v1779, %v1892
        %v1894 = vand.u32 %v1177, 4294901760
        %v1895 = vsub.f32 %v1177, %v1894
        %1896 = vmatmul.f32.gmra.mxu0 %v1895
        %v1897 = vpop.f32.mrf.mxu0
        %v1898 = vadd.f32 %v1783, %v1897
        %v1899 = vand.u32 %v1180, 4294901760
        %v1900 = vsub.f32 %v1180, %v1899
        %1901 = vmatmul.f32.gmra.mxu0 %v1900
        %v1902 = vpop.f32.mrf.mxu0
        %v1903 = vadd.f32 %v1787, %v1902
        %v1904 = vand.u32 %v1182, 4294901760
        %v1905 = vsub.f32 %v1182, %v1904
        %1906 = vmatmul.f32.gmra.mxu0 %v1905
        %v1907 = vpop.f32.mrf.mxu0
        %v1908 = vadd.f32 %v1791, %v1907
        %v1909 = vand.u32 %v1185, 4294901760
        %v1910 = vsub.f32 %v1185, %v1909
        %1911 = vmatmul.f32.gmra.mxu0 %v1910
        %v1912 = vpop.f32.mrf.mxu0
        %v1913 = vadd.f32 %v1795, %v1912
        %v1914 = vand.u32 %v1187, 4294901760
        %v1915 = vsub.f32 %v1187, %v1914
        %1916 = vmatmul.f32.gmra.mxu0 %v1915
        %v1917 = vpop.f32.mrf.mxu0
        %v1918 = vadd.f32 %v1799, %v1917
        %v1919 = vand.u32 %v1190, 4294901760
        %v1920 = vsub.f32 %v1190, %v1919
        %1921 = vmatmul.f32.gmra.mxu0 %v1920
        %v1922 = vpop.f32.mrf.mxu0
        %v1923 = vadd.f32 %v1803, %v1922
        %v1924 = vand.u32 %v1192, 4294901760
        %v1925 = vsub.f32 %v1192, %v1924
        %1926 = vmatmul.f32.gmra.mxu0 %v1925
        %v1927 = vpop.f32.mrf.mxu0
        %v1928 = vadd.f32 %v1807, %v1927
        %v1929 = vand.u32 %v1195, 4294901760
        %v1930 = vsub.f32 %v1195, %v1929
        %1931 = vmatmul.f32.gmra.mxu0 %v1930
        %v1932 = vpop.f32.mrf.mxu0
        %v1933 = vadd.f32 %v1811, %v1932
        %v1934 = vand.u32 %v1197, 4294901760
        %v1935 = vsub.f32 %v1197, %v1934
        %1936 = vmatmul.f32.gmra.mxu0 %v1935
        %v1937 = vpop.f32.mrf.mxu0
        %v1938 = vadd.f32 %v1815, %v1937
        %v1939 = vand.u32 %v1200, 4294901760
        %v1940 = vsub.f32 %v1200, %v1939
        %1941 = vmatmul.f32.gmra.mxu0 %v1940
        %v1942 = vpop.f32.mrf.mxu0
        %v1943 = vadd.f32 %v1819, %v1942
        %v1944 = vand.u32 %v1202, 4294901760
        %v1945 = vsub.f32 %v1202, %v1944
        %1946 = vmatmul.f32.gmra.mxu0 %v1945
        %v1947 = vpop.f32.mrf.mxu0
        %v1948 = vadd.f32 %v1823, %v1947
        %v1949 = vand.u32 %v1205, 4294901760
        %v1950 = vsub.f32 %v1205, %v1949
        %1951 = vmatmul.f32.gmra.mxu0 %v1950
        %v1952 = vpop.f32.mrf.mxu0
        %v1953 = vadd.f32 %v1827, %v1952
        %v1954 = vand.u32 %v1207, 4294901760
        %v1955 = vsub.f32 %v1207, %v1954
        %1956 = vmatmul.f32.gmra.mxu0 %v1955
        %v1957 = vpop.f32.mrf.mxu0
        %v1958 = vadd.f32 %v1831, %v1957
        %v1959 = vand.u32 %v1210, 4294901760
        %v1960 = vsub.f32 %v1210, %v1959
        %1961 = vmatmul.f32.gmra.mxu0 %v1960
        %v1962 = vpop.f32.mrf.mxu0
        %v1963 = vadd.f32 %v1835, %v1962
        %v1964 = vand.u32 %v1212, 4294901760
        %v1965 = vsub.f32 %v1212, %v1964
        %1966 = vmatmul.f32.gmra.mxu0 %v1965
        %v1967 = vpop.f32.mrf.mxu0
        %v1968 = vadd.f32 %v1839, %v1967
        %1969 = vdwg.mxu0
        %v1970 = vand.u32 %v1252, 4294901760
        %1971 = vmatpush.xpose.msra.mxu0 %v1970
        %v1972 = vand.u32 %v1250, 4294901760
        %1973 = vmatpush.xpose.msra.mxu0 %v1972
        %v1974 = vand.u32 %v1247, 4294901760
        %1975 = vmatpush.xpose.msra.mxu0 %v1974
        %v1976 = vand.u32 %v1245, 4294901760
        %1977 = vmatpush.xpose.msra.mxu0 %v1976
        %v1978 = vand.u32 %v1242, 4294901760
        %1979 = vmatpush.xpose.msra.mxu0 %v1978
        %v1980 = vand.u32 %v1240, 4294901760
        %1981 = vmatpush.xpose.msra.mxu0 %v1980
        %v1982 = vand.u32 %v1237, 4294901760
        %1983 = vmatpush.xpose.msra.mxu0 %v1982
        %v1984 = vand.u32 %v1235, 4294901760
        %1985 = vmatpush.xpose.msra.mxu0 %v1984
        %v1986 = vand.u32 %v1232, 4294901760
        %1987 = vmatpush.xpose.msra.mxu0 %v1986
        %v1988 = vand.u32 %v1230, 4294901760
        %1989 = vmatpush.xpose.msra.mxu0 %v1988
        %v1990 = vand.u32 %v1227, 4294901760
        %1991 = vmatpush.xpose.msra.mxu0 %v1990
        %v1992 = vand.u32 %v1225, 4294901760
        %1993 = vmatpush.xpose.msra.mxu0 %v1992
        %v1994 = vand.u32 %v1222, 4294901760
        %1995 = vmatpush.xpose.msra.mxu0 %v1994
        %v1996 = vand.u32 %v1220, 4294901760
        %1997 = vmatpush.xpose.msra.mxu0 %v1996
        %v1998 = vand.u32 %v1217, 4294901760
        %1999 = vmatpush.xpose.msra.mxu0 %v1998
        %v2000 = vand.u32 %v1215, 4294901760
        %2001 = vmatpush.xpose.msra.mxu0 %v2000
        %v2002 = vand.u32 %v1175, 4294901760
        %v2003 = vsub.f32 %v1175, %v2002
        %v2004 = vand.u32 %v2003, 4294901760
        %2005 = vmatmul.f32.gmra.mxu0 %v2004
        %v2006 = vpop.f32.mrf.mxu0
        %v2007 = vadd.f32 %v1893, %v2006
        %v2008 = vand.u32 %v1177, 4294901760
        %v2009 = vsub.f32 %v1177, %v2008
        %v2010 = vand.u32 %v2009, 4294901760
        %2011 = vmatmul.f32.gmra.mxu0 %v2010
        %v2012 = vpop.f32.mrf.mxu0
        %v2013 = vadd.f32 %v1898, %v2012
        %v2014 = vand.u32 %v1180, 4294901760
        %v2015 = vsub.f32 %v1180, %v2014
        %v2016 = vand.u32 %v2015, 4294901760
        %2017 = vmatmul.f32.gmra.mxu0 %v2016
        %v2018 = vpop.f32.mrf.mxu0
        %v2019 = vadd.f32 %v1903, %v2018
        %v2020 = vand.u32 %v1182, 4294901760
        %v2021 = vsub.f32 %v1182, %v2020
        %v2022 = vand.u32 %v2021, 4294901760
        %2023 = vmatmul.f32.gmra.mxu0 %v2022
        %v2024 = vpop.f32.mrf.mxu0
        %v2025 = vadd.f32 %v1908, %v2024
        %v2026 = vand.u32 %v1185, 4294901760
        %v2027 = vsub.f32 %v1185, %v2026
        %v2028 = vand.u32 %v2027, 4294901760
        %2029 = vmatmul.f32.gmra.mxu0 %v2028
        %v2030 = vpop.f32.mrf.mxu0
        %v2031 = vadd.f32 %v1913, %v2030
        %v2032 = vand.u32 %v1187, 4294901760
        %v2033 = vsub.f32 %v1187, %v2032
        %v2034 = vand.u32 %v2033, 4294901760
        %2035 = vmatmul.f32.gmra.mxu0 %v2034
        %v2036 = vpop.f32.mrf.mxu0
        %v2037 = vadd.f32 %v1918, %v2036
        %v2038 = vand.u32 %v1190, 4294901760
        %v2039 = vsub.f32 %v1190, %v2038
        %v2040 = vand.u32 %v2039, 4294901760
        %2041 = vmatmul.f32.gmra.mxu0 %v2040
        %v2042 = vpop.f32.mrf.mxu0
        %v2043 = vadd.f32 %v1923, %v2042
        %v2044 = vand.u32 %v1192, 4294901760
        %v2045 = vsub.f32 %v1192, %v2044
        %v2046 = vand.u32 %v2045, 4294901760
        %2047 = vmatmul.f32.gmra.mxu0 %v2046
        %v2048 = vpop.f32.mrf.mxu0
        %v2049 = vadd.f32 %v1928, %v2048
        %v2050 = vand.u32 %v1195, 4294901760
        %v2051 = vsub.f32 %v1195, %v2050
        %v2052 = vand.u32 %v2051, 4294901760
        %2053 = vmatmul.f32.gmra.mxu0 %v2052
        %v2054 = vpop.f32.mrf.mxu0
        %v2055 = vadd.f32 %v1933, %v2054
        %v2056 = vand.u32 %v1197, 4294901760
        %v2057 = vsub.f32 %v1197, %v2056
        %v2058 = vand.u32 %v2057, 4294901760
        %2059 = vmatmul.f32.gmra.mxu0 %v2058
        %v2060 = vpop.f32.mrf.mxu0
        %v2061 = vadd.f32 %v1938, %v2060
        %v2062 = vand.u32 %v1200, 4294901760
        %v2063 = vsub.f32 %v1200, %v2062
        %v2064 = vand.u32 %v2063, 4294901760
        %2065 = vmatmul.f32.gmra.mxu0 %v2064
        %v2066 = vpop.f32.mrf.mxu0
        %v2067 = vadd.f32 %v1943, %v2066
        %v2068 = vand.u32 %v1202, 4294901760
        %v2069 = vsub.f32 %v1202, %v2068
        %v2070 = vand.u32 %v2069, 4294901760
        %2071 = vmatmul.f32.gmra.mxu0 %v2070
        %v2072 = vpop.f32.mrf.mxu0
        %v2073 = vadd.f32 %v1948, %v2072
        %v2074 = vand.u32 %v1205, 4294901760
        %v2075 = vsub.f32 %v1205, %v2074
        %v2076 = vand.u32 %v2075, 4294901760
        %2077 = vmatmul.f32.gmra.mxu0 %v2076
        %v2078 = vpop.f32.mrf.mxu0
        %v2079 = vadd.f32 %v1953, %v2078
        %v2080 = vand.u32 %v1207, 4294901760
        %v2081 = vsub.f32 %v1207, %v2080
        %v2082 = vand.u32 %v2081, 4294901760
        %2083 = vmatmul.f32.gmra.mxu0 %v2082
        %v2084 = vpop.f32.mrf.mxu0
        %v2085 = vadd.f32 %v1958, %v2084
        %v2086 = vand.u32 %v1210, 4294901760
        %v2087 = vsub.f32 %v1210, %v2086
        %v2088 = vand.u32 %v2087, 4294901760
        %2089 = vmatmul.f32.gmra.mxu0 %v2088
        %v2090 = vpop.f32.mrf.mxu0
        %v2091 = vadd.f32 %v1963, %v2090
        %v2092 = vand.u32 %v1212, 4294901760
        %v2093 = vsub.f32 %v1212, %v2092
        %v2094 = vand.u32 %v2093, 4294901760
        %2095 = vmatmul.f32.gmra.mxu0 %v2094
        %v2096 = vpop.f32.mrf.mxu0
        %v2097 = vadd.f32 %v1968, %v2096
        %2098 = vdwg.mxu0
        %v2099 = vand.u32 %v1252, 4294901760
        %v2100 = vsub.f32 %v1252, %v2099
        %v2101 = vand.u32 %v2100, 4294901760
        %2102 = vmatpush.xpose.msra.mxu0 %v2101
        %v2103 = vand.u32 %v1250, 4294901760
        %v2104 = vsub.f32 %v1250, %v2103
        %v2105 = vand.u32 %v2104, 4294901760
        %2106 = vmatpush.xpose.msra.mxu0 %v2105
        %v2107 = vand.u32 %v1247, 4294901760
        %v2108 = vsub.f32 %v1247, %v2107
        %v2109 = vand.u32 %v2108, 4294901760
        %2110 = vmatpush.xpose.msra.mxu0 %v2109
        %v2111 = vand.u32 %v1245, 4294901760
        %v2112 = vsub.f32 %v1245, %v2111
        %v2113 = vand.u32 %v2112, 4294901760
        %2114 = vmatpush.xpose.msra.mxu0 %v2113
        %v2115 = vand.u32 %v1242, 4294901760
        %v2116 = vsub.f32 %v1242, %v2115
        %v2117 = vand.u32 %v2116, 4294901760
        %2118 = vmatpush.xpose.msra.mxu0 %v2117
        %v2119 = vand.u32 %v1240, 4294901760
        %v2120 = vsub.f32 %v1240, %v2119
        %v2121 = vand.u32 %v2120, 4294901760
        %2122 = vmatpush.xpose.msra.mxu0 %v2121
        %v2123 = vand.u32 %v1237, 4294901760
        %v2124 = vsub.f32 %v1237, %v2123
        %v2125 = vand.u32 %v2124, 4294901760
        %2126 = vmatpush.xpose.msra.mxu0 %v2125
        %v2127 = vand.u32 %v1235, 4294901760
        %v2128 = vsub.f32 %v1235, %v2127
        %v2129 = vand.u32 %v2128, 4294901760
        %2130 = vmatpush.xpose.msra.mxu0 %v2129
        %v2131 = vand.u32 %v1232, 4294901760
        %v2132 = vsub.f32 %v1232, %v2131
        %v2133 = vand.u32 %v2132, 4294901760
        %2134 = vmatpush.xpose.msra.mxu0 %v2133
        %v2135 = vand.u32 %v1230, 4294901760
        %v2136 = vsub.f32 %v1230, %v2135
        %v2137 = vand.u32 %v2136, 4294901760
        %2138 = vmatpush.xpose.msra.mxu0 %v2137
        %v2139 = vand.u32 %v1227, 4294901760
        %v2140 = vsub.f32 %v1227, %v2139
        %v2141 = vand.u32 %v2140, 4294901760
        %2142 = vmatpush.xpose.msra.mxu0 %v2141
        %v2143 = vand.u32 %v1225, 4294901760
        %v2144 = vsub.f32 %v1225, %v2143
        %v2145 = vand.u32 %v2144, 4294901760
        %2146 = vmatpush.xpose.msra.mxu0 %v2145
        %v2147 = vand.u32 %v1222, 4294901760
        %v2148 = vsub.f32 %v1222, %v2147
        %v2149 = vand.u32 %v2148, 4294901760
        %2150 = vmatpush.xpose.msra.mxu0 %v2149
        %v2151 = vand.u32 %v1220, 4294901760
        %v2152 = vsub.f32 %v1220, %v2151
        %v2153 = vand.u32 %v2152, 4294901760
        %2154 = vmatpush.xpose.msra.mxu0 %v2153
        %v2155 = vand.u32 %v1217, 4294901760
        %v2156 = vsub.f32 %v1217, %v2155
        %v2157 = vand.u32 %v2156, 4294901760
        %2158 = vmatpush.xpose.msra.mxu0 %v2157
        %v2159 = vand.u32 %v1215, 4294901760
        %v2160 = vsub.f32 %v1215, %v2159
        %v2161 = vand.u32 %v2160, 4294901760
        %2162 = vmatpush.xpose.msra.mxu0 %v2161
        %v2163 = vand.u32 %v1175, 4294901760
        %2164 = vmatmul.f32.gmra.mxu0 %v2163
        %v2165 = vpop.f32.mrf.mxu0
        %v2166 = vadd.f32 %v2007, %v2165
        %v2167 = vand.u32 %v1177, 4294901760
        %2168 = vmatmul.f32.gmra.mxu0 %v2167
        %v2169 = vpop.f32.mrf.mxu0
        %v2170 = vadd.f32 %v2013, %v2169
        %v2171 = vand.u32 %v1180, 4294901760
        %2172 = vmatmul.f32.gmra.mxu0 %v2171
        %v2173 = vpop.f32.mrf.mxu0
        %v2174 = vadd.f32 %v2019, %v2173
        %v2175 = vand.u32 %v1182, 4294901760
        %2176 = vmatmul.f32.gmra.mxu0 %v2175
        %v2177 = vpop.f32.mrf.mxu0
        %v2178 = vadd.f32 %v2025, %v2177
        %v2179 = vand.u32 %v1185, 4294901760
        %2180 = vmatmul.f32.gmra.mxu0 %v2179
        %v2181 = vpop.f32.mrf.mxu0
        %v2182 = vadd.f32 %v2031, %v2181
        %v2183 = vand.u32 %v1187, 4294901760
        %2184 = vmatmul.f32.gmra.mxu0 %v2183
        %v2185 = vpop.f32.mrf.mxu0
        %v2186 = vadd.f32 %v2037, %v2185
        %v2187 = vand.u32 %v1190, 4294901760
        %2188 = vmatmul.f32.gmra.mxu0 %v2187
        %v2189 = vpop.f32.mrf.mxu0
        %v2190 = vadd.f32 %v2043, %v2189
        %v2191 = vand.u32 %v1192, 4294901760
        %2192 = vmatmul.f32.gmra.mxu0 %v2191
        %v2193 = vpop.f32.mrf.mxu0
        %v2194 = vadd.f32 %v2049, %v2193
        %v2195 = vand.u32 %v1195, 4294901760
        %2196 = vmatmul.f32.gmra.mxu0 %v2195
        %v2197 = vpop.f32.mrf.mxu0
        %v2198 = vadd.f32 %v2055, %v2197
        %v2199 = vand.u32 %v1197, 4294901760
        %2200 = vmatmul.f32.gmra.mxu0 %v2199
        %v2201 = vpop.f32.mrf.mxu0
        %v2202 = vadd.f32 %v2061, %v2201
        %v2203 = vand.u32 %v1200, 4294901760
        %2204 = vmatmul.f32.gmra.mxu0 %v2203
        %v2205 = vpop.f32.mrf.mxu0
        %v2206 = vadd.f32 %v2067, %v2205
        %v2207 = vand.u32 %v1202, 4294901760
        %2208 = vmatmul.f32.gmra.mxu0 %v2207
        %v2209 = vpop.f32.mrf.mxu0
        %v2210 = vadd.f32 %v2073, %v2209
        %v2211 = vand.u32 %v1205, 4294901760
        %2212 = vmatmul.f32.gmra.mxu0 %v2211
        %v2213 = vpop.f32.mrf.mxu0
        %v2214 = vadd.f32 %v2079, %v2213
        %v2215 = vand.u32 %v1207, 4294901760
        %2216 = vmatmul.f32.gmra.mxu0 %v2215
        %v2217 = vpop.f32.mrf.mxu0
        %v2218 = vadd.f32 %v2085, %v2217
        %v2219 = vand.u32 %v1210, 4294901760
        %2220 = vmatmul.f32.gmra.mxu0 %v2219
        %v2221 = vpop.f32.mrf.mxu0
        %v2222 = vadd.f32 %v2091, %v2221
        %v2223 = vand.u32 %v1212, 4294901760
        %2224 = vmatmul.f32.gmra.mxu0 %v2223
        %v2225 = vpop.f32.mrf.mxu0
        %v2226 = vadd.f32 %v2097, %v2225
        %2227 = vdwg.mxu0
        %v2228 = vand.u32 %v1252, 4294901760
        %2229 = vmatpush.xpose.msra.mxu0 %v2228
        %v2230 = vand.u32 %v1250, 4294901760
        %2231 = vmatpush.xpose.msra.mxu0 %v2230
        %v2232 = vand.u32 %v1247, 4294901760
        %2233 = vmatpush.xpose.msra.mxu0 %v2232
        %v2234 = vand.u32 %v1245, 4294901760
        %2235 = vmatpush.xpose.msra.mxu0 %v2234
        %v2236 = vand.u32 %v1242, 4294901760
        %2237 = vmatpush.xpose.msra.mxu0 %v2236
        %v2238 = vand.u32 %v1240, 4294901760
        %2239 = vmatpush.xpose.msra.mxu0 %v2238
        %v2240 = vand.u32 %v1237, 4294901760
        %2241 = vmatpush.xpose.msra.mxu0 %v2240
        %v2242 = vand.u32 %v1235, 4294901760
        %2243 = vmatpush.xpose.msra.mxu0 %v2242
        %v2244 = vand.u32 %v1232, 4294901760
        %2245 = vmatpush.xpose.msra.mxu0 %v2244
        %v2246 = vand.u32 %v1230, 4294901760
        %2247 = vmatpush.xpose.msra.mxu0 %v2246
        %v2248 = vand.u32 %v1227, 4294901760
        %2249 = vmatpush.xpose.msra.mxu0 %v2248
        %v2250 = vand.u32 %v1225, 4294901760
        %2251 = vmatpush.xpose.msra.mxu0 %v2250
        %v2252 = vand.u32 %v1222, 4294901760
        %2253 = vmatpush.xpose.msra.mxu0 %v2252
        %v2254 = vand.u32 %v1220, 4294901760
        %2255 = vmatpush.xpose.msra.mxu0 %v2254
        %v2256 = vand.u32 %v1217, 4294901760
        %2257 = vmatpush.xpose.msra.mxu0 %v2256
        %v2258 = vand.u32 %v1215, 4294901760
        %2259 = vmatpush.xpose.msra.mxu0 %v2258
        %v2260 = vand.u32 %v1175, 4294901760
        %2261 = vmatmul.f32.gmra.mxu0 %v2260
        %v2262 = vpop.f32.mrf.mxu0
        %v2263 = vadd.f32 %v2166, %v2262
        %v2264 = vand.u32 %v1177, 4294901760
        %2265 = vmatmul.f32.gmra.mxu0 %v2264
        %v2266 = vpop.f32.mrf.mxu0
        %v2267 = vadd.f32 %v2170, %v2266
        %v2268 = vand.u32 %v1180, 4294901760
        %2269 = vmatmul.f32.gmra.mxu0 %v2268
        %v2270 = vpop.f32.mrf.mxu0
        %v2271 = vadd.f32 %v2174, %v2270
        %v2272 = vand.u32 %v1182, 4294901760
        %2273 = vmatmul.f32.gmra.mxu0 %v2272
        %v2274 = vpop.f32.mrf.mxu0
        %v2275 = vadd.f32 %v2178, %v2274
        %v2276 = vand.u32 %v1185, 4294901760
        %2277 = vmatmul.f32.gmra.mxu0 %v2276
        %v2278 = vpop.f32.mrf.mxu0
        %v2279 = vadd.f32 %v2182, %v2278
        %v2280 = vand.u32 %v1187, 4294901760
        %2281 = vmatmul.f32.gmra.mxu0 %v2280
        %v2282 = vpop.f32.mrf.mxu0
        %v2283 = vadd.f32 %v2186, %v2282
        %v2284 = vand.u32 %v1190, 4294901760
        %2285 = vmatmul.f32.gmra.mxu0 %v2284
        %v2286 = vpop.f32.mrf.mxu0
        %v2287 = vadd.f32 %v2190, %v2286
        %v2288 = vand.u32 %v1192, 4294901760
        %2289 = vmatmul.f32.gmra.mxu0 %v2288
        %v2290 = vpop.f32.mrf.mxu0
        %v2291 = vadd.f32 %v2194, %v2290
        %v2292 = vand.u32 %v1195, 4294901760
        %2293 = vmatmul.f32.gmra.mxu0 %v2292
        %v2294 = vpop.f32.mrf.mxu0
        %v2295 = vadd.f32 %v2198, %v2294
        %v2296 = vand.u32 %v1197, 4294901760
        %2297 = vmatmul.f32.gmra.mxu0 %v2296
        %v2298 = vpop.f32.mrf.mxu0
        %v2299 = vadd.f32 %v2202, %v2298
        %v2300 = vand.u32 %v1200, 4294901760
        %2301 = vmatmul.f32.gmra.mxu0 %v2300
        %v2302 = vpop.f32.mrf.mxu0
        %v2303 = vadd.f32 %v2206, %v2302
        %v2304 = vand.u32 %v1202, 4294901760
        %2305 = vmatmul.f32.gmra.mxu0 %v2304
        %v2306 = vpop.f32.mrf.mxu0
        %v2307 = vadd.f32 %v2210, %v2306
        %v2308 = vand.u32 %v1205, 4294901760
        %2309 = vmatmul.f32.gmra.mxu0 %v2308
        %v2310 = vpop.f32.mrf.mxu0
        %v2311 = vadd.f32 %v2214, %v2310
        %v2312 = vand.u32 %v1207, 4294901760
        %2313 = vmatmul.f32.gmra.mxu0 %v2312
        %v2314 = vpop.f32.mrf.mxu0
        %v2315 = vadd.f32 %v2218, %v2314
        %v2316 = vand.u32 %v1210, 4294901760
        %2317 = vmatmul.f32.gmra.mxu0 %v2316
        %v2318 = vpop.f32.mrf.mxu0
        %v2319 = vadd.f32 %v2222, %v2318
        %v2320 = vand.u32 %v1212, 4294901760
        %2321 = vmatmul.f32.gmra.mxu0 %v2320
        %v2322 = vpop.f32.mrf.mxu0
        %v2323 = vadd.f32 %v2226, %v2322
        %2324 = vdwg.mxu0
        %v2325 = vadd.f32 %v1503, %v2263
        %v2326 = vadd.f32 %v1504, %v2267
        %v2327 = vadd.f32 %v1505, %v2271
        %v2328 = vadd.f32 %v1506, %v2275
        %v2329 = vadd.f32 %v1507, %v2279
        %v2330 = vadd.f32 %v1508, %v2283
        %v2331 = vadd.f32 %v1509, %v2287
        %v2332 = vadd.f32 %v1510, %v2291
        %v2333 = vadd.f32 %v1511, %v2295
        %v2334 = vadd.f32 %v1512, %v2299
        %v2335 = vadd.f32 %v1513, %v2303
        %v2336 = vadd.f32 %v1514, %v2307
        %v2337 = vadd.f32 %v1515, %v2311
        %v2338 = vadd.f32 %v1516, %v2315
        %v2339 = vadd.f32 %v1517, %v2319
        %v2340 = vadd.f32 %v1518, %v2323
        %2341 = vst [vmem:[#allocation2] sm:$0xff] %v2325
        %2342 = vst [vmem:[#allocation2 + $0x8] sm:$0xff] %v2326
        %2343 = vst [vmem:[#allocation2 + $0x10] sm:$0xff] %v2327
        %2344 = vst [vmem:[#allocation2 + $0x18] sm:$0xff] %v2328
        %2345 = vst [vmem:[#allocation2 + $0x20] sm:$0xff] %v2329
        %2346 = vst [vmem:[#allocation2 + $0x28] sm:$0xff] %v2330
        %2347 = vst [vmem:[#allocation2 + $0x30] sm:$0xff] %v2331
        %2348 = vst [vmem:[#allocation2 + $0x38] sm:$0xff] %v2332
        %2349 = vst [vmem:[#allocation2 + $0x40] sm:$0xff] %v2333
        %2350 = vst [vmem:[#allocation2 + $0x48] sm:$0xff] %v2334
        %2351 = vst [vmem:[#allocation2 + $0x50] sm:$0xff] %v2335
        %2352 = vst [vmem:[#allocation2 + $0x58] sm:$0xff] %v2336
        %2353 = vst [vmem:[#allocation2 + $0x60] sm:$0xff] %v2337
        %2354 = vst [vmem:[#allocation2 + $0x68] sm:$0xff] %v2338
        %2355 = vst [vmem:[#allocation2 + $0x70] sm:$0xff] %v2339
        %2356 = vst [vmem:[#allocation2 + $0x78] sm:$0xff] %v2340
        %p2357 = scmp.eq.s32.totalorder %s29, 1
        // Predicated region
        $region45: #{tpu_custom_call.1} parent=39 // pred_check
          %p2358 = pneg %p2357
        $region46: #{tpu_custom_call.1} parent=39 // pred_check_branch
          %2360 = sbr.rel (%p2358) target = $region48
        $region47: #{tpu_custom_call.1} parent=39 // pred_region
          %v2361 = vld [vmem:[#allocation3] sm:$0xff]
          %v2362 = vld [vmem:[#allocation3 + $0x8] sm:$0xff]
          %v2363 = vld [vmem:[#allocation3 + $0x10] sm:$0xff]
          %v2364 = vld [vmem:[#allocation3 + $0x18] sm:$0xff]
          %v2365 = vld [vmem:[#allocation3 + $0x20] sm:$0xff]
          %v2366 = vld [vmem:[#allocation3 + $0x28] sm:$0xff]
          %v2367 = vld [vmem:[#allocation3 + $0x30] sm:$0xff]
          %v2368 = vld [vmem:[#allocation3 + $0x38] sm:$0xff]
          %v2369 = vld [vmem:[#allocation3 + $0x40] sm:$0xff]
          %v2370 = vld [vmem:[#allocation3 + $0x48] sm:$0xff]
          %v2371 = vld [vmem:[#allocation3 + $0x50] sm:$0xff]
          %v2372 = vld [vmem:[#allocation3 + $0x58] sm:$0xff]
          %v2373 = vld [vmem:[#allocation3 + $0x60] sm:$0xff]
          %v2374 = vld [vmem:[#allocation3 + $0x68] sm:$0xff]
          %v2375 = vld [vmem:[#allocation3 + $0x70] sm:$0xff]
          %v2376 = vld [vmem:[#allocation3 + $0x78] sm:$0xff]
          %v2377 = vrsqrt.pop %v2361
          %v2378 = vmul.f32 %v2377, %v2361
          %v2379 = vmul.f32 %v2378, %v2377
          %v2380 = vmul.f32 0.5, %v2379
          %v2381 = vsub.f32 1.5, %v2380
          %v2382 = vmul.f32 %v2377, %v2381
          %v2383 = vmul.f32 %v2361, %v2382
          %vm2384 = vcmp.eq.f32.partialorder %v2361, inf
          %v2385 = vsel %vm2384, %v2361, %v2383
          %vm2386 = vcmp.eq.f32.partialorder %v2361, 0.0
          %v2387 = vand.u32 %v2361, 2147483648
          %v2388 = vsel %vm2386, %v2387, %v2385
          %v2389 = vrsqrt.pop %v2362
          %v2390 = vmul.f32 %v2389, %v2362
          %v2391 = vmul.f32 %v2390, %v2389
          %v2392 = vmul.f32 0.5, %v2391
          %v2393 = vsub.f32 1.5, %v2392
          %v2394 = vmul.f32 %v2389, %v2393
          %v2395 = vmul.f32 %v2362, %v2394
          %vm2396 = vcmp.eq.f32.partialorder %v2362, inf
          %v2397 = vsel %vm2396, %v2362, %v2395
          %vm2398 = vcmp.eq.f32.partialorder %v2362, 0.0
          %v2399 = vand.u32 %v2362, 2147483648
          %v2400 = vsel %vm2398, %v2399, %v2397
          %v2401 = vrsqrt.pop %v2363
          %v2402 = vmul.f32 %v2401, %v2363
          %v2403 = vmul.f32 %v2402, %v2401
          %v2404 = vmul.f32 0.5, %v2403
          %v2405 = vsub.f32 1.5, %v2404
          %v2406 = vmul.f32 %v2401, %v2405
          %v2407 = vmul.f32 %v2363, %v2406
          %vm2408 = vcmp.eq.f32.partialorder %v2363, inf
          %v2409 = vsel %vm2408, %v2363, %v2407
          %vm2410 = vcmp.eq.f32.partialorder %v2363, 0.0
          %v2411 = vand.u32 %v2363, 2147483648
          %v2412 = vsel %vm2410, %v2411, %v2409
          %v2413 = vrsqrt.pop %v2364
          %v2414 = vmul.f32 %v2413, %v2364
          %v2415 = vmul.f32 %v2414, %v2413
          %v2416 = vmul.f32 0.5, %v2415
          %v2417 = vsub.f32 1.5, %v2416
          %v2418 = vmul.f32 %v2413, %v2417
          %v2419 = vmul.f32 %v2364, %v2418
          %vm2420 = vcmp.eq.f32.partialorder %v2364, inf
          %v2421 = vsel %vm2420, %v2364, %v2419
          %vm2422 = vcmp.eq.f32.partialorder %v2364, 0.0
          %v2423 = vand.u32 %v2364, 2147483648
          %v2424 = vsel %vm2422, %v2423, %v2421
          %v2425 = vrsqrt.pop %v2365
          %v2426 = vmul.f32 %v2425, %v2365
          %v2427 = vmul.f32 %v2426, %v2425
          %v2428 = vmul.f32 0.5, %v2427
          %v2429 = vsub.f32 1.5, %v2428
          %v2430 = vmul.f32 %v2425, %v2429
          %v2431 = vmul.f32 %v2365, %v2430
          %vm2432 = vcmp.eq.f32.partialorder %v2365, inf
          %v2433 = vsel %vm2432, %v2365, %v2431
          %vm2434 = vcmp.eq.f32.partialorder %v2365, 0.0
          %v2435 = vand.u32 %v2365, 2147483648
          %v2436 = vsel %vm2434, %v2435, %v2433
          %v2437 = vrsqrt.pop %v2366
          %v2438 = vmul.f32 %v2437, %v2366
          %v2439 = vmul.f32 %v2438, %v2437
          %v2440 = vmul.f32 0.5, %v2439
          %v2441 = vsub.f32 1.5, %v2440
          %v2442 = vmul.f32 %v2437, %v2441
          %v2443 = vmul.f32 %v2366, %v2442
          %vm2444 = vcmp.eq.f32.partialorder %v2366, inf
          %v2445 = vsel %vm2444, %v2366, %v2443
          %vm2446 = vcmp.eq.f32.partialorder %v2366, 0.0
          %v2447 = vand.u32 %v2366, 2147483648
          %v2448 = vsel %vm2446, %v2447, %v2445
          %v2449 = vrsqrt.pop %v2367
          %v2450 = vmul.f32 %v2449, %v2367
          %v2451 = vmul.f32 %v2450, %v2449
          %v2452 = vmul.f32 0.5, %v2451
          %v2453 = vsub.f32 1.5, %v2452
          %v2454 = vmul.f32 %v2449, %v2453
          %v2455 = vmul.f32 %v2367, %v2454
          %vm2456 = vcmp.eq.f32.partialorder %v2367, inf
          %v2457 = vsel %vm2456, %v2367, %v2455
          %vm2458 = vcmp.eq.f32.partialorder %v2367, 0.0
          %v2459 = vand.u32 %v2367, 2147483648
          %v2460 = vsel %vm2458, %v2459, %v2457
          %v2461 = vrsqrt.pop %v2368
          %v2462 = vmul.f32 %v2461, %v2368
          %v2463 = vmul.f32 %v2462, %v2461
          %v2464 = vmul.f32 0.5, %v2463
          %v2465 = vsub.f32 1.5, %v2464
          %v2466 = vmul.f32 %v2461, %v2465
          %v2467 = vmul.f32 %v2368, %v2466
          %vm2468 = vcmp.eq.f32.partialorder %v2368, inf
          %v2469 = vsel %vm2468, %v2368, %v2467
          %vm2470 = vcmp.eq.f32.partialorder %v2368, 0.0
          %v2471 = vand.u32 %v2368, 2147483648
          %v2472 = vsel %vm2470, %v2471, %v2469
          %v2473 = vrsqrt.pop %v2369
          %v2474 = vmul.f32 %v2473, %v2369
          %v2475 = vmul.f32 %v2474, %v2473
          %v2476 = vmul.f32 0.5, %v2475
          %v2477 = vsub.f32 1.5, %v2476
          %v2478 = vmul.f32 %v2473, %v2477
          %v2479 = vmul.f32 %v2369, %v2478
          %vm2480 = vcmp.eq.f32.partialorder %v2369, inf
          %v2481 = vsel %vm2480, %v2369, %v2479
          %vm2482 = vcmp.eq.f32.partialorder %v2369, 0.0
          %v2483 = vand.u32 %v2369, 2147483648
          %v2484 = vsel %vm2482, %v2483, %v2481
          %v2485 = vrsqrt.pop %v2370
          %v2486 = vmul.f32 %v2485, %v2370
          %v2487 = vmul.f32 %v2486, %v2485
          %v2488 = vmul.f32 0.5, %v2487
          %v2489 = vsub.f32 1.5, %v2488
          %v2490 = vmul.f32 %v2485, %v2489
          %v2491 = vmul.f32 %v2370, %v2490
          %vm2492 = vcmp.eq.f32.partialorder %v2370, inf
          %v2493 = vsel %vm2492, %v2370, %v2491
          %vm2494 = vcmp.eq.f32.partialorder %v2370, 0.0
          %v2495 = vand.u32 %v2370, 2147483648
          %v2496 = vsel %vm2494, %v2495, %v2493
          %v2497 = vrsqrt.pop %v2371
          %v2498 = vmul.f32 %v2497, %v2371
          %v2499 = vmul.f32 %v2498, %v2497
          %v2500 = vmul.f32 0.5, %v2499
          %v2501 = vsub.f32 1.5, %v2500
          %v2502 = vmul.f32 %v2497, %v2501
          %v2503 = vmul.f32 %v2371, %v2502
          %vm2504 = vcmp.eq.f32.partialorder %v2371, inf
          %v2505 = vsel %vm2504, %v2371, %v2503
          %vm2506 = vcmp.eq.f32.partialorder %v2371, 0.0
          %v2507 = vand.u32 %v2371, 2147483648
          %v2508 = vsel %vm2506, %v2507, %v2505
          %v2509 = vrsqrt.pop %v2372
          %v2510 = vmul.f32 %v2509, %v2372
          %v2511 = vmul.f32 %v2510, %v2509
          %v2512 = vmul.f32 0.5, %v2511
          %v2513 = vsub.f32 1.5, %v2512
          %v2514 = vmul.f32 %v2509, %v2513
          %v2515 = vmul.f32 %v2372, %v2514
          %vm2516 = vcmp.eq.f32.partialorder %v2372, inf
          %v2517 = vsel %vm2516, %v2372, %v2515
          %vm2518 = vcmp.eq.f32.partialorder %v2372, 0.0
          %v2519 = vand.u32 %v2372, 2147483648
          %v2520 = vsel %vm2518, %v2519, %v2517
          %v2521 = vrsqrt.pop %v2373
          %v2522 = vmul.f32 %v2521, %v2373
          %v2523 = vmul.f32 %v2522, %v2521
          %v2524 = vmul.f32 0.5, %v2523
          %v2525 = vsub.f32 1.5, %v2524
          %v2526 = vmul.f32 %v2521, %v2525
          %v2527 = vmul.f32 %v2373, %v2526
          %vm2528 = vcmp.eq.f32.partialorder %v2373, inf
          %v2529 = vsel %vm2528, %v2373, %v2527
          %vm2530 = vcmp.eq.f32.partialorder %v2373, 0.0
          %v2531 = vand.u32 %v2373, 2147483648
          %v2532 = vsel %vm2530, %v2531, %v2529
          %v2533 = vrsqrt.pop %v2374
          %v2534 = vmul.f32 %v2533, %v2374
          %v2535 = vmul.f32 %v2534, %v2533
          %v2536 = vmul.f32 0.5, %v2535
          %v2537 = vsub.f32 1.5, %v2536
          %v2538 = vmul.f32 %v2533, %v2537
          %v2539 = vmul.f32 %v2374, %v2538
          %vm2540 = vcmp.eq.f32.partialorder %v2374, inf
          %v2541 = vsel %vm2540, %v2374, %v2539
          %vm2542 = vcmp.eq.f32.partialorder %v2374, 0.0
          %v2543 = vand.u32 %v2374, 2147483648
          %v2544 = vsel %vm2542, %v2543, %v2541
          %v2545 = vrsqrt.pop %v2375
          %v2546 = vmul.f32 %v2545, %v2375
          %v2547 = vmul.f32 %v2546, %v2545
          %v2548 = vmul.f32 0.5, %v2547
          %v2549 = vsub.f32 1.5, %v2548
          %v2550 = vmul.f32 %v2545, %v2549
          %v2551 = vmul.f32 %v2375, %v2550
          %vm2552 = vcmp.eq.f32.partialorder %v2375, inf
          %v2553 = vsel %vm2552, %v2375, %v2551
          %vm2554 = vcmp.eq.f32.partialorder %v2375, 0.0
          %v2555 = vand.u32 %v2375, 2147483648
          %v2556 = vsel %vm2554, %v2555, %v2553
          %v2557 = vrsqrt.pop %v2376
          %v2558 = vmul.f32 %v2557, %v2376
          %v2559 = vmul.f32 %v2558, %v2557
          %v2560 = vmul.f32 0.5, %v2559
          %v2561 = vsub.f32 1.5, %v2560
          %v2562 = vmul.f32 %v2557, %v2561
          %v2563 = vmul.f32 %v2376, %v2562
          %vm2564 = vcmp.eq.f32.partialorder %v2376, inf
          %v2565 = vsel %vm2564, %v2376, %v2563
          %vm2566 = vcmp.eq.f32.partialorder %v2376, 0.0
          %v2567 = vand.u32 %v2376, 2147483648
          %v2568 = vsel %vm2566, %v2567, %v2565
          %v2569 = vmax.f32 %v2388, 1e-12
          %v2570 = vmax.f32 %v2400, 1e-12
          %v2571 = vmax.f32 %v2412, 1e-12
          %v2572 = vmax.f32 %v2424, 1e-12
          %v2573 = vmax.f32 %v2436, 1e-12
          %v2574 = vmax.f32 %v2448, 1e-12
          %v2575 = vmax.f32 %v2460, 1e-12
          %v2576 = vmax.f32 %v2472, 1e-12
          %v2577 = vmax.f32 %v2484, 1e-12
          %v2578 = vmax.f32 %v2496, 1e-12
          %v2579 = vmax.f32 %v2508, 1e-12
          %v2580 = vmax.f32 %v2520, 1e-12
          %v2581 = vmax.f32 %v2532, 1e-12
          %v2582 = vmax.f32 %v2544, 1e-12
          %v2583 = vmax.f32 %v2556, 1e-12
          %v2584 = vmax.f32 %v2568, 1e-12
          %v2585 = vrcp.pop %v2569
          %v2586 = vmul.f32 %v2569, %v2585
          %v2587 = vsub.f32 1.0, %v2586
          %v2588 = vmul.f32 %v2585, %v2587
          %v2589 = vadd.f32 %v2585, %v2588
          %vm2590 = vweird.f32 %v2569
          %vm2591 = vweird.f32 %v2585
          %vm2592 = vmor %vm2590, %vm2591
          %v2593 = vsel %vm2592, %v2585, %v2589
          %v2594 = vand.u32 2147483647, %v2569
          %vm2595 = vcmp.eq.f32.partialorder %v2594, 8.507059e+37
          %v2596 = vand.u32 %v2569, 2147483648
          %v2597 = vor.u32 1.1754944e-38, %v2596
          %v2598 = vsel %vm2595, %v2597, %v2593
          %v2599 = vmul.f32 1.0, %v2598
          %v2600 = vrcp.pop %v2570
          %v2601 = vmul.f32 %v2570, %v2600
          %v2602 = vsub.f32 1.0, %v2601
          %v2603 = vmul.f32 %v2600, %v2602
          %v2604 = vadd.f32 %v2600, %v2603
          %vm2605 = vweird.f32 %v2570
          %vm2606 = vweird.f32 %v2600
          %vm2607 = vmor %vm2605, %vm2606
          %v2608 = vsel %vm2607, %v2600, %v2604
          %v2609 = vand.u32 2147483647, %v2570
          %vm2610 = vcmp.eq.f32.partialorder %v2609, 8.507059e+37
          %v2611 = vand.u32 %v2570, 2147483648
          %v2612 = vor.u32 1.1754944e-38, %v2611
          %v2613 = vsel %vm2610, %v2612, %v2608
          %v2614 = vmul.f32 1.0, %v2613
          %v2615 = vrcp.pop %v2571
          %v2616 = vmul.f32 %v2571, %v2615
          %v2617 = vsub.f32 1.0, %v2616
          %v2618 = vmul.f32 %v2615, %v2617
          %v2619 = vadd.f32 %v2615, %v2618
          %vm2620 = vweird.f32 %v2571
          %vm2621 = vweird.f32 %v2615
          %vm2622 = vmor %vm2620, %vm2621
          %v2623 = vsel %vm2622, %v2615, %v2619
          %v2624 = vand.u32 2147483647, %v2571
          %vm2625 = vcmp.eq.f32.partialorder %v2624, 8.507059e+37
          %v2626 = vand.u32 %v2571, 2147483648
          %v2627 = vor.u32 1.1754944e-38, %v2626
          %v2628 = vsel %vm2625, %v2627, %v2623
          %v2629 = vmul.f32 1.0, %v2628
          %v2630 = vrcp.pop %v2572
          %v2631 = vmul.f32 %v2572, %v2630
          %v2632 = vsub.f32 1.0, %v2631
          %v2633 = vmul.f32 %v2630, %v2632
          %v2634 = vadd.f32 %v2630, %v2633
          %vm2635 = vweird.f32 %v2572
          %vm2636 = vweird.f32 %v2630
          %vm2637 = vmor %vm2635, %vm2636
          %v2638 = vsel %vm2637, %v2630, %v2634
          %v2639 = vand.u32 2147483647, %v2572
          %vm2640 = vcmp.eq.f32.partialorder %v2639, 8.507059e+37
          %v2641 = vand.u32 %v2572, 2147483648
          %v2642 = vor.u32 1.1754944e-38, %v2641
          %v2643 = vsel %vm2640, %v2642, %v2638
          %v2644 = vmul.f32 1.0, %v2643
          %v2645 = vrcp.pop %v2573
          %v2646 = vmul.f32 %v2573, %v2645
          %v2647 = vsub.f32 1.0, %v2646
          %v2648 = vmul.f32 %v2645, %v2647
          %v2649 = vadd.f32 %v2645, %v2648
          %vm2650 = vweird.f32 %v2573
          %vm2651 = vweird.f32 %v2645
          %vm2652 = vmor %vm2650, %vm2651
          %v2653 = vsel %vm2652, %v2645, %v2649
          %v2654 = vand.u32 2147483647, %v2573
          %vm2655 = vcmp.eq.f32.partialorder %v2654, 8.507059e+37
          %v2656 = vand.u32 %v2573, 2147483648
          %v2657 = vor.u32 1.1754944e-38, %v2656
          %v2658 = vsel %vm2655, %v2657, %v2653
          %v2659 = vmul.f32 1.0, %v2658
          %v2660 = vrcp.pop %v2574
          %v2661 = vmul.f32 %v2574, %v2660
          %v2662 = vsub.f32 1.0, %v2661
          %v2663 = vmul.f32 %v2660, %v2662
          %v2664 = vadd.f32 %v2660, %v2663
          %vm2665 = vweird.f32 %v2574
          %vm2666 = vweird.f32 %v2660
          %vm2667 = vmor %vm2665, %vm2666
          %v2668 = vsel %vm2667, %v2660, %v2664
          %v2669 = vand.u32 2147483647, %v2574
          %vm2670 = vcmp.eq.f32.partialorder %v2669, 8.507059e+37
          %v2671 = vand.u32 %v2574, 2147483648
          %v2672 = vor.u32 1.1754944e-38, %v2671
          %v2673 = vsel %vm2670, %v2672, %v2668
          %v2674 = vmul.f32 1.0, %v2673
          %v2675 = vrcp.pop %v2575
          %v2676 = vmul.f32 %v2575, %v2675
          %v2677 = vsub.f32 1.0, %v2676
          %v2678 = vmul.f32 %v2675, %v2677
          %v2679 = vadd.f32 %v2675, %v2678
          %vm2680 = vweird.f32 %v2575
          %vm2681 = vweird.f32 %v2675
          %vm2682 = vmor %vm2680, %vm2681
          %v2683 = vsel %vm2682, %v2675, %v2679
          %v2684 = vand.u32 2147483647, %v2575
          %vm2685 = vcmp.eq.f32.partialorder %v2684, 8.507059e+37
          %v2686 = vand.u32 %v2575, 2147483648
          %v2687 = vor.u32 1.1754944e-38, %v2686
          %v2688 = vsel %vm2685, %v2687, %v2683
          %v2689 = vmul.f32 1.0, %v2688
          %v2690 = vrcp.pop %v2576
          %v2691 = vmul.f32 %v2576, %v2690
          %v2692 = vsub.f32 1.0, %v2691
          %v2693 = vmul.f32 %v2690, %v2692
          %v2694 = vadd.f32 %v2690, %v2693
          %vm2695 = vweird.f32 %v2576
          %vm2696 = vweird.f32 %v2690
          %vm2697 = vmor %vm2695, %vm2696
          %v2698 = vsel %vm2697, %v2690, %v2694
          %v2699 = vand.u32 2147483647, %v2576
          %vm2700 = vcmp.eq.f32.partialorder %v2699, 8.507059e+37
          %v2701 = vand.u32 %v2576, 2147483648
          %v2702 = vor.u32 1.1754944e-38, %v2701
          %v2703 = vsel %vm2700, %v2702, %v2698
          %v2704 = vmul.f32 1.0, %v2703
          %v2705 = vrcp.pop %v2577
          %v2706 = vmul.f32 %v2577, %v2705
          %v2707 = vsub.f32 1.0, %v2706
          %v2708 = vmul.f32 %v2705, %v2707
          %v2709 = vadd.f32 %v2705, %v2708
          %vm2710 = vweird.f32 %v2577
          %vm2711 = vweird.f32 %v2705
          %vm2712 = vmor %vm2710, %vm2711
          %v2713 = vsel %vm2712, %v2705, %v2709
          %v2714 = vand.u32 2147483647, %v2577
          %vm2715 = vcmp.eq.f32.partialorder %v2714, 8.507059e+37
          %v2716 = vand.u32 %v2577, 2147483648
          %v2717 = vor.u32 1.1754944e-38, %v2716
          %v2718 = vsel %vm2715, %v2717, %v2713
          %v2719 = vmul.f32 1.0, %v2718
          %v2720 = vrcp.pop %v2578
          %v2721 = vmul.f32 %v2578, %v2720
          %v2722 = vsub.f32 1.0, %v2721
          %v2723 = vmul.f32 %v2720, %v2722
          %v2724 = vadd.f32 %v2720, %v2723
          %vm2725 = vweird.f32 %v2578
          %vm2726 = vweird.f32 %v2720
          %vm2727 = vmor %vm2725, %vm2726
          %v2728 = vsel %vm2727, %v2720, %v2724
          %v2729 = vand.u32 2147483647, %v2578
          %vm2730 = vcmp.eq.f32.partialorder %v2729, 8.507059e+37
          %v2731 = vand.u32 %v2578, 2147483648
          %v2732 = vor.u32 1.1754944e-38, %v2731
          %v2733 = vsel %vm2730, %v2732, %v2728
          %v2734 = vmul.f32 1.0, %v2733
          %v2735 = vrcp.pop %v2579
          %v2736 = vmul.f32 %v2579, %v2735
          %v2737 = vsub.f32 1.0, %v2736
          %v2738 = vmul.f32 %v2735, %v2737
          %v2739 = vadd.f32 %v2735, %v2738
          %vm2740 = vweird.f32 %v2579
          %vm2741 = vweird.f32 %v2735
          %vm2742 = vmor %vm2740, %vm2741
          %v2743 = vsel %vm2742, %v2735, %v2739
          %v2744 = vand.u32 2147483647, %v2579
          %vm2745 = vcmp.eq.f32.partialorder %v2744, 8.507059e+37
          %v2746 = vand.u32 %v2579, 2147483648
          %v2747 = vor.u32 1.1754944e-38, %v2746
          %v2748 = vsel %vm2745, %v2747, %v2743
          %v2749 = vmul.f32 1.0, %v2748
          %v2750 = vrcp.pop %v2580
          %v2751 = vmul.f32 %v2580, %v2750
          %v2752 = vsub.f32 1.0, %v2751
          %v2753 = vmul.f32 %v2750, %v2752
          %v2754 = vadd.f32 %v2750, %v2753
          %vm2755 = vweird.f32 %v2580
          %vm2756 = vweird.f32 %v2750
          %vm2757 = vmor %vm2755, %vm2756
          %v2758 = vsel %vm2757, %v2750, %v2754
          %v2759 = vand.u32 2147483647, %v2580
          %vm2760 = vcmp.eq.f32.partialorder %v2759, 8.507059e+37
          %v2761 = vand.u32 %v2580, 2147483648
          %v2762 = vor.u32 1.1754944e-38, %v2761
          %v2763 = vsel %vm2760, %v2762, %v2758
          %v2764 = vmul.f32 1.0, %v2763
          %v2765 = vrcp.pop %v2581
          %v2766 = vmul.f32 %v2581, %v2765
          %v2767 = vsub.f32 1.0, %v2766
          %v2768 = vmul.f32 %v2765, %v2767
          %v2769 = vadd.f32 %v2765, %v2768
          %vm2770 = vweird.f32 %v2581
          %vm2771 = vweird.f32 %v2765
          %vm2772 = vmor %vm2770, %vm2771
          %v2773 = vsel %vm2772, %v2765, %v2769
          %v2774 = vand.u32 2147483647, %v2581
          %vm2775 = vcmp.eq.f32.partialorder %v2774, 8.507059e+37
          %v2776 = vand.u32 %v2581, 2147483648
          %v2777 = vor.u32 1.1754944e-38, %v2776
          %v2778 = vsel %vm2775, %v2777, %v2773
          %v2779 = vmul.f32 1.0, %v2778
          %v2780 = vrcp.pop %v2582
          %v2781 = vmul.f32 %v2582, %v2780
          %v2782 = vsub.f32 1.0, %v2781
          %v2783 = vmul.f32 %v2780, %v2782
          %v2784 = vadd.f32 %v2780, %v2783
          %vm2785 = vweird.f32 %v2582
          %vm2786 = vweird.f32 %v2780
          %vm2787 = vmor %vm2785, %vm2786
          %v2788 = vsel %vm2787, %v2780, %v2784
          %v2789 = vand.u32 2147483647, %v2582
          %vm2790 = vcmp.eq.f32.partialorder %v2789, 8.507059e+37
          %v2791 = vand.u32 %v2582, 2147483648
          %v2792 = vor.u32 1.1754944e-38, %v2791
          %v2793 = vsel %vm2790, %v2792, %v2788
          %v2794 = vmul.f32 1.0, %v2793
          %v2795 = vrcp.pop %v2583
          %v2796 = vmul.f32 %v2583, %v2795
          %v2797 = vsub.f32 1.0, %v2796
          %v2798 = vmul.f32 %v2795, %v2797
          %v2799 = vadd.f32 %v2795, %v2798
          %vm2800 = vweird.f32 %v2583
          %vm2801 = vweird.f32 %v2795
          %vm2802 = vmor %vm2800, %vm2801
          %v2803 = vsel %vm2802, %v2795, %v2799
          %v2804 = vand.u32 2147483647, %v2583
          %vm2805 = vcmp.eq.f32.partialorder %v2804, 8.507059e+37
          %v2806 = vand.u32 %v2583, 2147483648
          %v2807 = vor.u32 1.1754944e-38, %v2806
          %v2808 = vsel %vm2805, %v2807, %v2803
          %v2809 = vmul.f32 1.0, %v2808
          %v2810 = vrcp.pop %v2584
          %v2811 = vmul.f32 %v2584, %v2810
          %v2812 = vsub.f32 1.0, %v2811
          %v2813 = vmul.f32 %v2810, %v2812
          %v2814 = vadd.f32 %v2810, %v2813
          %vm2815 = vweird.f32 %v2584
          %vm2816 = vweird.f32 %v2810
          %vm2817 = vmor %vm2815, %vm2816
          %v2818 = vsel %vm2817, %v2810, %v2814
          %v2819 = vand.u32 2147483647, %v2584
          %vm2820 = vcmp.eq.f32.partialorder %v2819, 8.507059e+37
          %v2821 = vand.u32 %v2584, 2147483648
          %v2822 = vor.u32 1.1754944e-38, %v2821
          %v2823 = vsel %vm2820, %v2822, %v2818
          %v2824 = vmul.f32 1.0, %v2823
          %v2825 = vld [vmem:[#allocation4] sm:$0xff]
          %v2826 = vld [vmem:[#allocation4 + $0x8] sm:$0xff]
          %v2827 = vld [vmem:[#allocation4 + $0x10] sm:$0xff]
          %v2828 = vld [vmem:[#allocation4 + $0x18] sm:$0xff]
          %v2829 = vld [vmem:[#allocation4 + $0x20] sm:$0xff]
          %v2830 = vld [vmem:[#allocation4 + $0x28] sm:$0xff]
          %v2831 = vld [vmem:[#allocation4 + $0x30] sm:$0xff]
          %v2832 = vld [vmem:[#allocation4 + $0x38] sm:$0xff]
          %v2833 = vld [vmem:[#allocation4 + $0x40] sm:$0xff]
          %v2834 = vld [vmem:[#allocation4 + $0x48] sm:$0xff]
          %v2835 = vld [vmem:[#allocation4 + $0x50] sm:$0xff]
          %v2836 = vld [vmem:[#allocation4 + $0x58] sm:$0xff]
          %v2837 = vld [vmem:[#allocation4 + $0x60] sm:$0xff]
          %v2838 = vld [vmem:[#allocation4 + $0x68] sm:$0xff]
          %v2839 = vld [vmem:[#allocation4 + $0x70] sm:$0xff]
          %v2840 = vld [vmem:[#allocation4 + $0x78] sm:$0xff]
          %v2841 = vrsqrt.pop %v2825
          %v2842 = vmul.f32 %v2841, %v2825
          %v2843 = vmul.f32 %v2842, %v2841
          %v2844 = vmul.f32 0.5, %v2843
          %v2845 = vsub.f32 1.5, %v2844
          %v2846 = vmul.f32 %v2841, %v2845
          %v2847 = vmul.f32 %v2825, %v2846
          %vm2848 = vcmp.eq.f32.partialorder %v2825, inf
          %v2849 = vsel %vm2848, %v2825, %v2847
          %vm2850 = vcmp.eq.f32.partialorder %v2825, 0.0
          %v2851 = vand.u32 %v2825, 2147483648
          %v2852 = vsel %vm2850, %v2851, %v2849
          %v2853 = vrsqrt.pop %v2826
          %v2854 = vmul.f32 %v2853, %v2826
          %v2855 = vmul.f32 %v2854, %v2853
          %v2856 = vmul.f32 0.5, %v2855
          %v2857 = vsub.f32 1.5, %v2856
          %v2858 = vmul.f32 %v2853, %v2857
          %v2859 = vmul.f32 %v2826, %v2858
          %vm2860 = vcmp.eq.f32.partialorder %v2826, inf
          %v2861 = vsel %vm2860, %v2826, %v2859
          %vm2862 = vcmp.eq.f32.partialorder %v2826, 0.0
          %v2863 = vand.u32 %v2826, 2147483648
          %v2864 = vsel %vm2862, %v2863, %v2861
          %v2865 = vrsqrt.pop %v2827
          %v2866 = vmul.f32 %v2865, %v2827
          %v2867 = vmul.f32 %v2866, %v2865
          %v2868 = vmul.f32 0.5, %v2867
          %v2869 = vsub.f32 1.5, %v2868
          %v2870 = vmul.f32 %v2865, %v2869
          %v2871 = vmul.f32 %v2827, %v2870
          %vm2872 = vcmp.eq.f32.partialorder %v2827, inf
          %v2873 = vsel %vm2872, %v2827, %v2871
          %vm2874 = vcmp.eq.f32.partialorder %v2827, 0.0
          %v2875 = vand.u32 %v2827, 2147483648
          %v2876 = vsel %vm2874, %v2875, %v2873
          %v2877 = vrsqrt.pop %v2828
          %v2878 = vmul.f32 %v2877, %v2828
          %v2879 = vmul.f32 %v2878, %v2877
          %v2880 = vmul.f32 0.5, %v2879
          %v2881 = vsub.f32 1.5, %v2880
          %v2882 = vmul.f32 %v2877, %v2881
          %v2883 = vmul.f32 %v2828, %v2882
          %vm2884 = vcmp.eq.f32.partialorder %v2828, inf
          %v2885 = vsel %vm2884, %v2828, %v2883
          %vm2886 = vcmp.eq.f32.partialorder %v2828, 0.0
          %v2887 = vand.u32 %v2828, 2147483648
          %v2888 = vsel %vm2886, %v2887, %v2885
          %v2889 = vrsqrt.pop %v2829
          %v2890 = vmul.f32 %v2889, %v2829
          %v2891 = vmul.f32 %v2890, %v2889
          %v2892 = vmul.f32 0.5, %v2891
          %v2893 = vsub.f32 1.5, %v2892
          %v2894 = vmul.f32 %v2889, %v2893
          %v2895 = vmul.f32 %v2829, %v2894
          %vm2896 = vcmp.eq.f32.partialorder %v2829, inf
          %v2897 = vsel %vm2896, %v2829, %v2895
          %vm2898 = vcmp.eq.f32.partialorder %v2829, 0.0
          %v2899 = vand.u32 %v2829, 2147483648
          %v2900 = vsel %vm2898, %v2899, %v2897
          %v2901 = vrsqrt.pop %v2830
          %v2902 = vmul.f32 %v2901, %v2830
          %v2903 = vmul.f32 %v2902, %v2901
          %v2904 = vmul.f32 0.5, %v2903
          %v2905 = vsub.f32 1.5, %v2904
          %v2906 = vmul.f32 %v2901, %v2905
          %v2907 = vmul.f32 %v2830, %v2906
          %vm2908 = vcmp.eq.f32.partialorder %v2830, inf
          %v2909 = vsel %vm2908, %v2830, %v2907
          %vm2910 = vcmp.eq.f32.partialorder %v2830, 0.0
          %v2911 = vand.u32 %v2830, 2147483648
          %v2912 = vsel %vm2910, %v2911, %v2909
          %v2913 = vrsqrt.pop %v2831
          %v2914 = vmul.f32 %v2913, %v2831
          %v2915 = vmul.f32 %v2914, %v2913
          %v2916 = vmul.f32 0.5, %v2915
          %v2917 = vsub.f32 1.5, %v2916
          %v2918 = vmul.f32 %v2913, %v2917
          %v2919 = vmul.f32 %v2831, %v2918
          %vm2920 = vcmp.eq.f32.partialorder %v2831, inf
          %v2921 = vsel %vm2920, %v2831, %v2919
          %vm2922 = vcmp.eq.f32.partialorder %v2831, 0.0
          %v2923 = vand.u32 %v2831, 2147483648
          %v2924 = vsel %vm2922, %v2923, %v2921
          %v2925 = vrsqrt.pop %v2832
          %v2926 = vmul.f32 %v2925, %v2832
          %v2927 = vmul.f32 %v2926, %v2925
          %v2928 = vmul.f32 0.5, %v2927
          %v2929 = vsub.f32 1.5, %v2928
          %v2930 = vmul.f32 %v2925, %v2929
          %v2931 = vmul.f32 %v2832, %v2930
          %vm2932 = vcmp.eq.f32.partialorder %v2832, inf
          %v2933 = vsel %vm2932, %v2832, %v2931
          %vm2934 = vcmp.eq.f32.partialorder %v2832, 0.0
          %v2935 = vand.u32 %v2832, 2147483648
          %v2936 = vsel %vm2934, %v2935, %v2933
          %v2937 = vrsqrt.pop %v2833
          %v2938 = vmul.f32 %v2937, %v2833
          %v2939 = vmul.f32 %v2938, %v2937
          %v2940 = vmul.f32 0.5, %v2939
          %v2941 = vsub.f32 1.5, %v2940
          %v2942 = vmul.f32 %v2937, %v2941
          %v2943 = vmul.f32 %v2833, %v2942
          %vm2944 = vcmp.eq.f32.partialorder %v2833, inf
          %v2945 = vsel %vm2944, %v2833, %v2943
          %vm2946 = vcmp.eq.f32.partialorder %v2833, 0.0
          %v2947 = vand.u32 %v2833, 2147483648
          %v2948 = vsel %vm2946, %v2947, %v2945
          %v2949 = vrsqrt.pop %v2834
          %v2950 = vmul.f32 %v2949, %v2834
          %v2951 = vmul.f32 %v2950, %v2949
          %v2952 = vmul.f32 0.5, %v2951
          %v2953 = vsub.f32 1.5, %v2952
          %v2954 = vmul.f32 %v2949, %v2953
          %v2955 = vmul.f32 %v2834, %v2954
          %vm2956 = vcmp.eq.f32.partialorder %v2834, inf
          %v2957 = vsel %vm2956, %v2834, %v2955
          %vm2958 = vcmp.eq.f32.partialorder %v2834, 0.0
          %v2959 = vand.u32 %v2834, 2147483648
          %v2960 = vsel %vm2958, %v2959, %v2957
          %v2961 = vrsqrt.pop %v2835
          %v2962 = vmul.f32 %v2961, %v2835
          %v2963 = vmul.f32 %v2962, %v2961
          %v2964 = vmul.f32 0.5, %v2963
          %v2965 = vsub.f32 1.5, %v2964
          %v2966 = vmul.f32 %v2961, %v2965
          %v2967 = vmul.f32 %v2835, %v2966
          %vm2968 = vcmp.eq.f32.partialorder %v2835, inf
          %v2969 = vsel %vm2968, %v2835, %v2967
          %vm2970 = vcmp.eq.f32.partialorder %v2835, 0.0
          %v2971 = vand.u32 %v2835, 2147483648
          %v2972 = vsel %vm2970, %v2971, %v2969
          %v2973 = vrsqrt.pop %v2836
          %v2974 = vmul.f32 %v2973, %v2836
          %v2975 = vmul.f32 %v2974, %v2973
          %v2976 = vmul.f32 0.5, %v2975
          %v2977 = vsub.f32 1.5, %v2976
          %v2978 = vmul.f32 %v2973, %v2977
          %v2979 = vmul.f32 %v2836, %v2978
          %vm2980 = vcmp.eq.f32.partialorder %v2836, inf
          %v2981 = vsel %vm2980, %v2836, %v2979
          %vm2982 = vcmp.eq.f32.partialorder %v2836, 0.0
          %v2983 = vand.u32 %v2836, 2147483648
          %v2984 = vsel %vm2982, %v2983, %v2981
          %v2985 = vrsqrt.pop %v2837
          %v2986 = vmul.f32 %v2985, %v2837
          %v2987 = vmul.f32 %v2986, %v2985
          %v2988 = vmul.f32 0.5, %v2987
          %v2989 = vsub.f32 1.5, %v2988
          %v2990 = vmul.f32 %v2985, %v2989
          %v2991 = vmul.f32 %v2837, %v2990
          %vm2992 = vcmp.eq.f32.partialorder %v2837, inf
          %v2993 = vsel %vm2992, %v2837, %v2991
          %vm2994 = vcmp.eq.f32.partialorder %v2837, 0.0
          %v2995 = vand.u32 %v2837, 2147483648
          %v2996 = vsel %vm2994, %v2995, %v2993
          %v2997 = vrsqrt.pop %v2838
          %v2998 = vmul.f32 %v2997, %v2838
          %v2999 = vmul.f32 %v2998, %v2997
          %v3000 = vmul.f32 0.5, %v2999
          %v3001 = vsub.f32 1.5, %v3000
          %v3002 = vmul.f32 %v2997, %v3001
          %v3003 = vmul.f32 %v2838, %v3002
          %vm3004 = vcmp.eq.f32.partialorder %v2838, inf
          %v3005 = vsel %vm3004, %v2838, %v3003
          %vm3006 = vcmp.eq.f32.partialorder %v2838, 0.0
          %v3007 = vand.u32 %v2838, 2147483648
          %v3008 = vsel %vm3006, %v3007, %v3005
          %v3009 = vrsqrt.pop %v2839
          %v3010 = vmul.f32 %v3009, %v2839
          %v3011 = vmul.f32 %v3010, %v3009
          %v3012 = vmul.f32 0.5, %v3011
          %v3013 = vsub.f32 1.5, %v3012
          %v3014 = vmul.f32 %v3009, %v3013
          %v3015 = vmul.f32 %v2839, %v3014
          %vm3016 = vcmp.eq.f32.partialorder %v2839, inf
          %v3017 = vsel %vm3016, %v2839, %v3015
          %vm3018 = vcmp.eq.f32.partialorder %v2839, 0.0
          %v3019 = vand.u32 %v2839, 2147483648
          %v3020 = vsel %vm3018, %v3019, %v3017
          %v3021 = vrsqrt.pop %v2840
          %v3022 = vmul.f32 %v3021, %v2840
          %v3023 = vmul.f32 %v3022, %v3021
          %v3024 = vmul.f32 0.5, %v3023
          %v3025 = vsub.f32 1.5, %v3024
          %v3026 = vmul.f32 %v3021, %v3025
          %v3027 = vmul.f32 %v2840, %v3026
          %vm3028 = vcmp.eq.f32.partialorder %v2840, inf
          %v3029 = vsel %vm3028, %v2840, %v3027
          %vm3030 = vcmp.eq.f32.partialorder %v2840, 0.0
          %v3031 = vand.u32 %v2840, 2147483648
          %v3032 = vsel %vm3030, %v3031, %v3029
          %v3033 = vmax.f32 %v2852, 1e-12
          %v3034 = vmax.f32 %v2864, 1e-12
          %v3035 = vmax.f32 %v2876, 1e-12
          %v3036 = vmax.f32 %v2888, 1e-12
          %v3037 = vmax.f32 %v2900, 1e-12
          %v3038 = vmax.f32 %v2912, 1e-12
          %v3039 = vmax.f32 %v2924, 1e-12
          %v3040 = vmax.f32 %v2936, 1e-12
          %v3041 = vmax.f32 %v2948, 1e-12
          %v3042 = vmax.f32 %v2960, 1e-12
          %v3043 = vmax.f32 %v2972, 1e-12
          %v3044 = vmax.f32 %v2984, 1e-12
          %v3045 = vmax.f32 %v2996, 1e-12
          %v3046 = vmax.f32 %v3008, 1e-12
          %v3047 = vmax.f32 %v3020, 1e-12
          %v3048 = vmax.f32 %v3032, 1e-12
          %v3049 = vrcp.pop %v3033
          %v3050 = vmul.f32 %v3033, %v3049
          %v3051 = vsub.f32 1.0, %v3050
          %v3052 = vmul.f32 %v3049, %v3051
          %v3053 = vadd.f32 %v3049, %v3052
          %vm3054 = vweird.f32 %v3033
          %vm3055 = vweird.f32 %v3049
          %vm3056 = vmor %vm3054, %vm3055
          %v3057 = vsel %vm3056, %v3049, %v3053
          %v3058 = vand.u32 2147483647, %v3033
          %vm3059 = vcmp.eq.f32.partialorder %v3058, 8.507059e+37
          %v3060 = vand.u32 %v3033, 2147483648
          %v3061 = vor.u32 1.1754944e-38, %v3060
          %v3062 = vsel %vm3059, %v3061, %v3057
          %v3063 = vmul.f32 1.0, %v3062
          %v3064 = vrcp.pop %v3034
          %v3065 = vmul.f32 %v3034, %v3064
          %v3066 = vsub.f32 1.0, %v3065
          %v3067 = vmul.f32 %v3064, %v3066
          %v3068 = vadd.f32 %v3064, %v3067
          %vm3069 = vweird.f32 %v3034
          %vm3070 = vweird.f32 %v3064
          %vm3071 = vmor %vm3069, %vm3070
          %v3072 = vsel %vm3071, %v3064, %v3068
          %v3073 = vand.u32 2147483647, %v3034
          %vm3074 = vcmp.eq.f32.partialorder %v3073, 8.507059e+37
          %v3075 = vand.u32 %v3034, 2147483648
          %v3076 = vor.u32 1.1754944e-38, %v3075
          %v3077 = vsel %vm3074, %v3076, %v3072
          %v3078 = vmul.f32 1.0, %v3077
          %v3079 = vrcp.pop %v3035
          %v3080 = vmul.f32 %v3035, %v3079
          %v3081 = vsub.f32 1.0, %v3080
          %v3082 = vmul.f32 %v3079, %v3081
          %v3083 = vadd.f32 %v3079, %v3082
          %vm3084 = vweird.f32 %v3035
          %vm3085 = vweird.f32 %v3079
          %vm3086 = vmor %vm3084, %vm3085
          %v3087 = vsel %vm3086, %v3079, %v3083
          %v3088 = vand.u32 2147483647, %v3035
          %vm3089 = vcmp.eq.f32.partialorder %v3088, 8.507059e+37
          %v3090 = vand.u32 %v3035, 2147483648
          %v3091 = vor.u32 1.1754944e-38, %v3090
          %v3092 = vsel %vm3089, %v3091, %v3087
          %v3093 = vmul.f32 1.0, %v3092
          %v3094 = vrcp.pop %v3036
          %v3095 = vmul.f32 %v3036, %v3094
          %v3096 = vsub.f32 1.0, %v3095
          %v3097 = vmul.f32 %v3094, %v3096
          %v3098 = vadd.f32 %v3094, %v3097
          %vm3099 = vweird.f32 %v3036
          %vm3100 = vweird.f32 %v3094
          %vm3101 = vmor %vm3099, %vm3100
          %v3102 = vsel %vm3101, %v3094, %v3098
          %v3103 = vand.u32 2147483647, %v3036
          %vm3104 = vcmp.eq.f32.partialorder %v3103, 8.507059e+37
          %v3105 = vand.u32 %v3036, 2147483648
          %v3106 = vor.u32 1.1754944e-38, %v3105
          %v3107 = vsel %vm3104, %v3106, %v3102
          %v3108 = vmul.f32 1.0, %v3107
          %v3109 = vrcp.pop %v3037
          %v3110 = vmul.f32 %v3037, %v3109
          %v3111 = vsub.f32 1.0, %v3110
          %v3112 = vmul.f32 %v3109, %v3111
          %v3113 = vadd.f32 %v3109, %v3112
          %vm3114 = vweird.f32 %v3037
          %vm3115 = vweird.f32 %v3109
          %vm3116 = vmor %vm3114, %vm3115
          %v3117 = vsel %vm3116, %v3109, %v3113
          %v3118 = vand.u32 2147483647, %v3037
          %vm3119 = vcmp.eq.f32.partialorder %v3118, 8.507059e+37
          %v3120 = vand.u32 %v3037, 2147483648
          %v3121 = vor.u32 1.1754944e-38, %v3120
          %v3122 = vsel %vm3119, %v3121, %v3117
          %v3123 = vmul.f32 1.0, %v3122
          %v3124 = vrcp.pop %v3038
          %v3125 = vmul.f32 %v3038, %v3124
          %v3126 = vsub.f32 1.0, %v3125
          %v3127 = vmul.f32 %v3124, %v3126
          %v3128 = vadd.f32 %v3124, %v3127
          %vm3129 = vweird.f32 %v3038
          %vm3130 = vweird.f32 %v3124
          %vm3131 = vmor %vm3129, %vm3130
          %v3132 = vsel %vm3131, %v3124, %v3128
          %v3133 = vand.u32 2147483647, %v3038
          %vm3134 = vcmp.eq.f32.partialorder %v3133, 8.507059e+37
          %v3135 = vand.u32 %v3038, 2147483648
          %v3136 = vor.u32 1.1754944e-38, %v3135
          %v3137 = vsel %vm3134, %v3136, %v3132
          %v3138 = vmul.f32 1.0, %v3137
          %v3139 = vrcp.pop %v3039
          %v3140 = vmul.f32 %v3039, %v3139
          %v3141 = vsub.f32 1.0, %v3140
          %v3142 = vmul.f32 %v3139, %v3141
          %v3143 = vadd.f32 %v3139, %v3142
          %vm3144 = vweird.f32 %v3039
          %vm3145 = vweird.f32 %v3139
          %vm3146 = vmor %vm3144, %vm3145
          %v3147 = vsel %vm3146, %v3139, %v3143
          %v3148 = vand.u32 2147483647, %v3039
          %vm3149 = vcmp.eq.f32.partialorder %v3148, 8.507059e+37
          %v3150 = vand.u32 %v3039, 2147483648
          %v3151 = vor.u32 1.1754944e-38, %v3150
          %v3152 = vsel %vm3149, %v3151, %v3147
          %v3153 = vmul.f32 1.0, %v3152
          %v3154 = vrcp.pop %v3040
          %v3155 = vmul.f32 %v3040, %v3154
          %v3156 = vsub.f32 1.0, %v3155
          %v3157 = vmul.f32 %v3154, %v3156
          %v3158 = vadd.f32 %v3154, %v3157
          %vm3159 = vweird.f32 %v3040
          %vm3160 = vweird.f32 %v3154
          %vm3161 = vmor %vm3159, %vm3160
          %v3162 = vsel %vm3161, %v3154, %v3158
          %v3163 = vand.u32 2147483647, %v3040
          %vm3164 = vcmp.eq.f32.partialorder %v3163, 8.507059e+37
          %v3165 = vand.u32 %v3040, 2147483648
          %v3166 = vor.u32 1.1754944e-38, %v3165
          %v3167 = vsel %vm3164, %v3166, %v3162
          %v3168 = vmul.f32 1.0, %v3167
          %v3169 = vrcp.pop %v3041
          %v3170 = vmul.f32 %v3041, %v3169
          %v3171 = vsub.f32 1.0, %v3170
          %v3172 = vmul.f32 %v3169, %v3171
          %v3173 = vadd.f32 %v3169, %v3172
          %vm3174 = vweird.f32 %v3041
          %vm3175 = vweird.f32 %v3169
          %vm3176 = vmor %vm3174, %vm3175
          %v3177 = vsel %vm3176, %v3169, %v3173
          %v3178 = vand.u32 2147483647, %v3041
          %vm3179 = vcmp.eq.f32.partialorder %v3178, 8.507059e+37
          %v3180 = vand.u32 %v3041, 2147483648
          %v3181 = vor.u32 1.1754944e-38, %v3180
          %v3182 = vsel %vm3179, %v3181, %v3177
          %v3183 = vmul.f32 1.0, %v3182
          %v3184 = vrcp.pop %v3042
          %v3185 = vmul.f32 %v3042, %v3184
          %v3186 = vsub.f32 1.0, %v3185
          %v3187 = vmul.f32 %v3184, %v3186
          %v3188 = vadd.f32 %v3184, %v3187
          %vm3189 = vweird.f32 %v3042
          %vm3190 = vweird.f32 %v3184
          %vm3191 = vmor %vm3189, %vm3190
          %v3192 = vsel %vm3191, %v3184, %v3188
          %v3193 = vand.u32 2147483647, %v3042
          %vm3194 = vcmp.eq.f32.partialorder %v3193, 8.507059e+37
          %v3195 = vand.u32 %v3042, 2147483648
          %v3196 = vor.u32 1.1754944e-38, %v3195
          %v3197 = vsel %vm3194, %v3196, %v3192
          %v3198 = vmul.f32 1.0, %v3197
          %v3199 = vrcp.pop %v3043
          %v3200 = vmul.f32 %v3043, %v3199
          %v3201 = vsub.f32 1.0, %v3200
          %v3202 = vmul.f32 %v3199, %v3201
          %v3203 = vadd.f32 %v3199, %v3202
          %vm3204 = vweird.f32 %v3043
          %vm3205 = vweird.f32 %v3199
          %vm3206 = vmor %vm3204, %vm3205
          %v3207 = vsel %vm3206, %v3199, %v3203
          %v3208 = vand.u32 2147483647, %v3043
          %vm3209 = vcmp.eq.f32.partialorder %v3208, 8.507059e+37
          %v3210 = vand.u32 %v3043, 2147483648
          %v3211 = vor.u32 1.1754944e-38, %v3210
          %v3212 = vsel %vm3209, %v3211, %v3207
          %v3213 = vmul.f32 1.0, %v3212
          %v3214 = vrcp.pop %v3044
          %v3215 = vmul.f32 %v3044, %v3214
          %v3216 = vsub.f32 1.0, %v3215
          %v3217 = vmul.f32 %v3214, %v3216
          %v3218 = vadd.f32 %v3214, %v3217
          %vm3219 = vweird.f32 %v3044
          %vm3220 = vweird.f32 %v3214
          %vm3221 = vmor %vm3219, %vm3220
          %v3222 = vsel %vm3221, %v3214, %v3218
          %v3223 = vand.u32 2147483647, %v3044
          %vm3224 = vcmp.eq.f32.partialorder %v3223, 8.507059e+37
          %v3225 = vand.u32 %v3044, 2147483648
          %v3226 = vor.u32 1.1754944e-38, %v3225
          %v3227 = vsel %vm3224, %v3226, %v3222
          %v3228 = vmul.f32 1.0, %v3227
          %v3229 = vrcp.pop %v3045
          %v3230 = vmul.f32 %v3045, %v3229
          %v3231 = vsub.f32 1.0, %v3230
          %v3232 = vmul.f32 %v3229, %v3231
          %v3233 = vadd.f32 %v3229, %v3232
          %vm3234 = vweird.f32 %v3045
          %vm3235 = vweird.f32 %v3229
          %vm3236 = vmor %vm3234, %vm3235
          %v3237 = vsel %vm3236, %v3229, %v3233
          %v3238 = vand.u32 2147483647, %v3045
          %vm3239 = vcmp.eq.f32.partialorder %v3238, 8.507059e+37
          %v3240 = vand.u32 %v3045, 2147483648
          %v3241 = vor.u32 1.1754944e-38, %v3240
          %v3242 = vsel %vm3239, %v3241, %v3237
          %v3243 = vmul.f32 1.0, %v3242
          %v3244 = vrcp.pop %v3046
          %v3245 = vmul.f32 %v3046, %v3244
          %v3246 = vsub.f32 1.0, %v3245
          %v3247 = vmul.f32 %v3244, %v3246
          %v3248 = vadd.f32 %v3244, %v3247
          %vm3249 = vweird.f32 %v3046
          %vm3250 = vweird.f32 %v3244
          %vm3251 = vmor %vm3249, %vm3250
          %v3252 = vsel %vm3251, %v3244, %v3248
          %v3253 = vand.u32 2147483647, %v3046
          %vm3254 = vcmp.eq.f32.partialorder %v3253, 8.507059e+37
          %v3255 = vand.u32 %v3046, 2147483648
          %v3256 = vor.u32 1.1754944e-38, %v3255
          %v3257 = vsel %vm3254, %v3256, %v3252
          %v3258 = vmul.f32 1.0, %v3257
          %v3259 = vrcp.pop %v3047
          %v3260 = vmul.f32 %v3047, %v3259
          %v3261 = vsub.f32 1.0, %v3260
          %v3262 = vmul.f32 %v3259, %v3261
          %v3263 = vadd.f32 %v3259, %v3262
          %vm3264 = vweird.f32 %v3047
          %vm3265 = vweird.f32 %v3259
          %vm3266 = vmor %vm3264, %vm3265
          %v3267 = vsel %vm3266, %v3259, %v3263
          %v3268 = vand.u32 2147483647, %v3047
          %vm3269 = vcmp.eq.f32.partialorder %v3268, 8.507059e+37
          %v3270 = vand.u32 %v3047, 2147483648
          %v3271 = vor.u32 1.1754944e-38, %v3270
          %v3272 = vsel %vm3269, %v3271, %v3267
          %v3273 = vmul.f32 1.0, %v3272
          %v3274 = vrcp.pop %v3048
          %v3275 = vmul.f32 %v3048, %v3274
          %v3276 = vsub.f32 1.0, %v3275
          %v3277 = vmul.f32 %v3274, %v3276
          %v3278 = vadd.f32 %v3274, %v3277
          %vm3279 = vweird.f32 %v3048
          %vm3280 = vweird.f32 %v3274
          %vm3281 = vmor %vm3279, %vm3280
          %v3282 = vsel %vm3281, %v3274, %v3278
          %v3283 = vand.u32 2147483647, %v3048
          %vm3284 = vcmp.eq.f32.partialorder %v3283, 8.507059e+37
          %v3285 = vand.u32 %v3048, 2147483648
          %v3286 = vor.u32 1.1754944e-38, %v3285
          %v3287 = vsel %vm3284, %v3286, %v3282
          %v3288 = vmul.f32 1.0, %v3287
          %v3289 = vld [vmem:[%s3] sm:$0xff]
          %v3290 = vld [vmem:[%s3 + $0x8] sm:$0xff]
          %v3291 = vld [vmem:[%s3 + $0x10] sm:$0xff]
          %v3292 = vld [vmem:[%s3 + $0x18] sm:$0xff]
          %v3293 = vld [vmem:[%s3 + $0x20] sm:$0xff]
          %v3294 = vld [vmem:[%s3 + $0x28] sm:$0xff]
          %v3295 = vld [vmem:[%s3 + $0x30] sm:$0xff]
          %v3296 = vld [vmem:[%s3 + $0x38] sm:$0xff]
          %v3297 = vld [vmem:[%s3 + $0x40] sm:$0xff]
          %v3298 = vld [vmem:[%s3 + $0x48] sm:$0xff]
          %v3299 = vld [vmem:[%s3 + $0x50] sm:$0xff]
          %v3300 = vld [vmem:[%s3 + $0x58] sm:$0xff]
          %v3301 = vld [vmem:[%s3 + $0x60] sm:$0xff]
          %v3302 = vld [vmem:[%s3 + $0x68] sm:$0xff]
          %v3303 = vld [vmem:[%s3 + $0x70] sm:$0xff]
          %v3304 = vld [vmem:[%s3 + $0x78] sm:$0xff]
          %v3305 = vmul.f32 %v3289, 8.0
          %v3306 = vmul.f32 %v3290, 8.0
          %v3307 = vmul.f32 %v3291, 8.0
          %v3308 = vmul.f32 %v3292, 8.0
          %v3309 = vmul.f32 %v3293, 8.0
          %v3310 = vmul.f32 %v3294, 8.0
          %v3311 = vmul.f32 %v3295, 8.0
          %v3312 = vmul.f32 %v3296, 8.0
          %v3313 = vmul.f32 %v3297, 8.0
          %v3314 = vmul.f32 %v3298, 8.0
          %v3315 = vmul.f32 %v3299, 8.0
          %v3316 = vmul.f32 %v3300, 8.0
          %v3317 = vmul.f32 %v3301, 8.0
          %v3318 = vmul.f32 %v3302, 8.0
          %v3319 = vmul.f32 %v3303, 8.0
          %v3320 = vmul.f32 %v3304, 8.0
          %v3321 = vmul.f32 %v3305, %v2599
          %v3322 = vmul.f32 %v3306, %v2614
          %v3323 = vmul.f32 %v3307, %v2629
          %v3324 = vmul.f32 %v3308, %v2644
          %v3325 = vmul.f32 %v3309, %v2659
          %v3326 = vmul.f32 %v3310, %v2674
          %v3327 = vmul.f32 %v3311, %v2689
          %v3328 = vmul.f32 %v3312, %v2704
          %v3329 = vmul.f32 %v3313, %v2719
          %v3330 = vmul.f32 %v3314, %v2734
          %v3331 = vmul.f32 %v3315, %v2749
          %v3332 = vmul.f32 %v3316, %v2764
          %v3333 = vmul.f32 %v3317, %v2779
          %v3334 = vmul.f32 %v3318, %v2794
          %v3335 = vmul.f32 %v3319, %v2809
          %v3336 = vmul.f32 %v3320, %v2824
          %v3337 = vld [vmem:[#allocation2] sm:$0xff]
          %v3338 = vld [vmem:[#allocation2 + $0x8] sm:$0xff]
          %v3339 = vld [vmem:[#allocation2 + $0x10] sm:$0xff]
          %v3340 = vld [vmem:[#allocation2 + $0x18] sm:$0xff]
          %v3341 = vld [vmem:[#allocation2 + $0x20] sm:$0xff]
          %v3342 = vld [vmem:[#allocation2 + $0x28] sm:$0xff]
          %v3343 = vld [vmem:[#allocation2 + $0x30] sm:$0xff]
          %v3344 = vld [vmem:[#allocation2 + $0x38] sm:$0xff]
          %v3345 = vld [vmem:[#allocation2 + $0x40] sm:$0xff]
          %v3346 = vld [vmem:[#allocation2 + $0x48] sm:$0xff]
          %v3347 = vld [vmem:[#allocation2 + $0x50] sm:$0xff]
          %v3348 = vld [vmem:[#allocation2 + $0x58] sm:$0xff]
          %v3349 = vld [vmem:[#allocation2 + $0x60] sm:$0xff]
          %v3350 = vld [vmem:[#allocation2 + $0x68] sm:$0xff]
          %v3351 = vld [vmem:[#allocation2 + $0x70] sm:$0xff]
          %v3352 = vld [vmem:[#allocation2 + $0x78] sm:$0xff]
          %3354 = vset.pattern.permute.xlu0 0
          %3355 = vperm.xlu0 %3354, %v3321
          %v3356 = vpop.permute.xlu0 %3355
          %3359 = vset.pattern.permute.xlu0 0
          %3360 = vperm.xlu0 %3359, %v3322
          %v3361 = vpop.permute.xlu0 %3360
          %3364 = vset.pattern.permute.xlu0 0
          %3365 = vperm.xlu0 %3364, %v3323
          %v3366 = vpop.permute.xlu0 %3365
          %3369 = vset.pattern.permute.xlu0 0
          %3370 = vperm.xlu0 %3369, %v3324
          %v3371 = vpop.permute.xlu0 %3370
          %3374 = vset.pattern.permute.xlu0 0
          %3375 = vperm.xlu0 %3374, %v3325
          %v3376 = vpop.permute.xlu0 %3375
          %3379 = vset.pattern.permute.xlu0 0
          %3380 = vperm.xlu0 %3379, %v3326
          %v3381 = vpop.permute.xlu0 %3380
          %3384 = vset.pattern.permute.xlu0 0
          %3385 = vperm.xlu0 %3384, %v3327
          %v3386 = vpop.permute.xlu0 %3385
          %3389 = vset.pattern.permute.xlu0 0
          %3390 = vperm.xlu0 %3389, %v3328
          %v3391 = vpop.permute.xlu0 %3390
          %3394 = vset.pattern.permute.xlu0 0
          %3395 = vperm.xlu0 %3394, %v3329
          %v3396 = vpop.permute.xlu0 %3395
          %3399 = vset.pattern.permute.xlu0 0
          %3400 = vperm.xlu0 %3399, %v3330
          %v3401 = vpop.permute.xlu0 %3400
          %3404 = vset.pattern.permute.xlu0 0
          %3405 = vperm.xlu0 %3404, %v3331
          %v3406 = vpop.permute.xlu0 %3405
          %3409 = vset.pattern.permute.xlu0 0
          %3410 = vperm.xlu0 %3409, %v3332
          %v3411 = vpop.permute.xlu0 %3410
          %3414 = vset.pattern.permute.xlu0 0
          %3415 = vperm.xlu0 %3414, %v3333
          %v3416 = vpop.permute.xlu0 %3415
          %3419 = vset.pattern.permute.xlu0 0
          %3420 = vperm.xlu0 %3419, %v3334
          %v3421 = vpop.permute.xlu0 %3420
          %3424 = vset.pattern.permute.xlu0 0
          %3425 = vperm.xlu0 %3424, %v3335
          %v3426 = vpop.permute.xlu0 %3425
          %3429 = vset.pattern.permute.xlu0 0
          %3430 = vperm.xlu0 %3429, %v3336
          %v3431 = vpop.permute.xlu0 %3430
          %v3433 = vmul.f32 %v3337, %v3356
          %v3434 = vmul.f32 %v3338, %v3361
          %v3435 = vmul.f32 %v3339, %v3366
          %v3436 = vmul.f32 %v3340, %v3371
          %v3437 = vmul.f32 %v3341, %v3376
          %v3438 = vmul.f32 %v3342, %v3381
          %v3439 = vmul.f32 %v3343, %v3386
          %v3440 = vmul.f32 %v3344, %v3391
          %v3441 = vmul.f32 %v3345, %v3396
          %v3442 = vmul.f32 %v3346, %v3401
          %v3443 = vmul.f32 %v3347, %v3406
          %v3444 = vmul.f32 %v3348, %v3411
          %v3445 = vmul.f32 %v3349, %v3416
          %v3446 = vmul.f32 %v3350, %v3421
          %v3447 = vmul.f32 %v3351, %v3426
          %v3448 = vmul.f32 %v3352, %v3431
          %3449 = vxpose.xlu0.b32.start [1/16] %v3063, 128
          %3450 = vxpose.xlu0.b32.cont [2/16] %v3078, 128
          %3451 = vxpose.xlu0.b32.cont [3/16] %v3093, 128
          %3452 = vxpose.xlu0.b32.cont [4/16] %v3108, 128
          %3453 = vxpose.xlu0.b32.cont [5/16] %v3123, 128
          %3454 = vxpose.xlu0.b32.cont [6/16] %v3138, 128
          %3455 = vxpose.xlu0.b32.cont [7/16] %v3153, 128
          %3456 = vxpose.xlu0.b32.cont [8/16] %v3168, 128
          %3457 = vxpose.xlu0.b32.cont [9/16] %v3183, 128
          %3458 = vxpose.xlu0.b32.cont [10/16] %v3198, 128
          %3459 = vxpose.xlu0.b32.cont [11/16] %v3213, 128
          %3460 = vxpose.xlu0.b32.cont [12/16] %v3228, 128
          %3461 = vxpose.xlu0.b32.cont [13/16] %v3243, 128
          %3462 = vxpose.xlu0.b32.cont [14/16] %v3258, 128
          %3463 = vxpose.xlu0.b32.cont [15/16] %v3273, 128
          %3464 = vxpose.xlu0.b32.end [16/16] %v3288, 128
          %v3465 = vpop.trf.xlu0
          %v3466 = vpop.trf.xlu0
          %v3467 = vpop.trf.xlu0
          %v3468 = vpop.trf.xlu0
          %v3469 = vpop.trf.xlu0
          %v3470 = vpop.trf.xlu0
          %v3471 = vpop.trf.xlu0
          %v3472 = vpop.trf.xlu0
          %v3473 = vpop.trf.xlu0
          %v3474 = vpop.trf.xlu0
          %v3475 = vpop.trf.xlu0
          %v3476 = vpop.trf.xlu0
          %v3477 = vpop.trf.xlu0
          %v3478 = vpop.trf.xlu0
          %v3479 = vpop.trf.xlu0
          %v3480 = vpop.trf.xlu0
          %v3481 = vperm.slane %v3465, 0
          %v3482 = vmul.f32 %v3433, %v3481
          %v3483 = vmul.f32 %v3434, %v3481
          %v3484 = vmul.f32 %v3435, %v3481
          %v3485 = vmul.f32 %v3436, %v3481
          %v3486 = vmul.f32 %v3437, %v3481
          %v3487 = vmul.f32 %v3438, %v3481
          %v3488 = vmul.f32 %v3439, %v3481
          %v3489 = vmul.f32 %v3440, %v3481
          %v3490 = vmul.f32 %v3441, %v3481
          %v3491 = vmul.f32 %v3442, %v3481
          %v3492 = vmul.f32 %v3443, %v3481
          %v3493 = vmul.f32 %v3444, %v3481
          %v3494 = vmul.f32 %v3445, %v3481
          %v3495 = vmul.f32 %v3446, %v3481
          %v3496 = vmul.f32 %v3447, %v3481
          %v3497 = vmul.f32 %v3448, %v3481
          %v3498 = vld [vmem:[%s4] sm:$0xff]
          %v3499 = vld [vmem:[%s4 + $0x8] sm:$0xff]
          %v3500 = vld [vmem:[%s4 + $0x10] sm:$0xff]
          %v3501 = vld [vmem:[%s4 + $0x18] sm:$0xff]
          %v3502 = vld [vmem:[%s4 + $0x20] sm:$0xff]
          %v3503 = vld [vmem:[%s4 + $0x28] sm:$0xff]
          %v3504 = vld [vmem:[%s4 + $0x30] sm:$0xff]
          %v3505 = vld [vmem:[%s4 + $0x38] sm:$0xff]
          %v3506 = vld [vmem:[%s4 + $0x40] sm:$0xff]
          %v3507 = vld [vmem:[%s4 + $0x48] sm:$0xff]
          %v3508 = vld [vmem:[%s4 + $0x50] sm:$0xff]
          %v3509 = vld [vmem:[%s4 + $0x58] sm:$0xff]
          %v3510 = vld [vmem:[%s4 + $0x60] sm:$0xff]
          %v3511 = vld [vmem:[%s4 + $0x68] sm:$0xff]
          %v3512 = vld [vmem:[%s4 + $0x70] sm:$0xff]
          %v3513 = vld [vmem:[%s4 + $0x78] sm:$0xff]
          %v3514 = vadd.f32 %v3482, %v3498
          %v3515 = vadd.f32 %v3483, %v3499
          %v3516 = vadd.f32 %v3484, %v3500
          %v3517 = vadd.f32 %v3485, %v3501
          %v3518 = vadd.f32 %v3486, %v3502
          %v3519 = vadd.f32 %v3487, %v3503
          %v3520 = vadd.f32 %v3488, %v3504
          %v3521 = vadd.f32 %v3489, %v3505
          %v3522 = vadd.f32 %v3490, %v3506
          %v3523 = vadd.f32 %v3491, %v3507
          %v3524 = vadd.f32 %v3492, %v3508
          %v3525 = vadd.f32 %v3493, %v3509
          %v3526 = vadd.f32 %v3494, %v3510
          %v3527 = vadd.f32 %v3495, %v3511
          %v3528 = vadd.f32 %v3496, %v3512
          %v3529 = vadd.f32 %v3497, %v3513
          %3530 = vmax.xlane.f32.xlu0 %v3514
          %v3531 = vpop.xlane.xlu0 %3530
          %3532 = vmax.xlane.f32.xlu0 %v3515
          %v3533 = vpop.xlane.xlu0 %3532
          %3534 = vmax.xlane.f32.xlu0 %v3516
          %v3535 = vpop.xlane.xlu0 %3534
          %3536 = vmax.xlane.f32.xlu0 %v3517
          %v3537 = vpop.xlane.xlu0 %3536
          %3538 = vmax.xlane.f32.xlu0 %v3518
          %v3539 = vpop.xlane.xlu0 %3538
          %3540 = vmax.xlane.f32.xlu0 %v3519
          %v3541 = vpop.xlane.xlu0 %3540
          %3542 = vmax.xlane.f32.xlu0 %v3520
          %v3543 = vpop.xlane.xlu0 %3542
          %3544 = vmax.xlane.f32.xlu0 %v3521
          %v3545 = vpop.xlane.xlu0 %3544
          %3546 = vmax.xlane.f32.xlu0 %v3522
          %v3547 = vpop.xlane.xlu0 %3546
          %3548 = vmax.xlane.f32.xlu0 %v3523
          %v3549 = vpop.xlane.xlu0 %3548
          %3550 = vmax.xlane.f32.xlu0 %v3524
          %v3551 = vpop.xlane.xlu0 %3550
          %3552 = vmax.xlane.f32.xlu0 %v3525
          %v3553 = vpop.xlane.xlu0 %3552
          %3554 = vmax.xlane.f32.xlu0 %v3526
          %v3555 = vpop.xlane.xlu0 %3554
          %3556 = vmax.xlane.f32.xlu0 %v3527
          %v3557 = vpop.xlane.xlu0 %3556
          %3558 = vmax.xlane.f32.xlu0 %v3528
          %v3559 = vpop.xlane.xlu0 %3558
          %3560 = vmax.xlane.f32.xlu0 %v3529
          %v3561 = vpop.xlane.xlu0 %3560
          %v3562 = vsub.f32 %v3514, %v3531
          %v3563 = vsub.f32 %v3515, %v3533
          %v3564 = vsub.f32 %v3516, %v3535
          %v3565 = vsub.f32 %v3517, %v3537
          %v3566 = vsub.f32 %v3518, %v3539
          %v3567 = vsub.f32 %v3519, %v3541
          %v3568 = vsub.f32 %v3520, %v3543
          %v3569 = vsub.f32 %v3521, %v3545
          %v3570 = vsub.f32 %v3522, %v3547
          %v3571 = vsub.f32 %v3523, %v3549
          %v3572 = vsub.f32 %v3524, %v3551
          %v3573 = vsub.f32 %v3525, %v3553
          %v3574 = vsub.f32 %v3526, %v3555
          %v3575 = vsub.f32 %v3527, %v3557
          %v3576 = vsub.f32 %v3528, %v3559
          %v3577 = vsub.f32 %v3529, %v3561
          %v3578 = vmul.f32 %v3562, 1.442695
          %v3579 = vpow.pop %v3578
          %v3580 = vmul.f32 %v3563, 1.442695
          %v3581 = vpow.pop %v3580
          %v3582 = vmul.f32 %v3564, 1.442695
          %v3583 = vpow.pop %v3582
          %v3584 = vmul.f32 %v3565, 1.442695
          %v3585 = vpow.pop %v3584
          %v3586 = vmul.f32 %v3566, 1.442695
          %v3587 = vpow.pop %v3586
          %v3588 = vmul.f32 %v3567, 1.442695
          %v3589 = vpow.pop %v3588
          %v3590 = vmul.f32 %v3568, 1.442695
          %v3591 = vpow.pop %v3590
          %v3592 = vmul.f32 %v3569, 1.442695
          %v3593 = vpow.pop %v3592
          %v3594 = vmul.f32 %v3570, 1.442695
          %v3595 = vpow.pop %v3594
          %v3596 = vmul.f32 %v3571, 1.442695
          %v3597 = vpow.pop %v3596
          %v3598 = vmul.f32 %v3572, 1.442695
          %v3599 = vpow.pop %v3598
          %v3600 = vmul.f32 %v3573, 1.442695
          %v3601 = vpow.pop %v3600
          %v3602 = vmul.f32 %v3574, 1.442695
          %v3603 = vpow.pop %v3602
          %v3604 = vmul.f32 %v3575, 1.442695
          %v3605 = vpow.pop %v3604
          %v3606 = vmul.f32 %v3576, 1.442695
          %v3607 = vpow.pop %v3606
          %v3608 = vmul.f32 %v3577, 1.442695
          %v3609 = vpow.pop %v3608
          %3610 = vadd.xlane.f32.xlu0 %v3579
          %v3611 = vpop.xlane.xlu0 %3610
          %3612 = vadd.xlane.f32.xlu0 %v3581
          %v3613 = vpop.xlane.xlu0 %3612
          %3614 = vadd.xlane.f32.xlu0 %v3583
          %v3615 = vpop.xlane.xlu0 %3614
          %3616 = vadd.xlane.f32.xlu0 %v3585
          %v3617 = vpop.xlane.xlu0 %3616
          %3618 = vadd.xlane.f32.xlu0 %v3587
          %v3619 = vpop.xlane.xlu0 %3618
          %3620 = vadd.xlane.f32.xlu0 %v3589
          %v3621 = vpop.xlane.xlu0 %3620
          %3622 = vadd.xlane.f32.xlu0 %v3591
          %v3623 = vpop.xlane.xlu0 %3622
          %3624 = vadd.xlane.f32.xlu0 %v3593
          %v3625 = vpop.xlane.xlu0 %3624
          %3626 = vadd.xlane.f32.xlu0 %v3595
          %v3627 = vpop.xlane.xlu0 %3626
          %3628 = vadd.xlane.f32.xlu0 %v3597
          %v3629 = vpop.xlane.xlu0 %3628
          %3630 = vadd.xlane.f32.xlu0 %v3599
          %v3631 = vpop.xlane.xlu0 %3630
          %3632 = vadd.xlane.f32.xlu0 %v3601
          %v3633 = vpop.xlane.xlu0 %3632
          %3634 = vadd.xlane.f32.xlu0 %v3603
          %v3635 = vpop.xlane.xlu0 %3634
          %3636 = vadd.xlane.f32.xlu0 %v3605
          %v3637 = vpop.xlane.xlu0 %3636
          %3638 = vadd.xlane.f32.xlu0 %v3607
          %v3639 = vpop.xlane.xlu0 %3638
          %3640 = vadd.xlane.f32.xlu0 %v3609
          %v3641 = vpop.xlane.xlu0 %3640
          %v3642 = vrcp.pop %v3611
          %v3643 = vrcp.pop %v3613
          %v3644 = vrcp.pop %v3615
          %v3645 = vrcp.pop %v3617
          %v3646 = vrcp.pop %v3619
          %v3647 = vrcp.pop %v3621
          %v3648 = vrcp.pop %v3623
          %v3649 = vrcp.pop %v3625
          %v3650 = vrcp.pop %v3627
          %v3651 = vrcp.pop %v3629
          %v3652 = vrcp.pop %v3631
          %v3653 = vrcp.pop %v3633
          %v3654 = vrcp.pop %v3635
          %v3655 = vrcp.pop %v3637
          %v3656 = vrcp.pop %v3639
          %v3657 = vrcp.pop %v3641
          %v3658 = vmul.f32 %v3579, %v3642
          %v3659 = vmul.f32 %v3581, %v3643
          %v3660 = vmul.f32 %v3583, %v3644
          %v3661 = vmul.f32 %v3585, %v3645
          %v3662 = vmul.f32 %v3587, %v3646
          %v3663 = vmul.f32 %v3589, %v3647
          %v3664 = vmul.f32 %v3591, %v3648
          %v3665 = vmul.f32 %v3593, %v3649
          %v3666 = vmul.f32 %v3595, %v3650
          %v3667 = vmul.f32 %v3597, %v3651
          %v3668 = vmul.f32 %v3599, %v3652
          %v3669 = vmul.f32 %v3601, %v3653
          %v3670 = vmul.f32 %v3603, %v3654
          %v3671 = vmul.f32 %v3605, %v3655
          %v3672 = vmul.f32 %v3607, %v3656
          %v3673 = vmul.f32 %v3609, %v3657
          %3674 = vst [vmem:[%s280] sm:$0xff] %v3658
          %3675 = vst [vmem:[%s280 + $0x8] sm:$0xff] %v3659
          %3676 = vst [vmem:[%s280 + $0x10] sm:$0xff] %v3660
          %3677 = vst [vmem:[%s280 + $0x18] sm:$0xff] %v3661
          %3678 = vst [vmem:[%s280 + $0x20] sm:$0xff] %v3662
          %3679 = vst [vmem:[%s280 + $0x28] sm:$0xff] %v3663
          %3680 = vst [vmem:[%s280 + $0x30] sm:$0xff] %v3664
          %3681 = vst [vmem:[%s280 + $0x38] sm:$0xff] %v3665
          %3682 = vst [vmem:[%s280 + $0x40] sm:$0xff] %v3666
          %3683 = vst [vmem:[%s280 + $0x48] sm:$0xff] %v3667
          %3684 = vst [vmem:[%s280 + $0x50] sm:$0xff] %v3668
          %3685 = vst [vmem:[%s280 + $0x58] sm:$0xff] %v3669
          %3686 = vst [vmem:[%s280 + $0x60] sm:$0xff] %v3670
          %3687 = vst [vmem:[%s280 + $0x68] sm:$0xff] %v3671
          %3688 = vst [vmem:[%s280 + $0x70] sm:$0xff] %v3672
          %3689 = vst [vmem:[%s280 + $0x78] sm:$0xff] %v3673
        $region48: #{tpu_custom_call.1} parent=39 // pred_fallthru
          _
        %s3690 = sand.u32 %s158, 1
        %s3691 = scalar_lea.sflag [#allocation6], %s3690
        %s3692 = sand.u32 %s158, 1
        %s3693 = smul.addr %s3692, 128
        %s3694 = scalar_lea.vmem [#allocation5], %s3693
        %s3695 = sand.u32 %s184, 1
        %s3696 = scalar_lea.sflag [#allocation8], %s3695
        %s3697 = sand.u32 %s184, 1
        %s3698 = smul.addr %s3697, 128
        %s3699 = scalar_lea.vmem [#allocation7], %s3698
        // Predicated region
        $region49: #{tpu_custom_call.1} parent=39 // pred_check
          %p3700 = pneg %p168
        $region50: #{tpu_custom_call.1} parent=39 // pred_check_branch
          %3702 = sbr.rel (%p3700) target = $region52
        $region51: #{tpu_custom_call.1} parent=39 // pred_region
          %3704 = vsyncadd %s3691, 0
          %s3705 = smul.addr %s28, 32
          %s3706 = sadd.s32 %s29, %s3705
          %s3707 = smul.addr %s3706, 8
          %s3708 = scalar_lea.hbm %s5, %s3707
          %s3709 = sshll.u32 %s3694, 4
          %s3710 = int_to_ptr.vmem [resolvable:$true] %s3709
          %s3711 = sshll.u32 %s3708, 4
          %s3712 = int_to_ptr.hbm [resolvable:$true] %s3711
          %3717 = dma.vmem_to_hbm [thread:$0]  %s3710, 2048, %s3712, %s3691, 128, 256, 8
        $region52: #{tpu_custom_call.1} parent=39 // pred_fallthru
          _
        // Predicated region
        $region53: #{tpu_custom_call.1} parent=39 // pred_check
          %p3718 = pneg %p194
        $region54: #{tpu_custom_call.1} parent=39 // pred_check_branch
          %3720 = sbr.rel (%p3718) target = $region56
        $region55: #{tpu_custom_call.1} parent=39 // pred_region
          %3722 = vsyncadd %s3696, 0
          %s3723 = smul.addr %s28, 16
          %s3724 = smul.addr %s3723, 8
          %s3725 = scalar_lea.hbm %s6, %s3724
          %s3726 = sshll.u32 %s3699, 4
          %s3727 = int_to_ptr.vmem [resolvable:$true] %s3726
          %s3728 = sshll.u32 %s3725, 4
          %s3729 = int_to_ptr.hbm [resolvable:$true] %s3728
          %3734 = dma.vmem_to_hbm [thread:$0]  %s3727, 2048, %s3729, %s3696, 128, 128, 8
        $region56: #{tpu_custom_call.1} parent=39 // pred_fallthru
          _
      $region40: #{tpu_custom_call.1} parent=5 // pred_fallthru
        _
      %p3735 = scmp.le.s32.totalorder 2, %s19
      // Predicated region
      $region57: #{tpu_custom_call.1} parent=5 // pred_check
        %p3736 = pneg %p3735
      $region58: #{tpu_custom_call.1} parent=5 // pred_check_branch
        %3738 = sbr.rel (%p3736) target = $region60
      $region59: #{tpu_custom_call.1} parent=5 // pred_region
        %s3739 = ssub.s32 %s19, 2
        // Predicated region
        $region61: #{tpu_custom_call.1} parent=59 // pred_check
          %p3740 = pneg %p174
        $region62: #{tpu_custom_call.1} parent=59 // pred_check_branch
          %3742 = sbr.rel (%p3740) target = $region64
        $region63: #{tpu_custom_call.1} parent=59 // pred_region
          %s3743 = sand.u32 %s159, 1
          %s3744 = scalar_lea.sflag [#allocation6], %s3743
          %s3745 = sand.u32 %s159, 1
          %s3746 = smul.addr %s3745, 128
          %s3747 = scalar_lea.vmem [#allocation5], %s3746
          %3749 = dma.done %s3744, 2048
        $region64: #{tpu_custom_call.1} parent=59 // pred_fallthru
          _
        // Predicated region
        $region65: #{tpu_custom_call.1} parent=59 // pred_check
          %p3750 = pneg %p200
        $region66: #{tpu_custom_call.1} parent=59 // pred_check_branch
          %3752 = sbr.rel (%p3750) target = $region68
        $region67: #{tpu_custom_call.1} parent=59 // pred_region
          %s3753 = sand.u32 %s185, 1
          %s3754 = scalar_lea.sflag [#allocation8], %s3753
          %s3755 = sand.u32 %s185, 1
          %s3756 = smul.addr %s3755, 128
          %s3757 = scalar_lea.vmem [#allocation7], %s3756
          %3759 = dma.done %s3754, 2048
        $region68: #{tpu_custom_call.1} parent=59 // pred_fallthru
          _
      $region60: #{tpu_custom_call.1} parent=5 // pred_fallthru
        _
    $region6: #{tpu_custom_call.1} parent=1 // loop_footer
      %s23 = sadd.s32 1, %s19
    $region7: #{tpu_custom_call.1} parent=1 // loop_footer_branch
      %18 = sbr.rel target = $region3
    $region8: #{tpu_custom_call.1} parent=1 // loop_exit
      _
    %3760 = vsyncpa [#allocation6], 1
    %s3761 = scalar_lea.sflag [#allocation6], 1
    %3762 = vsyncpa %s3761, 1
    %3763 = vsyncpa [#allocation8], 1
    %s3764 = scalar_lea.sflag [#allocation8], 1
    %3765 = vsyncpa %s3764, 1

</llo_original>
